<compile_context>
chip_gen: v7x
topology: tpu7x:2x2x1
jax: 0.10.0
libtpu: 0.0.40
codegen_flags: <defaults>
</compile_context>

<pallas_src>
import jax
import jax.numpy as jnp
from jax.experimental import pallas as pl
from jax.experimental.pallas import tpu as pltpu

BN_EPS = 1e-5

_W_ORDER = ('Wp1', 'bp1', 'Wp2', 'bp2', 'Wl', 'bl', 'Wx', 'bx')


# ----------------------------------------------------------------------------------------------
# Pallas kernel
# ----------------------------------------------------------------------------------------------
def _interset_kernel(xk_ref, pr_ref, idx_ref, x_ref,
                     Wp1, bp1, Wp2, bp2, Wl, bl, Wx, bx,
                     out_ref, acc_ref, cmax_ref):
    phase = pl.program_id(0)
    i = pl.program_id(1)
    n_tiles = pl.num_programs(1)

    N, C = x_ref.shape                      # number of destination points / feature width
    Cp = Wl.shape[1]                        # in_planes // share_planes
    share = C // Cp
    Mt = xk_ref.shape[0]                    # source rows in this tile (tile_n * nsample)

    @pl.when(jnp.logical_and(phase == 0, i == 0))
    def _init():
        acc_ref[...] = jnp.zeros_like(acc_ref)
        cmax_ref[...] = jnp.full_like(cmax_ref, -jnp.inf)

    def bf(a):
        return a.astype(jnp.bfloat16)

    def mm(a, b):
        # bf16 operands, f32 accumulation (MXU-native on v5e/v6e/v7x)
        return jnp.dot(bf(a), bf(b), preferred_element_type=jnp.float32)

    xk = xk_ref[...]                        # (Mt, C)
    pr = pr_ref[...]                        # (Mt, 3)

    # linear_p: Linear(3,3,bias=False) + folded eval-mode BatchNorm1d(3) -> ReLU -> Linear(3,C)
    h = jnp.maximum(mm(pr, Wp1[...]) + bp1[...], 0.0)
    p_embed = mm(h, Wp2[...]) + bp2[...]                                   # (Mt, C)

    # shrink logits for scatter_softmax
    s = mm(xk + p_embed, Wl[...]) + bl[...]                                # (Mt, Cp)

    @pl.when(phase == 0)
    def _max_pass():
        cmax_ref[...] = jnp.maximum(cmax_ref[...],
                                    jnp.max(s, axis=0, keepdims=True))

    @pl.when(phase == 1)
    def _accumulate_pass():
        e = jnp.exp(s - cmax_ref[...])                                     # (Mt, Cp)
        v = mm(xk, Wx[...]) + bx[...]                                      # (Mt, Cp)
        payload = jnp.concatenate([v * e, e], axis=-1)                     # (Mt, 2*Cp)

        # one-hot scatter matrix: onehot[m, d] = (knn_idx[m] == d)
        dst = jax.lax.broadcasted_iota(jnp.int32, (Mt, N), 1)
        onehot = (dst == idx_ref[...]).astype(jnp.bfloat16)                # (Mt, N)

        # segment sums for this tile: (N, 2*Cp) = onehot^T @ payload, accumulated in f32
        contrib = jax.lax.dot_general(
            onehot, bf(payload),
            dimension_numbers=(((0,), (0,)), ((), ())),
            preferred_element_type=jnp.float32)
        acc_ref[...] += contrib

    @pl.when(jnp.logical_and(phase == 1, i == n_tiles - 1))
    def _finalize():
        num = acc_ref[:, :Cp]                                              # sum v*exp
        den = acc_ref[:, Cp:]                                              # sum exp
        r = num * pl.reciprocal(jnp.maximum(den, 1e-30), approx=True)      # (N, Cp)
        residual = jnp.concatenate([r] * share, axis=-1)                   # repeat 'n c -> n (share c)'
        out_ref[...] = x_ref[...] + residual


# ----------------------------------------------------------------------------------------------
# Wrapper
# ----------------------------------------------------------------------------------------------
def pointmixer_interset_layer(x, x_knn, knn_idx, p_r, params, *, share_planes, tile_n=32):
    N, K, C = x_knn.shape
    Cp = C // share_planes
    assert C % share_planes == 0

    # flatten 'n k c -> (n k) c' (source axis) and pad it to a multiple of tile_n points
    xk = x_knn.reshape(N * K, C).astype(jnp.float32)
    pr = p_r.reshape(N * K, 3).astype(jnp.float32)
    idx = knn_idx.reshape(N * K, 1).astype(jnp.int32)
    n_pad = (-N) % tile_n
    if n_pad:
        xk = jnp.concatenate([xk, jnp.zeros((n_pad * K, C), jnp.float32)], axis=0)
        pr = jnp.concatenate([pr, jnp.zeros((n_pad * K, 3), jnp.float32)], axis=0)
        # out-of-range destination index -> padded rows scatter to nothing
        idx = jnp.concatenate([idx, jnp.full((n_pad * K, 1), N, jnp.int32)], axis=0)

    n_tiles = (N + n_pad) // tile_n
    Mt = tile_n * K
    weights = [params[k] for k in _W_ORDER]

    in_specs = [
        pl.BlockSpec((Mt, C), lambda ph, i: (i, 0)),     # x_knn rows
        pl.BlockSpec((Mt, 3), lambda ph, i: (i, 0)),     # relative coords
        pl.BlockSpec((Mt, 1), lambda ph, i: (i, 0)),     # destination indices
        pl.BlockSpec((N, C), lambda ph, i: (0, 0)),      # x (resident)
    ] + [pl.BlockSpec(w.shape, lambda ph, i: (0, 0)) for w in weights]

    out = pl.pallas_call(
        _interset_kernel,
        out_shape=jax.ShapeDtypeStruct((N, C), jnp.float32),
        grid_spec=pltpu.PrefetchScalarGridSpec(
            num_scalar_prefetch=0,
            grid=(2, n_tiles),                           # (phase, source tile)
            in_specs=in_specs,
            out_specs=pl.BlockSpec((N, C), lambda ph, i: (0, 0)),
            scratch_shapes=[
                pltpu.VMEM((N, 2 * Cp), jnp.float32),    # [sum v*exp | sum exp] per destination
                pltpu.VMEM((1, Cp), jnp.float32),        # per-channel global logit max
            ]),
        compiler_params=pltpu.CompilerParams(
            dimension_semantics=("arbitrary", "arbitrary")),
    )(xk, pr, idx, x.astype(jnp.float32), *weights)
    return out


# ----------------------------------------------------------------------------------------------
# Parameter construction (eval-mode BatchNorm1d folded into the first linear_p layer)
# ----------------------------------------------------------------------------------------------
def init_params(key, in_planes, share_planes, *, scale=0.1):
    C = in_planes
    Cp = C // share_planes
    ks = jax.random.split(key, 9)

    def rnd(k, shape):
        return (scale * jax.random.normal(k, shape)).astype(jnp.float32)

    # linear_p[0]: Linear(3, 3, bias=False), stored (in, out)
    Wp1_raw = rnd(ks[0], (3, 3))
    # linear_p[1]: BatchNorm1d(3), eval mode.
    # TODO(synk): with a trained checkpoint, fold the real running_mean/running_var here.
    gamma = 1.0 + rnd(ks[1], (3,))
    beta = rnd(ks[2], (3,))
    run_mean = jnp.zeros((3,), jnp.float32)
    run_var = jnp.ones((3,), jnp.float32)
    bn_scale = gamma / jnp.sqrt(run_var + BN_EPS)
    Wp1 = Wp1_raw * bn_scale[None, :]
    bp1 = (beta - run_mean * bn_scale)[None, :]
    # linear_p[3]: Linear(3, C)
    Wp2 = rnd(ks[3], (3, C))
    bp2 = rnd(ks[4], (1, C))
    # self.linear: Linear(C, C // share)
    Wl = rnd(ks[5], (C, Cp))
    bl = rnd(ks[6], (1, Cp))
    # self.linear_x: Linear(C, C // share)
    Wx = rnd(ks[7], (C, Cp))
    bx = rnd(ks[8], (1, Cp))
    return dict(Wp1=Wp1, bp1=bp1, Wp2=Wp2, bp2=bp2, Wl=Wl, bl=bl, Wx=Wx, bx=bx)


# ----------------------------------------------------------------------------------------------
# Pure-JAX reference (mirrors the PyTorch math: scatter_softmax / scatter_sum)
# ----------------------------------------------------------------------------------------------
def reference_forward(x, x_knn, knn_idx, p_r, params, share_planes):
    N, K, C = x_knn.shape
    M = N * K
    pr = p_r.reshape(M, 3)
    xk = x_knn.reshape(M, C)
    idx = knn_idx.reshape(M)

    h = jnp.maximum(pr @ params['Wp1'] + params['bp1'], 0.0)
    pe = h @ params['Wp2'] + params['bp2']
    s = (xk + pe) @ params['Wl'] + params['bl']                    # (M, Cp)

    gmax = jax.ops.segment_max(s, idx, num_segments=N)             # scatter_softmax
    e = jnp.exp(s - gmax[idx])
    den = jax.ops.segment_sum(e, idx, num_segments=N)
    prob = e / den[idx]

    v = xk @ params['Wx'] + params['bx']
    residual = jax.ops.segment_sum(v * prob, idx, num_segments=N)  # scatter_sum
    residual = jnp.tile(residual, (1, share_planes))               # repeat 'n c -> n (share c)'
    return x + residual


if __name__ == "__main__":
    key = jax.random.PRNGKey(0)
    N, nsample = 256, 16
    in_planes, share_planes = 32, 2

    kp, kx, kw = jax.random.split(key, 3)
    p = jax.random.normal(kp, (N, 3), jnp.float32)
    x = jax.random.normal(kx, (N, in_planes), jnp.float32)
    params = init_params(kw, in_planes, share_planes)

    # build the (x_knn, knn_idx, p_r) inputs this layer receives (pointops-style kNN grouping, single batch)
    d2 = jnp.sum((p[:, None, :] - p[None, :, :]) ** 2, axis=-1)
    _, knn_idx = jax.lax.top_k(-d2, nsample)
    knn_idx = knn_idx.astype(jnp.int32)
    p_r = p[knn_idx] - p[:, None, :]
    x_knn = x[knn_idx]

    out = pointmixer_interset_layer(x, x_knn, knn_idx, p_r, params,
                                    share_planes=share_planes, tile_n=32)
    jax.block_until_ready(out)

    with jax.default_matmul_precision("highest"):
        ref = reference_forward(x, x_knn, knn_idx, p_r, params, share_planes)
    err = float(jnp.max(jnp.abs(out - ref)))
    assert bool(jnp.all(jnp.isfinite(out))) and err < 5e-2, f"mismatch: max abs err = {err}"
    print("KERNEL_OK")
</pallas_src>

<mosaic_0001>
module attributes {stable_mosaic.version = 11 : i64} {
  func.func @_interset_kernel(%arg0: i32, %arg1: i32, %arg2: memref<512x32xf32, #tpu.memory_space<vmem>>, %arg3: memref<512x3xf32, #tpu.memory_space<vmem>>, %arg4: memref<512x1xi32, #tpu.memory_space<vmem>>, %arg5: memref<256x32xf32, #tpu.memory_space<vmem>>, %arg6: memref<3x3xf32, #tpu.memory_space<vmem>>, %arg7: memref<1x3xf32, #tpu.memory_space<vmem>>, %arg8: memref<3x32xf32, #tpu.memory_space<vmem>>, %arg9: memref<1x32xf32, #tpu.memory_space<vmem>>, %arg10: memref<32x16xf32, #tpu.memory_space<vmem>>, %arg11: memref<1x16xf32, #tpu.memory_space<vmem>>, %arg12: memref<32x16xf32, #tpu.memory_space<vmem>>, %arg13: memref<1x16xf32, #tpu.memory_space<vmem>>, %arg14: memref<256x32xf32, #tpu.memory_space<vmem>>, %arg15: memref<256x32xf32, #tpu.memory_space<vmem>>, %arg16: memref<1x16xf32, #tpu.memory_space<vmem>>) attributes {dimension_semantics = [#tpu.dimension_semantics<arbitrary>, #tpu.dimension_semantics<arbitrary>], iteration_bounds = array<i64: 2, 8>, scalar_prefetch = 0 : i64, scratch_operands = 2 : i64, tpu.core_type = #tpu.core_type<tc>, window_params = [{transform_indices = @transform_0, window_bounds = array<i64: 512, 32>}, {transform_indices = @transform_1, window_bounds = array<i64: 512, 3>}, {transform_indices = @transform_2, window_bounds = array<i64: 512, 1>}, {pipeline_mode = #tpu.pipeline_mode<synchronous>, transform_indices = @transform_3, window_bounds = array<i64: 256, 32>}, {pipeline_mode = #tpu.pipeline_mode<synchronous>, transform_indices = @transform_4, window_bounds = array<i64: 3, 3>}, {pipeline_mode = #tpu.pipeline_mode<synchronous>, transform_indices = @transform_5, window_bounds = array<i64: 1, 3>}, {pipeline_mode = #tpu.pipeline_mode<synchronous>, transform_indices = @transform_6, window_bounds = array<i64: 3, 32>}, {pipeline_mode = #tpu.pipeline_mode<synchronous>, transform_indices = @transform_7, window_bounds = array<i64: 1, 32>}, {pipeline_mode = #tpu.pipeline_mode<synchronous>, transform_indices = @transform_8, window_bounds = array<i64: 32, 16>}, {pipeline_mode = #tpu.pipeline_mode<synchronous>, transform_indices = @transform_9, window_bounds = array<i64: 1, 16>}, {pipeline_mode = #tpu.pipeline_mode<synchronous>, transform_indices = @transform_10, window_bounds = array<i64: 32, 16>}, {pipeline_mode = #tpu.pipeline_mode<synchronous>, transform_indices = @transform_11, window_bounds = array<i64: 1, 16>}, {pipeline_mode = #tpu.pipeline_mode<synchronous>, transform_indices = @transform_12, window_bounds = array<i64: 256, 32>}]} {
    %c0_i32 = arith.constant 0 : i32
    %0 = arith.cmpi eq, %arg0, %c0_i32 : i32
    %c0_i32_0 = arith.constant 0 : i32
    %1 = arith.cmpi eq, %arg1, %c0_i32_0 : i32
    %2 = arith.andi %0, %1 : i1
    %3 = arith.extui %2 : i1 to i32
    %c0_i32_1 = arith.constant 0 : i32
    %4 = arith.cmpi ne, %3, %c0_i32_1 : i32
    scf.if %4 {
      %cst_25 = arith.constant 0.000000e+00 : f32
      %42 = vector.broadcast %cst_25 : f32 to vector<256x32xf32>
      %c0_26 = arith.constant 0 : index
      %c0_27 = arith.constant 0 : index
      %43 = vector.load %arg15[%c0_26, %c0_27] : memref<256x32xf32, #tpu.memory_space<vmem>>, vector<256x32xf32>
      tpu.vector_store %arg15[%c0_26, %c0_27], %42 {strides = array<i32>} : memref<256x32xf32, #tpu.memory_space<vmem>>, vector<256x32xf32>,
      %cst_28 = arith.constant 0xFF800000 : f32
      %44 = vector.broadcast %cst_28 : f32 to vector<1x16xf32>
      %c0_29 = arith.constant 0 : index
      %c0_30 = arith.constant 0 : index
      %45 = vector.load %arg16[%c0_29, %c0_30] : memref<1x16xf32, #tpu.memory_space<vmem>>, vector<1x16xf32>
      tpu.vector_store %arg16[%c0_29, %c0_30], %44 {strides = array<i32>} : memref<1x16xf32, #tpu.memory_space<vmem>>, vector<1x16xf32>,
    } else {
    }
    %c0 = arith.constant 0 : index
    %c0_2 = arith.constant 0 : index
    %5 = vector.load %arg2[%c0, %c0_2] : memref<512x32xf32, #tpu.memory_space<vmem>>, vector<512x32xf32>
    %c0_3 = arith.constant 0 : index
    %c0_4 = arith.constant 0 : index
    %6 = vector.load %arg3[%c0_3, %c0_4] : memref<512x3xf32, #tpu.memory_space<vmem>>, vector<512x3xf32>
    %c0_5 = arith.constant 0 : index
    %c0_6 = arith.constant 0 : index
    %7 = vector.load %arg6[%c0_5, %c0_6] : memref<3x3xf32, #tpu.memory_space<vmem>>, vector<3x3xf32>
    %8 = arith.truncf %6 : vector<512x3xf32> to vector<512x3xbf16>
    %9 = arith.truncf %7 : vector<3x3xf32> to vector<3x3xbf16>
    %cst = arith.constant dense<0.000000e+00> : vector<512x3xf32>
    %10 = tpu.matmul %8, %9, %cst {dimension_numbers = #tpu.dot_dimension_numbers<[1], [0], [0], [1], [0, 0, 1, 1], [], []>} : vector<512x3xbf16>, vector<3x3xbf16>, vector<512x3xf32> -> vector<512x3xf32>
    %c0_7 = arith.constant 0 : index
    %c0_8 = arith.constant 0 : index
    %11 = vector.load %arg7[%c0_7, %c0_8] : memref<1x3xf32, #tpu.memory_space<vmem>>, vector<1x3xf32>
    %12 = vector.broadcast %11 : vector<1x3xf32> to vector<512x3xf32>
    %13 = arith.addf %10, %12 : vector<512x3xf32>
    %cst_9 = arith.constant 0.000000e+00 : f32
    %14 = vector.broadcast %cst_9 : f32 to vector<512x3xf32>
    %15 = arith.maximumf %13, %14 : vector<512x3xf32>
    %c0_10 = arith.constant 0 : index
    %c0_11 = arith.constant 0 : index
    %16 = vector.load %arg8[%c0_10, %c0_11] : memref<3x32xf32, #tpu.memory_space<vmem>>, vector<3x32xf32>
    %17 = arith.truncf %15 : vector<512x3xf32> to vector<512x3xbf16>
    %18 = arith.truncf %16 : vector<3x32xf32> to vector<3x32xbf16>
    %cst_12 = arith.constant dense<0.000000e+00> : vector<512x32xf32>
    %19 = tpu.matmul %17, %18, %cst_12 {dimension_numbers = #tpu.dot_dimension_numbers<[1], [0], [0], [1], [0, 0, 1, 1], [], []>} : vector<512x3xbf16>, vector<3x32xbf16>, vector<512x32xf32> -> vector<512x32xf32>
    %c0_13 = arith.constant 0 : index
    %c0_14 = arith.constant 0 : index
    %20 = vector.load %arg9[%c0_13, %c0_14] : memref<1x32xf32, #tpu.memory_space<vmem>>, vector<1x32xf32>
    %21 = vector.broadcast %20 : vector<1x32xf32> to vector<512x32xf32>
    %22 = arith.addf %19, %21 : vector<512x32xf32>
    %23 = arith.addf %5, %22 : vector<512x32xf32>
    %c0_15 = arith.constant 0 : index
    %c0_16 = arith.constant 0 : index
    %24 = vector.load %arg10[%c0_15, %c0_16] : memref<32x16xf32, #tpu.memory_space<vmem>>, vector<32x16xf32>
    %25 = arith.truncf %23 : vector<512x32xf32> to vector<512x32xbf16>
    %26 = arith.truncf %24 : vector<32x16xf32> to vector<32x16xbf16>
    %cst_17 = arith.constant dense<0.000000e+00> : vector<512x16xf32>
    %27 = tpu.matmul %25, %26, %cst_17 {dimension_numbers = #tpu.dot_dimension_numbers<[1], [0], [0], [1], [0, 0, 1, 1], [], []>} : vector<512x32xbf16>, vector<32x16xbf16>, vector<512x16xf32> -> vector<512x16xf32>
    %c0_18 = arith.constant 0 : index
    %c0_19 = arith.constant 0 : index
    %28 = vector.load %arg11[%c0_18, %c0_19] : memref<1x16xf32, #tpu.memory_space<vmem>>, vector<1x16xf32>
    %29 = vector.broadcast %28 : vector<1x16xf32> to vector<512x16xf32>
    %30 = arith.addf %27, %29 : vector<512x16xf32>
    %c0_i32_20 = arith.constant 0 : i32
    %31 = arith.cmpi eq, %arg0, %c0_i32_20 : i32
    %32 = arith.extui %31 : i1 to i32
    %c0_i32_21 = arith.constant 0 : i32
    %33 = arith.cmpi ne, %32, %c0_i32_21 : i32
    scf.if %33 {
      %c0_25 = arith.constant 0 : index
      %c0_26 = arith.constant 0 : index
      %42 = vector.load %arg16[%c0_25, %c0_26] : memref<1x16xf32, #tpu.memory_space<vmem>>, vector<1x16xf32>
      %cst_27 = arith.constant dense<0xFF800000> : vector<16xf32>
      %43 = vector.multi_reduction <maximumf>, %30, %cst_27 [0] : vector<512x16xf32> to vector<16xf32>
      %44 = vector.shape_cast %43 : vector<16xf32> to vector<1x16xf32>
      %45 = arith.maximumf %42, %44 : vector<1x16xf32>
      %c0_28 = arith.constant 0 : index
      %c0_29 = arith.constant 0 : index
      %46 = vector.load %arg16[%c0_28, %c0_29] : memref<1x16xf32, #tpu.memory_space<vmem>>, vector<1x16xf32>
      tpu.vector_store %arg16[%c0_28, %c0_29], %45 {strides = array<i32>} : memref<1x16xf32, #tpu.memory_space<vmem>>, vector<1x16xf32>,
    } else {
    }
    %c1_i32 = arith.constant 1 : i32
    %34 = arith.cmpi eq, %arg0, %c1_i32 : i32
    %35 = arith.extui %34 : i1 to i32
    %c0_i32_22 = arith.constant 0 : i32
    %36 = arith.cmpi ne, %35, %c0_i32_22 : i32
    scf.if %36 {
      %c0_25 = arith.constant 0 : index
      %c0_26 = arith.constant 0 : index
      %42 = vector.load %arg16[%c0_25, %c0_26] : memref<1x16xf32, #tpu.memory_space<vmem>>, vector<1x16xf32>
      %43 = vector.broadcast %42 : vector<1x16xf32> to vector<512x16xf32>
      %44 = arith.subf %30, %43 : vector<512x16xf32>
      %45 = math.exp %44 : vector<512x16xf32>
      %c0_27 = arith.constant 0 : index
      %c0_28 = arith.constant 0 : index
      %46 = vector.load %arg12[%c0_27, %c0_28] : memref<32x16xf32, #tpu.memory_space<vmem>>, vector<32x16xf32>
      %47 = arith.truncf %5 : vector<512x32xf32> to vector<512x32xbf16>
      %48 = arith.truncf %46 : vector<32x16xf32> to vector<32x16xbf16>
      %cst_29 = arith.constant dense<0.000000e+00> : vector<512x16xf32>
      %49 = tpu.matmul %47, %48, %cst_29 {dimension_numbers = #tpu.dot_dimension_numbers<[1], [0], [0], [1], [0, 0, 1, 1], [], []>} : vector<512x32xbf16>, vector<32x16xbf16>, vector<512x16xf32> -> vector<512x16xf32>
      %c0_30 = arith.constant 0 : index
      %c0_31 = arith.constant 0 : index
      %50 = vector.load %arg13[%c0_30, %c0_31] : memref<1x16xf32, #tpu.memory_space<vmem>>, vector<1x16xf32>
      %51 = vector.broadcast %50 : vector<1x16xf32> to vector<512x16xf32>
      %52 = arith.addf %49, %51 : vector<512x16xf32>
      %53 = arith.mulf %52, %45 : vector<512x16xf32>
      %54 = tpu.concatenate %53, %45 in 1 : vector<512x16xf32>, vector<512x16xf32> -> vector<512x32xf32>
      %55 = tpu.iota {dimensions = array<i32: 1>} : vector<512x256xi32>
      %c0_32 = arith.constant 0 : index
      %c0_33 = arith.constant 0 : index
      %56 = vector.load %arg4[%c0_32, %c0_33] : memref<512x1xi32, #tpu.memory_space<vmem>>, vector<512x1xi32>
      %57 = vector.broadcast %56 : vector<512x1xi32> to vector<512x256xi32>
      %58 = arith.cmpi eq, %55, %57 : vector<512x256xi32>
      %59 = arith.extui %58 : vector<512x256xi1> to vector<512x256xi32>
      %60 = arith.sitofp %59 : vector<512x256xi32> to vector<512x256xf32>
      %61 = arith.truncf %60 : vector<512x256xf32> to vector<512x256xbf16>
      %62 = arith.truncf %54 : vector<512x32xf32> to vector<512x32xbf16>
      %cst_34 = arith.constant dense<0.000000e+00> : vector<256x32xf32>
      %63 = tpu.matmul %61, %62, %cst_34 {dimension_numbers = #tpu.dot_dimension_numbers<[0], [0], [1], [1], [0, 1, 1, 1], [], []>} : vector<512x256xbf16>, vector<512x32xbf16>, vector<256x32xf32> -> vector<256x32xf32>
      %c0_35 = arith.constant 0 : index
      %c0_36 = arith.constant 0 : index
      %64 = vector.load %arg15[%c0_35, %c0_36] : memref<256x32xf32, #tpu.memory_space<vmem>>, vector<256x32xf32>
      %65 = arith.addf %64, %63 : vector<256x32xf32>
      %c0_37 = arith.constant 0 : index
      %c0_38 = arith.constant 0 : index
      %66 = vector.load %arg15[%c0_37, %c0_38] : memref<256x32xf32, #tpu.memory_space<vmem>>, vector<256x32xf32>
      tpu.vector_store %arg15[%c0_37, %c0_38], %65 {strides = array<i32>} : memref<256x32xf32, #tpu.memory_space<vmem>>, vector<256x32xf32>,
    } else {
    }
    %c1_i32_23 = arith.constant 1 : i32
    %37 = arith.cmpi eq, %arg0, %c1_i32_23 : i32
    %c7_i32 = arith.constant 7 : i32
    %38 = arith.cmpi eq, %arg1, %c7_i32 : i32
    %39 = arith.andi %37, %38 : i1
    %40 = arith.extui %39 : i1 to i32
    %c0_i32_24 = arith.constant 0 : i32
    %41 = arith.cmpi ne, %40, %c0_i32_24 : i32
    scf.if %41 {
      %c0_25 = arith.constant 0 : index
      %c0_26 = arith.constant 0 : index
      %42 = vector.load %arg15[%c0_25, %c0_26] : memref<256x32xf32, #tpu.memory_space<vmem>>, vector<256x16xf32>
      %c0_27 = arith.constant 0 : index
      %c16 = arith.constant 16 : index
      %43 = vector.load %arg15[%c0_27, %c16] : memref<256x32xf32, #tpu.memory_space<vmem>>, vector<256x16xf32>
      %cst_28 = arith.constant 1.000000e-30 : f32
      %44 = vector.broadcast %cst_28 : f32 to vector<256x16xf32>
      %45 = arith.maximumf %43, %44 : vector<256x16xf32>
      %46 = tpu.reciprocal %45 {approx = true} : vector<256x16xf32> -> vector<256x16xf32>
      %47 = arith.mulf %42, %46 : vector<256x16xf32>
      %48 = tpu.concatenate %47, %47 in 1 : vector<256x16xf32>, vector<256x16xf32> -> vector<256x32xf32>
      %c0_29 = arith.constant 0 : index
      %c0_30 = arith.constant 0 : index
      %49 = vector.load %arg5[%c0_29, %c0_30] : memref<256x32xf32, #tpu.memory_space<vmem>>, vector<256x32xf32>
      %50 = arith.addf %49, %48 : vector<256x32xf32>
      %c0_31 = arith.constant 0 : index
      %c0_32 = arith.constant 0 : index
      %51 = vector.load %arg14[%c0_31, %c0_32] : memref<256x32xf32, #tpu.memory_space<vmem>>, vector<256x32xf32>
      tpu.vector_store %arg14[%c0_31, %c0_32], %50 {strides = array<i32>} : memref<256x32xf32, #tpu.memory_space<vmem>>, vector<256x32xf32>,
    } else {
    }
    return
  }
  func.func @transform_0(%arg0: i32, %arg1: i32) -> (i32, i32) {
    %c0_i32 = arith.constant 0 : i32
    %c0_i32_0 = arith.constant 0 : i32
    return %arg1, %c0_i32 : i32, i32
  }
  func.func @transform_1(%arg0: i32, %arg1: i32) -> (i32, i32) {
    %c0_i32 = arith.constant 0 : i32
    %c0_i32_0 = arith.constant 0 : i32
    return %arg1, %c0_i32 : i32, i32
  }
  func.func @transform_2(%arg0: i32, %arg1: i32) -> (i32, i32) {
    %c0_i32 = arith.constant 0 : i32
    %c0_i32_0 = arith.constant 0 : i32
    return %arg1, %c0_i32 : i32, i32
  }
  func.func @transform_3(%arg0: i32, %arg1: i32) -> (i32, i32) {
    %c0_i32 = arith.constant 0 : i32
    %c0_i32_0 = arith.constant 0 : i32
    %c0_i32_1 = arith.constant 0 : i32
    return %c0_i32, %c0_i32_0 : i32, i32
  }
  func.func @transform_4(%arg0: i32, %arg1: i32) -> (i32, i32) {
    %c0_i32 = arith.constant 0 : i32
    %c0_i32_0 = arith.constant 0 : i32
    %c0_i32_1 = arith.constant 0 : i32
    return %c0_i32, %c0_i32_0 : i32, i32
  }
  func.func @transform_5(%arg0: i32, %arg1: i32) -> (i32, i32) {
    %c0_i32 = arith.constant 0 : i32
    %c0_i32_0 = arith.constant 0 : i32
    %c0_i32_1 = arith.constant 0 : i32
    return %c0_i32, %c0_i32_0 : i32, i32
  }
  func.func @transform_6(%arg0: i32, %arg1: i32) -> (i32, i32) {
    %c0_i32 = arith.constant 0 : i32
    %c0_i32_0 = arith.constant 0 : i32
    %c0_i32_1 = arith.constant 0 : i32
    return %c0_i32, %c0_i32_0 : i32, i32
  }
  func.func @transform_7(%arg0: i32, %arg1: i32) -> (i32, i32) {
    %c0_i32 = arith.constant 0 : i32
    %c0_i32_0 = arith.constant 0 : i32
    %c0_i32_1 = arith.constant 0 : i32
    return %c0_i32, %c0_i32_0 : i32, i32
  }
  func.func @transform_8(%arg0: i32, %arg1: i32) -> (i32, i32) {
    %c0_i32 = arith.constant 0 : i32
    %c0_i32_0 = arith.constant 0 : i32
    %c0_i32_1 = arith.constant 0 : i32
    return %c0_i32, %c0_i32_0 : i32, i32
  }
  func.func @transform_9(%arg0: i32, %arg1: i32) -> (i32, i32) {
    %c0_i32 = arith.constant 0 : i32
    %c0_i32_0 = arith.constant 0 : i32
    %c0_i32_1 = arith.constant 0 : i32
    return %c0_i32, %c0_i32_0 : i32, i32
  }
  func.func @transform_10(%arg0: i32, %arg1: i32) -> (i32, i32) {
    %c0_i32 = arith.constant 0 : i32
    %c0_i32_0 = arith.constant 0 : i32
    %c0_i32_1 = arith.constant 0 : i32
    return %c0_i32, %c0_i32_0 : i32, i32
  }
  func.func @transform_11(%arg0: i32, %arg1: i32) -> (i32, i32) {
    %c0_i32 = arith.constant 0 : i32
    %c0_i32_0 = arith.constant 0 : i32
    %c0_i32_1 = arith.constant 0 : i32
    return %c0_i32, %c0_i32_0 : i32, i32
  }
  func.func @transform_12(%arg0: i32, %arg1: i32) -> (i32, i32) {
    %c0_i32 = arith.constant 0 : i32
    %c0_i32_0 = arith.constant 0 : i32
    %c0_i32_1 = arith.constant 0 : i32
    return %c0_i32, %c0_i32_0 : i32, i32
  }
}

</mosaic_0001>

<llo_original>
// kernel: tpu_custom_call.1
$region0: #{tpu_custom_call.1}
  #allocation0 [shape = 'u32[]', space=smem, size = 0x4, offset = 0x4, fixed_abs, tag = 'smem constant byte address 0x4 - core index']
  #allocation1 [shape = 'u32[144,128]{1,0:T(1,128)}', space=vmem, size = 0x12000, scoped, tag = 'internal scratch']
  #allocation2 [shape = 'f32[256,32]{1,0:T(8,128)}', space=vmem, size = 0x20000, scoped, tag = 'scratch operand']
  #allocation3 [shape = 'f32[1,16]{1,0:T(1,128)}', space=vmem, size = 0x200, scoped, tag = 'scratch operand']
  %s0 = inlined_call_operand.vmem [shape: f32[4096,32], index: 0, kind: input, shape index: {}]
  %s1 = inlined_call_operand.vmem [shape: f32[4096,3], index: 1, kind: input, shape index: {}]
  %s2 = inlined_call_operand.vmem [shape: s32[4096,1], index: 2, kind: input, shape index: {}]
  %s3 = inlined_call_operand.vmem [shape: f32[256,32], index: 3, kind: input, shape index: {}]
  %s4 = inlined_call_operand.vmem [shape: f32[3,3], index: 4, kind: input, shape index: {}]
  %s5 = inlined_call_operand.vmem [shape: f32[1,3], index: 5, kind: input, shape index: {}]
  %s6 = inlined_call_operand.vmem [shape: f32[3,32], index: 6, kind: input, shape index: {}]
  %s7 = inlined_call_operand.vmem [shape: f32[1,32], index: 7, kind: input, shape index: {}]
  %s8 = inlined_call_operand.vmem [shape: f32[32,16], index: 8, kind: input, shape index: {}]
  %s9 = inlined_call_operand.vmem [shape: f32[1,16], index: 9, kind: input, shape index: {}]
  %s10 = inlined_call_operand.vmem [shape: f32[32,16], index: 10, kind: input, shape index: {}]
  %s11 = inlined_call_operand.vmem [shape: f32[1,16], index: 11, kind: input, shape index: {}]
  %s12 = inlined_call_operand.vmem [shape: f32[256,32], index: 12, kind: output, shape index: {}]
  %s13 = sld [smem:[#allocation0]]
  $region97: #{tpu_custom_call.1} parent=0
    _
  %s15 = ssub.s32 1, %s13
  %s16 = scalar_select 0, %s15, %s13
  loop: start=0, step=1, limit=18
  $region2: #{tpu_custom_call.1} parent=0 // loop_pre_header
    _
  $region3: #{tpu_custom_call.1} parent=0 // loop_header
    %s18 = sphi 0, %s22
    %p19 = scmp.ge.s32.totalorder %s18, 18
    %s25 = sphi 0, %s37
    %s26 = sphi 0, %s33
    %s27 = sphi 0, %s25
    %s28 = sphi 0, %s26
    %s29 = sphi 0, %s27
    %s30 = sphi 0, %s28
    %s40 = sphi 0, %s42
    %s43 = sphi 0, %s40
    %s44 = sphi 0, %s43
    %s60 = sphi 0, %s44
    %s66 = sphi 0, %s68
    %s69 = sphi 0, %s66
    %s70 = sphi 0, %s69
    %s86 = sphi 0, %s70
    %s92 = sphi 0, %s94
    %s95 = sphi 0, %s92
    %s96 = sphi 0, %s95
    %s112 = sphi 0, %s96
    %s116 = sphi 0, %s116
    %s118 = sphi 0, %s116
    %s119 = sphi 0, %s118
    %s133 = sphi 0, %s119
    %s137 = sphi 0, %s137
    %s139 = sphi 0, %s137
    %s140 = sphi 0, %s139
    %s154 = sphi 0, %s140
    %s158 = sphi 0, %s158
    %s160 = sphi 0, %s158
    %s161 = sphi 0, %s160
    %s175 = sphi 0, %s161
    %s179 = sphi 0, %s179
    %s181 = sphi 0, %s179
    %s182 = sphi 0, %s181
    %s196 = sphi 0, %s182
    %s200 = sphi 0, %s200
    %s202 = sphi 0, %s200
    %s203 = sphi 0, %s202
    %s217 = sphi 0, %s203
    %s221 = sphi 0, %s221
    %s223 = sphi 0, %s221
    %s224 = sphi 0, %s223
    %s238 = sphi 0, %s224
    %s242 = sphi 0, %s242
    %s244 = sphi 0, %s242
    %s245 = sphi 0, %s244
    %s259 = sphi 0, %s245
    %s263 = sphi 0, %s263
    %s265 = sphi 0, %s263
    %s266 = sphi 0, %s265
    %s280 = sphi 0, %s266
    %s284 = sphi 0, %s284
    %s286 = sphi 0, %s284
    %s287 = sphi 0, %s286
    %s301 = sphi 0, %s287
    %s305 = sphi 0, %s305
    %s307 = sphi 0, %s305
    %s308 = sphi 0, %s307
    %s322 = sphi 0, %s308
  $region4: #{tpu_custom_call.1} parent=0 // loop_header_branch
    %21 = sbr.rel (%p19) target = $region8
  $region5: #{tpu_custom_call.1} parent=0 // loop_body
    %s23 = ssub.s32 %s18, 1
    %s24 = ssub.s32 %s18, 2
    %s31 = sadd.s32 1, %s26
    %p32 = scmp.ge.s32.totalorder %s31, 8
    %s33 = scalar_select %p32, 0, %s31
    %s34 = sadd.s32 1, %s25
    %s35 = scalar_select %p32, %s34, %s25
    %p36 = scmp.ge.s32.totalorder %s35, 2
    %s37 = scalar_select %p36, 0, %s35
    %s38 = ssub.s32 %s26, %s33
    %p39 = scmp.eq.s32.totalorder %s38, 0
    %s41 = sadd.s32 %s40, 1
    %s42 = scalar_select %p39, %s40, %s41
    %p45 = pneg %p39
    %p46 = scmp.eq.s32.totalorder %s18, 15
    %p47 = por %p45, %p46
    %p48 = scmp.ne.s32.totalorder %s40, %s43
    %p49 = scmp.eq.s32.totalorder %s18, 0
    %p50 = por %p48, %p49
    %p51 = scmp.ne.s32.totalorder %s40, %s43
    %p52 = scmp.eq.s32.totalorder %s23, 15
    %p53 = por %p51, %p52
    %p54 = scmp.ne.s32.totalorder %s43, %s44
    %p55 = scmp.eq.s32.totalorder %s23, 0
    %p56 = por %p54, %p55
    %p57 = scmp.ne.s32.totalorder %s43, %s44
    %p58 = scmp.eq.s32.totalorder %s24, 15
    %p59 = por %p57, %p58
    %p61 = scmp.ne.s32.totalorder %s44, %s60
    %p62 = scmp.eq.s32.totalorder %s24, 0
    %p63 = por %p61, %p62
    %s64 = ssub.s32 %s26, %s33
    %p65 = scmp.eq.s32.totalorder %s64, 0
    %s67 = sadd.s32 %s66, 1
    %s68 = scalar_select %p65, %s66, %s67
    %p71 = pneg %p65
    %p72 = scmp.eq.s32.totalorder %s18, 15
    %p73 = por %p71, %p72
    %p74 = scmp.ne.s32.totalorder %s66, %s69
    %p75 = scmp.eq.s32.totalorder %s18, 0
    %p76 = por %p74, %p75
    %p77 = scmp.ne.s32.totalorder %s66, %s69
    %p78 = scmp.eq.s32.totalorder %s23, 15
    %p79 = por %p77, %p78
    %p80 = scmp.ne.s32.totalorder %s69, %s70
    %p81 = scmp.eq.s32.totalorder %s23, 0
    %p82 = por %p80, %p81
    %p83 = scmp.ne.s32.totalorder %s69, %s70
    %p84 = scmp.eq.s32.totalorder %s24, 15
    %p85 = por %p83, %p84
    %p87 = scmp.ne.s32.totalorder %s70, %s86
    %p88 = scmp.eq.s32.totalorder %s24, 0
    %p89 = por %p87, %p88
    %s90 = ssub.s32 %s26, %s33
    %p91 = scmp.eq.s32.totalorder %s90, 0
    %s93 = sadd.s32 %s92, 1
    %s94 = scalar_select %p91, %s92, %s93
    %p97 = pneg %p91
    %p98 = scmp.eq.s32.totalorder %s18, 15
    %p99 = por %p97, %p98
    %p100 = scmp.ne.s32.totalorder %s92, %s95
    %p101 = scmp.eq.s32.totalorder %s18, 0
    %p102 = por %p100, %p101
    %p103 = scmp.ne.s32.totalorder %s92, %s95
    %p104 = scmp.eq.s32.totalorder %s23, 15
    %p105 = por %p103, %p104
    %p106 = scmp.ne.s32.totalorder %s95, %s96
    %p107 = scmp.eq.s32.totalorder %s23, 0
    %p108 = por %p106, %p107
    %p109 = scmp.ne.s32.totalorder %s95, %s96
    %p110 = scmp.eq.s32.totalorder %s24, 15
    %p111 = por %p109, %p110
    %p113 = scmp.ne.s32.totalorder %s96, %s112
    %p114 = scmp.eq.s32.totalorder %s24, 0
    %p115 = por %p113, %p114
    %s117 = sadd.s32 %s116, 1
    %p120 = scmp.eq.s32.totalorder %s18, 15
    %p121 = scmp.ne.s32.totalorder %s116, %s118
    %p122 = scmp.eq.s32.totalorder %s18, 0
    %p123 = por %p121, %p122
    %p124 = scmp.ne.s32.totalorder %s116, %s118
    %p125 = scmp.eq.s32.totalorder %s23, 15
    %p126 = por %p124, %p125
    %p127 = scmp.ne.s32.totalorder %s118, %s119
    %p128 = scmp.eq.s32.totalorder %s23, 0
    %p129 = por %p127, %p128
    %p130 = scmp.ne.s32.totalorder %s118, %s119
    %p131 = scmp.eq.s32.totalorder %s24, 15
    %p132 = por %p130, %p131
    %p134 = scmp.ne.s32.totalorder %s119, %s133
    %p135 = scmp.eq.s32.totalorder %s24, 0
    %p136 = por %p134, %p135
    %s138 = sadd.s32 %s137, 1
    %p141 = scmp.eq.s32.totalorder %s18, 15
    %p142 = scmp.ne.s32.totalorder %s137, %s139
    %p143 = scmp.eq.s32.totalorder %s18, 0
    %p144 = por %p142, %p143
    %p145 = scmp.ne.s32.totalorder %s137, %s139
    %p146 = scmp.eq.s32.totalorder %s23, 15
    %p147 = por %p145, %p146
    %p148 = scmp.ne.s32.totalorder %s139, %s140
    %p149 = scmp.eq.s32.totalorder %s23, 0
    %p150 = por %p148, %p149
    %p151 = scmp.ne.s32.totalorder %s139, %s140
    %p152 = scmp.eq.s32.totalorder %s24, 15
    %p153 = por %p151, %p152
    %p155 = scmp.ne.s32.totalorder %s140, %s154
    %p156 = scmp.eq.s32.totalorder %s24, 0
    %p157 = por %p155, %p156
    %s159 = sadd.s32 %s158, 1
    %p162 = scmp.eq.s32.totalorder %s18, 15
    %p163 = scmp.ne.s32.totalorder %s158, %s160
    %p164 = scmp.eq.s32.totalorder %s18, 0
    %p165 = por %p163, %p164
    %p166 = scmp.ne.s32.totalorder %s158, %s160
    %p167 = scmp.eq.s32.totalorder %s23, 15
    %p168 = por %p166, %p167
    %p169 = scmp.ne.s32.totalorder %s160, %s161
    %p170 = scmp.eq.s32.totalorder %s23, 0
    %p171 = por %p169, %p170
    %p172 = scmp.ne.s32.totalorder %s160, %s161
    %p173 = scmp.eq.s32.totalorder %s24, 15
    %p174 = por %p172, %p173
    %p176 = scmp.ne.s32.totalorder %s161, %s175
    %p177 = scmp.eq.s32.totalorder %s24, 0
    %p178 = por %p176, %p177
    %s180 = sadd.s32 %s179, 1
    %p183 = scmp.eq.s32.totalorder %s18, 15
    %p184 = scmp.ne.s32.totalorder %s179, %s181
    %p185 = scmp.eq.s32.totalorder %s18, 0
    %p186 = por %p184, %p185
    %p187 = scmp.ne.s32.totalorder %s179, %s181
    %p188 = scmp.eq.s32.totalorder %s23, 15
    %p189 = por %p187, %p188
    %p190 = scmp.ne.s32.totalorder %s181, %s182
    %p191 = scmp.eq.s32.totalorder %s23, 0
    %p192 = por %p190, %p191
    %p193 = scmp.ne.s32.totalorder %s181, %s182
    %p194 = scmp.eq.s32.totalorder %s24, 15
    %p195 = por %p193, %p194
    %p197 = scmp.ne.s32.totalorder %s182, %s196
    %p198 = scmp.eq.s32.totalorder %s24, 0
    %p199 = por %p197, %p198
    %s201 = sadd.s32 %s200, 1
    %p204 = scmp.eq.s32.totalorder %s18, 15
    %p205 = scmp.ne.s32.totalorder %s200, %s202
    %p206 = scmp.eq.s32.totalorder %s18, 0
    %p207 = por %p205, %p206
    %p208 = scmp.ne.s32.totalorder %s200, %s202
    %p209 = scmp.eq.s32.totalorder %s23, 15
    %p210 = por %p208, %p209
    %p211 = scmp.ne.s32.totalorder %s202, %s203
    %p212 = scmp.eq.s32.totalorder %s23, 0
    %p213 = por %p211, %p212
    %p214 = scmp.ne.s32.totalorder %s202, %s203
    %p215 = scmp.eq.s32.totalorder %s24, 15
    %p216 = por %p214, %p215
    %p218 = scmp.ne.s32.totalorder %s203, %s217
    %p219 = scmp.eq.s32.totalorder %s24, 0
    %p220 = por %p218, %p219
    %s222 = sadd.s32 %s221, 1
    %p225 = scmp.eq.s32.totalorder %s18, 15
    %p226 = scmp.ne.s32.totalorder %s221, %s223
    %p227 = scmp.eq.s32.totalorder %s18, 0
    %p228 = por %p226, %p227
    %p229 = scmp.ne.s32.totalorder %s221, %s223
    %p230 = scmp.eq.s32.totalorder %s23, 15
    %p231 = por %p229, %p230
    %p232 = scmp.ne.s32.totalorder %s223, %s224
    %p233 = scmp.eq.s32.totalorder %s23, 0
    %p234 = por %p232, %p233
    %p235 = scmp.ne.s32.totalorder %s223, %s224
    %p236 = scmp.eq.s32.totalorder %s24, 15
    %p237 = por %p235, %p236
    %p239 = scmp.ne.s32.totalorder %s224, %s238
    %p240 = scmp.eq.s32.totalorder %s24, 0
    %p241 = por %p239, %p240
    %s243 = sadd.s32 %s242, 1
    %p246 = scmp.eq.s32.totalorder %s18, 15
    %p247 = scmp.ne.s32.totalorder %s242, %s244
    %p248 = scmp.eq.s32.totalorder %s18, 0
    %p249 = por %p247, %p248
    %p250 = scmp.ne.s32.totalorder %s242, %s244
    %p251 = scmp.eq.s32.totalorder %s23, 15
    %p252 = por %p250, %p251
    %p253 = scmp.ne.s32.totalorder %s244, %s245
    %p254 = scmp.eq.s32.totalorder %s23, 0
    %p255 = por %p253, %p254
    %p256 = scmp.ne.s32.totalorder %s244, %s245
    %p257 = scmp.eq.s32.totalorder %s24, 15
    %p258 = por %p256, %p257
    %p260 = scmp.ne.s32.totalorder %s245, %s259
    %p261 = scmp.eq.s32.totalorder %s24, 0
    %p262 = por %p260, %p261
    %s264 = sadd.s32 %s263, 1
    %p267 = scmp.eq.s32.totalorder %s18, 15
    %p268 = scmp.ne.s32.totalorder %s263, %s265
    %p269 = scmp.eq.s32.totalorder %s18, 0
    %p270 = por %p268, %p269
    %p271 = scmp.ne.s32.totalorder %s263, %s265
    %p272 = scmp.eq.s32.totalorder %s23, 15
    %p273 = por %p271, %p272
    %p274 = scmp.ne.s32.totalorder %s265, %s266
    %p275 = scmp.eq.s32.totalorder %s23, 0
    %p276 = por %p274, %p275
    %p277 = scmp.ne.s32.totalorder %s265, %s266
    %p278 = scmp.eq.s32.totalorder %s24, 15
    %p279 = por %p277, %p278
    %p281 = scmp.ne.s32.totalorder %s266, %s280
    %p282 = scmp.eq.s32.totalorder %s24, 0
    %p283 = por %p281, %p282
    %s285 = sadd.s32 %s284, 1
    %p288 = scmp.eq.s32.totalorder %s18, 15
    %p289 = scmp.ne.s32.totalorder %s284, %s286
    %p290 = scmp.eq.s32.totalorder %s18, 0
    %p291 = por %p289, %p290
    %p292 = scmp.ne.s32.totalorder %s284, %s286
    %p293 = scmp.eq.s32.totalorder %s23, 15
    %p294 = por %p292, %p293
    %p295 = scmp.ne.s32.totalorder %s286, %s287
    %p296 = scmp.eq.s32.totalorder %s23, 0
    %p297 = por %p295, %p296
    %p298 = scmp.ne.s32.totalorder %s286, %s287
    %p299 = scmp.eq.s32.totalorder %s24, 15
    %p300 = por %p298, %p299
    %p302 = scmp.ne.s32.totalorder %s287, %s301
    %p303 = scmp.eq.s32.totalorder %s24, 0
    %p304 = por %p302, %p303
    %s306 = sadd.s32 %s305, 1
    %p309 = scmp.eq.s32.totalorder %s18, 15
    %p310 = scmp.ne.s32.totalorder %s305, %s307
    %p311 = scmp.eq.s32.totalorder %s18, 0
    %p312 = por %p310, %p311
    %p313 = scmp.ne.s32.totalorder %s305, %s307
    %p314 = scmp.eq.s32.totalorder %s23, 15
    %p315 = por %p313, %p314
    %p316 = scmp.ne.s32.totalorder %s307, %s308
    %p317 = scmp.eq.s32.totalorder %s23, 0
    %p318 = por %p316, %p317
    %p319 = scmp.ne.s32.totalorder %s307, %s308
    %p320 = scmp.eq.s32.totalorder %s24, 15
    %p321 = por %p319, %p320
    %p323 = scmp.ne.s32.totalorder %s308, %s322
    %p324 = scmp.eq.s32.totalorder %s24, 0
    %p325 = por %p323, %p324
    %p326 = scmp.le.s32.totalorder 1, %s18
    %p327 = scmp.lt.s32.totalorder %s18, 17
    %p328 = pnand %p326, %p327
    %p329 = pneg %p328
    // Predicated region
    $region9: #{tpu_custom_call.1} parent=5 // pred_check
      _
    $region10: #{tpu_custom_call.1} parent=5 // pred_check_branch
      %331 = sbr.rel (%p328) target = $region12
    $region11: #{tpu_custom_call.1} parent=5 // pred_region
      %s332 = ssub.s32 %s18, 1
      // Predicated region
      $region13: #{tpu_custom_call.1} parent=11 // pred_check
        %p333 = pneg %p129
      $region14: #{tpu_custom_call.1} parent=11 // pred_check_branch
        %335 = sbr.rel (%p333) target = $region16
      $region15: #{tpu_custom_call.1} parent=11 // pred_region
        _
      $region16: #{tpu_custom_call.1} parent=11 // pred_fallthru
        _
      // Predicated region
      $region17: #{tpu_custom_call.1} parent=11 // pred_check
        %p336 = pneg %p150
      $region18: #{tpu_custom_call.1} parent=11 // pred_check_branch
        %338 = sbr.rel (%p336) target = $region20
      $region19: #{tpu_custom_call.1} parent=11 // pred_region
        _
      $region20: #{tpu_custom_call.1} parent=11 // pred_fallthru
        _
      // Predicated region
      $region21: #{tpu_custom_call.1} parent=11 // pred_check
        %p339 = pneg %p171
      $region22: #{tpu_custom_call.1} parent=11 // pred_check_branch
        %341 = sbr.rel (%p339) target = $region24
      $region23: #{tpu_custom_call.1} parent=11 // pred_region
        _
      $region24: #{tpu_custom_call.1} parent=11 // pred_fallthru
        _
      // Predicated region
      $region25: #{tpu_custom_call.1} parent=11 // pred_check
        %p342 = pneg %p192
      $region26: #{tpu_custom_call.1} parent=11 // pred_check_branch
        %344 = sbr.rel (%p342) target = $region28
      $region27: #{tpu_custom_call.1} parent=11 // pred_region
        _
      $region28: #{tpu_custom_call.1} parent=11 // pred_fallthru
        _
      // Predicated region
      $region29: #{tpu_custom_call.1} parent=11 // pred_check
        %p345 = pneg %p213
      $region30: #{tpu_custom_call.1} parent=11 // pred_check_branch
        %347 = sbr.rel (%p345) target = $region32
      $region31: #{tpu_custom_call.1} parent=11 // pred_region
        _
      $region32: #{tpu_custom_call.1} parent=11 // pred_fallthru
        _
      // Predicated region
      $region33: #{tpu_custom_call.1} parent=11 // pred_check
        %p348 = pneg %p234
      $region34: #{tpu_custom_call.1} parent=11 // pred_check_branch
        %350 = sbr.rel (%p348) target = $region36
      $region35: #{tpu_custom_call.1} parent=11 // pred_region
        _
      $region36: #{tpu_custom_call.1} parent=11 // pred_fallthru
        _
      // Predicated region
      $region37: #{tpu_custom_call.1} parent=11 // pred_check
        %p351 = pneg %p255
      $region38: #{tpu_custom_call.1} parent=11 // pred_check_branch
        %353 = sbr.rel (%p351) target = $region40
      $region39: #{tpu_custom_call.1} parent=11 // pred_region
        _
      $region40: #{tpu_custom_call.1} parent=11 // pred_fallthru
        _
      // Predicated region
      $region41: #{tpu_custom_call.1} parent=11 // pred_check
        %p354 = pneg %p276
      $region42: #{tpu_custom_call.1} parent=11 // pred_check_branch
        %356 = sbr.rel (%p354) target = $region44
      $region43: #{tpu_custom_call.1} parent=11 // pred_region
        _
      $region44: #{tpu_custom_call.1} parent=11 // pred_fallthru
        _
      // Predicated region
      $region45: #{tpu_custom_call.1} parent=11 // pred_check
        %p357 = pneg %p297
      $region46: #{tpu_custom_call.1} parent=11 // pred_check_branch
        %359 = sbr.rel (%p357) target = $region48
      $region47: #{tpu_custom_call.1} parent=11 // pred_region
        _
      $region48: #{tpu_custom_call.1} parent=11 // pred_fallthru
        _
    $region12: #{tpu_custom_call.1} parent=5 // pred_fallthru
      _
    %p360 = scmp.lt.s32.totalorder %s18, 16
    // Predicated region
    $region49: #{tpu_custom_call.1} parent=5 // pred_check
      %p361 = pneg %p360
    $region50: #{tpu_custom_call.1} parent=5 // pred_check_branch
      %363 = sbr.rel (%p361) target = $region52
    $region51: #{tpu_custom_call.1} parent=5 // pred_region
      // Predicated region
      $region53: #{tpu_custom_call.1} parent=51 // pred_check
        %p364 = pneg %p50
      $region54: #{tpu_custom_call.1} parent=51 // pred_check_branch
        %366 = sbr.rel (%p364) target = $region56
      $region55: #{tpu_custom_call.1} parent=51 // pred_region
        %s367 = smul.u32 64, %s26
        %p368 = scmp.lt.s32.totalorder %s367, 511
        %s369 = scalar_select %p368, %s367, 511
        %s370 = smul.addr %s369, 8
        %s371 = scalar_lea.vmem %s0, %s370
        %s372 = smul.u32 64, %s26
      $region56: #{tpu_custom_call.1} parent=51 // pred_fallthru
        _
      // Predicated region
      $region57: #{tpu_custom_call.1} parent=51 // pred_check
        %p373 = pneg %p76
      $region58: #{tpu_custom_call.1} parent=51 // pred_check_branch
        %375 = sbr.rel (%p373) target = $region60
      $region59: #{tpu_custom_call.1} parent=51 // pred_region
        %s376 = smul.u32 64, %s26
        %p377 = scmp.lt.s32.totalorder %s376, 511
        %s378 = scalar_select %p377, %s376, 511
        %s379 = smul.addr %s378, 8
        %s380 = scalar_lea.vmem %s1, %s379
        %s381 = smul.u32 64, %s26
      $region60: #{tpu_custom_call.1} parent=51 // pred_fallthru
        _
      // Predicated region
      $region61: #{tpu_custom_call.1} parent=51 // pred_check
        %p382 = pneg %p102
      $region62: #{tpu_custom_call.1} parent=51 // pred_check_branch
        %384 = sbr.rel (%p382) target = $region64
      $region63: #{tpu_custom_call.1} parent=51 // pred_region
        %s385 = smul.u32 64, %s26
        %p386 = scmp.lt.s32.totalorder %s385, 511
        %s387 = scalar_select %p386, %s385, 511
        %s388 = smul.addr %s387, 8
        %s389 = scalar_lea.vmem %s2, %s388
        %s390 = smul.u32 64, %s26
      $region64: #{tpu_custom_call.1} parent=51 // pred_fallthru
        _
    $region52: #{tpu_custom_call.1} parent=5 // pred_fallthru
      _
    %p391 = scmp.le.s32.totalorder 1, %s18
    %p392 = scmp.lt.s32.totalorder %s18, 17
    %p393 = pnand %p391, %p392
    %p394 = pneg %p393
    // Predicated region
    $region65: #{tpu_custom_call.1} parent=5 // pred_check
      _
    $region66: #{tpu_custom_call.1} parent=5 // pred_check_branch
      %396 = sbr.rel (%p393) target = $region68
    $region67: #{tpu_custom_call.1} parent=5 // pred_region
      %s397 = ssub.s32 %s18, 1
      %s398 = smul.u32 64, %s28
      %p399 = scmp.lt.s32.totalorder %s398, 511
      %s400 = scalar_select %p399, %s398, 511
      %s401 = smul.addr %s400, 8
      %s402 = scalar_lea.vmem %s0, %s401
      %p403 = pneg %p56
      %p404 = pneg %p53
      %s405 = smul.u32 64, %s28
      %p406 = scmp.lt.s32.totalorder %s405, 511
      %s407 = scalar_select %p406, %s405, 511
      %s408 = smul.addr %s407, 8
      %s409 = scalar_lea.vmem %s1, %s408
      %p410 = pneg %p82
      %p411 = pneg %p79
      %s412 = smul.u32 64, %s28
      %p413 = scmp.lt.s32.totalorder %s412, 511
      %s414 = scalar_select %p413, %s412, 511
      %s415 = smul.addr %s414, 8
      %s416 = scalar_lea.vmem %s2, %s415
      %p417 = pneg %p108
      %p418 = pneg %p105
      %p419 = pneg %p129
      %p420 = pneg %p126
      %p421 = pneg %p150
      %p422 = pneg %p147
      %p423 = pneg %p171
      %p424 = pneg %p168
      %p425 = pneg %p192
      %p426 = pneg %p189
      %p427 = pneg %p213
      %p428 = pneg %p210
      %p429 = pneg %p234
      %p430 = pneg %p231
      %p431 = pneg %p255
      %p432 = pneg %p252
      %p433 = pneg %p276
      %p434 = pneg %p273
      %p435 = pneg %p297
      %p436 = pneg %p294
      %p437 = pneg %p318
      %p438 = pneg %p315
      %s439 = smul.u32 64, %s28
      %p440 = scmp.lt.s32.totalorder %s439, 511
      %s441 = scalar_select %p440, %s439, 511
      %s442 = smul.addr %s441, 8
      %s443 = scalar_lea.vmem %s0, %s442
      %s444 = smul.u32 64, %s28
      %s445 = smul.u32 64, %s28
      %p446 = scmp.lt.s32.totalorder %s445, 511
      %s447 = scalar_select %p446, %s445, 511
      %s448 = smul.addr %s447, 8
      %s449 = scalar_lea.vmem %s1, %s448
      %s450 = smul.u32 64, %s28
      %s451 = smul.u32 64, %s28
      %p452 = scmp.lt.s32.totalorder %s451, 511
      %s453 = scalar_select %p452, %s451, 511
      %s454 = smul.addr %s453, 8
      %s455 = scalar_lea.vmem %s2, %s454
      %s456 = smul.u32 64, %s28
      %p458 = scmp.eq.s32.totalorder %s27, 0
      %p459 = scmp.eq.s32.totalorder %s28, 0
      %p460 = pnand %p458, %p459
      %p461 = pneg %p460
      // Predicated region
      $region69: #{tpu_custom_call.1} parent=67 // pred_check
        _
      $region70: #{tpu_custom_call.1} parent=67 // pred_check_branch
        %463 = sbr.rel (%p460) target = $region72
      $region71: #{tpu_custom_call.1} parent=67 // pred_region
        %vm464 = vcmask 261120
        %465 = vst.msk [vmem:[#allocation2] sm:$0xff] %vm464, 0.0
        %466 = vst.msk [vmem:[#allocation2 + $0x8] sm:$0xff] %vm464, 0.0
        %467 = vst.msk [vmem:[#allocation2 + $0x10] sm:$0xff] %vm464, 0.0
        %468 = vst.msk [vmem:[#allocation2 + $0x18] sm:$0xff] %vm464, 0.0
        %469 = vst.msk [vmem:[#allocation2 + $0x20] sm:$0xff] %vm464, 0.0
        %470 = vst.msk [vmem:[#allocation2 + $0x28] sm:$0xff] %vm464, 0.0
        %471 = vst.msk [vmem:[#allocation2 + $0x30] sm:$0xff] %vm464, 0.0
        %472 = vst.msk [vmem:[#allocation2 + $0x38] sm:$0xff] %vm464, 0.0
        %473 = vst.msk [vmem:[#allocation2 + $0x40] sm:$0xff] %vm464, 0.0
        %474 = vst.msk [vmem:[#allocation2 + $0x48] sm:$0xff] %vm464, 0.0
        %475 = vst.msk [vmem:[#allocation2 + $0x50] sm:$0xff] %vm464, 0.0
        %476 = vst.msk [vmem:[#allocation2 + $0x58] sm:$0xff] %vm464, 0.0
        %477 = vst.msk [vmem:[#allocation2 + $0x60] sm:$0xff] %vm464, 0.0
        %478 = vst.msk [vmem:[#allocation2 + $0x68] sm:$0xff] %vm464, 0.0
        %479 = vst.msk [vmem:[#allocation2 + $0x70] sm:$0xff] %vm464, 0.0
        %480 = vst.msk [vmem:[#allocation2 + $0x78] sm:$0xff] %vm464, 0.0
        %481 = vst.msk [vmem:[#allocation2 + $0x80] sm:$0xff] %vm464, 0.0
        %482 = vst.msk [vmem:[#allocation2 + $0x88] sm:$0xff] %vm464, 0.0
        %483 = vst.msk [vmem:[#allocation2 + $0x90] sm:$0xff] %vm464, 0.0
        %484 = vst.msk [vmem:[#allocation2 + $0x98] sm:$0xff] %vm464, 0.0
        %485 = vst.msk [vmem:[#allocation2 + $0xa0] sm:$0xff] %vm464, 0.0
        %486 = vst.msk [vmem:[#allocation2 + $0xa8] sm:$0xff] %vm464, 0.0
        %487 = vst.msk [vmem:[#allocation2 + $0xb0] sm:$0xff] %vm464, 0.0
        %488 = vst.msk [vmem:[#allocation2 + $0xb8] sm:$0xff] %vm464, 0.0
        %489 = vst.msk [vmem:[#allocation2 + $0xc0] sm:$0xff] %vm464, 0.0
        %490 = vst.msk [vmem:[#allocation2 + $0xc8] sm:$0xff] %vm464, 0.0
        %491 = vst.msk [vmem:[#allocation2 + $0xd0] sm:$0xff] %vm464, 0.0
        %492 = vst.msk [vmem:[#allocation2 + $0xd8] sm:$0xff] %vm464, 0.0
        %493 = vst.msk [vmem:[#allocation2 + $0xe0] sm:$0xff] %vm464, 0.0
        %494 = vst.msk [vmem:[#allocation2 + $0xe8] sm:$0xff] %vm464, 0.0
        %495 = vst.msk [vmem:[#allocation2 + $0xf0] sm:$0xff] %vm464, 0.0
        %496 = vst.msk [vmem:[#allocation2 + $0xf8] sm:$0xff] %vm464, 0.0
        %vm497 = vcmask 122880
        %498 = vst.msk [vmem:[#allocation3] sm:$0x1] %vm497, -inf
      $region72: #{tpu_custom_call.1} parent=67 // pred_fallthru
        _
      %v499 = vld [vmem:[%s443] sm:$0xff]
      %v500 = vld [vmem:[%s443 + $0x8] sm:$0xff]
      %v501 = vld [vmem:[%s443 + $0x10] sm:$0xff]
      %v502 = vld [vmem:[%s443 + $0x18] sm:$0xff]
      %v503 = vld [vmem:[%s443 + $0x20] sm:$0xff]
      %v504 = vld [vmem:[%s443 + $0x28] sm:$0xff]
      %v505 = vld [vmem:[%s443 + $0x30] sm:$0xff]
      %v506 = vld [vmem:[%s443 + $0x38] sm:$0xff]
      %v507 = vld [vmem:[%s443 + $0x40] sm:$0xff]
      %v508 = vld [vmem:[%s443 + $0x48] sm:$0xff]
      %v509 = vld [vmem:[%s443 + $0x50] sm:$0xff]
      %v510 = vld [vmem:[%s443 + $0x58] sm:$0xff]
      %v511 = vld [vmem:[%s443 + $0x60] sm:$0xff]
      %v512 = vld [vmem:[%s443 + $0x68] sm:$0xff]
      %v513 = vld [vmem:[%s443 + $0x70] sm:$0xff]
      %v514 = vld [vmem:[%s443 + $0x78] sm:$0xff]
      %v515 = vld [vmem:[%s443 + $0x80] sm:$0xff]
      %v516 = vld [vmem:[%s443 + $0x88] sm:$0xff]
      %v517 = vld [vmem:[%s443 + $0x90] sm:$0xff]
      %v518 = vld [vmem:[%s443 + $0x98] sm:$0xff]
      %v519 = vld [vmem:[%s443 + $0xa0] sm:$0xff]
      %v520 = vld [vmem:[%s443 + $0xa8] sm:$0xff]
      %v521 = vld [vmem:[%s443 + $0xb0] sm:$0xff]
      %v522 = vld [vmem:[%s443 + $0xb8] sm:$0xff]
      %v523 = vld [vmem:[%s443 + $0xc0] sm:$0xff]
      %v524 = vld [vmem:[%s443 + $0xc8] sm:$0xff]
      %v525 = vld [vmem:[%s443 + $0xd0] sm:$0xff]
      %v526 = vld [vmem:[%s443 + $0xd8] sm:$0xff]
      %v527 = vld [vmem:[%s443 + $0xe0] sm:$0xff]
      %v528 = vld [vmem:[%s443 + $0xe8] sm:$0xff]
      %v529 = vld [vmem:[%s443 + $0xf0] sm:$0xff]
      %v530 = vld [vmem:[%s443 + $0xf8] sm:$0xff]
      %v531 = vld [vmem:[%s443 + $0x100] sm:$0xff]
      %v532 = vld [vmem:[%s443 + $0x108] sm:$0xff]
      %v533 = vld [vmem:[%s443 + $0x110] sm:$0xff]
      %v534 = vld [vmem:[%s443 + $0x118] sm:$0xff]
      %v535 = vld [vmem:[%s443 + $0x120] sm:$0xff]
      %v536 = vld [vmem:[%s443 + $0x128] sm:$0xff]
      %v537 = vld [vmem:[%s443 + $0x130] sm:$0xff]
      %v538 = vld [vmem:[%s443 + $0x138] sm:$0xff]
      %v539 = vld [vmem:[%s443 + $0x140] sm:$0xff]
      %v540 = vld [vmem:[%s443 + $0x148] sm:$0xff]
      %v541 = vld [vmem:[%s443 + $0x150] sm:$0xff]
      %v542 = vld [vmem:[%s443 + $0x158] sm:$0xff]
      %v543 = vld [vmem:[%s443 + $0x160] sm:$0xff]
      %v544 = vld [vmem:[%s443 + $0x168] sm:$0xff]
      %v545 = vld [vmem:[%s443 + $0x170] sm:$0xff]
      %v546 = vld [vmem:[%s443 + $0x178] sm:$0xff]
      %v547 = vld [vmem:[%s443 + $0x180] sm:$0xff]
      %v548 = vld [vmem:[%s443 + $0x188] sm:$0xff]
      %v549 = vld [vmem:[%s443 + $0x190] sm:$0xff]
      %v550 = vld [vmem:[%s443 + $0x198] sm:$0xff]
      %v551 = vld [vmem:[%s443 + $0x1a0] sm:$0xff]
      %v552 = vld [vmem:[%s443 + $0x1a8] sm:$0xff]
      %v553 = vld [vmem:[%s443 + $0x1b0] sm:$0xff]
      %v554 = vld [vmem:[%s443 + $0x1b8] sm:$0xff]
      %v555 = vld [vmem:[%s443 + $0x1c0] sm:$0xff]
      %v556 = vld [vmem:[%s443 + $0x1c8] sm:$0xff]
      %v557 = vld [vmem:[%s443 + $0x1d0] sm:$0xff]
      %v558 = vld [vmem:[%s443 + $0x1d8] sm:$0xff]
      %v559 = vld [vmem:[%s443 + $0x1e0] sm:$0xff]
      %v560 = vld [vmem:[%s443 + $0x1e8] sm:$0xff]
      %v561 = vld [vmem:[%s443 + $0x1f0] sm:$0xff]
      %v562 = vld [vmem:[%s443 + $0x1f8] sm:$0xff]
      %v563 = vld [vmem:[%s449] sm:$0xff]
      %v564 = vld [vmem:[%s449 + $0x8] sm:$0xff]
      %v565 = vld [vmem:[%s449 + $0x10] sm:$0xff]
      %v566 = vld [vmem:[%s449 + $0x18] sm:$0xff]
      %v567 = vld [vmem:[%s449 + $0x20] sm:$0xff]
      %v568 = vld [vmem:[%s449 + $0x28] sm:$0xff]
      %v569 = vld [vmem:[%s449 + $0x30] sm:$0xff]
      %v570 = vld [vmem:[%s449 + $0x38] sm:$0xff]
      %v571 = vld [vmem:[%s449 + $0x40] sm:$0xff]
      %v572 = vld [vmem:[%s449 + $0x48] sm:$0xff]
      %v573 = vld [vmem:[%s449 + $0x50] sm:$0xff]
      %v574 = vld [vmem:[%s449 + $0x58] sm:$0xff]
      %v575 = vld [vmem:[%s449 + $0x60] sm:$0xff]
      %v576 = vld [vmem:[%s449 + $0x68] sm:$0xff]
      %v577 = vld [vmem:[%s449 + $0x70] sm:$0xff]
      %v578 = vld [vmem:[%s449 + $0x78] sm:$0xff]
      %v579 = vld [vmem:[%s449 + $0x80] sm:$0xff]
      %v580 = vld [vmem:[%s449 + $0x88] sm:$0xff]
      %v581 = vld [vmem:[%s449 + $0x90] sm:$0xff]
      %v582 = vld [vmem:[%s449 + $0x98] sm:$0xff]
      %v583 = vld [vmem:[%s449 + $0xa0] sm:$0xff]
      %v584 = vld [vmem:[%s449 + $0xa8] sm:$0xff]
      %v585 = vld [vmem:[%s449 + $0xb0] sm:$0xff]
      %v586 = vld [vmem:[%s449 + $0xb8] sm:$0xff]
      %v587 = vld [vmem:[%s449 + $0xc0] sm:$0xff]
      %v588 = vld [vmem:[%s449 + $0xc8] sm:$0xff]
      %v589 = vld [vmem:[%s449 + $0xd0] sm:$0xff]
      %v590 = vld [vmem:[%s449 + $0xd8] sm:$0xff]
      %v591 = vld [vmem:[%s449 + $0xe0] sm:$0xff]
      %v592 = vld [vmem:[%s449 + $0xe8] sm:$0xff]
      %v593 = vld [vmem:[%s449 + $0xf0] sm:$0xff]
      %v594 = vld [vmem:[%s449 + $0xf8] sm:$0xff]
      %v595 = vld [vmem:[%s449 + $0x100] sm:$0xff]
      %v596 = vld [vmem:[%s449 + $0x108] sm:$0xff]
      %v597 = vld [vmem:[%s449 + $0x110] sm:$0xff]
      %v598 = vld [vmem:[%s449 + $0x118] sm:$0xff]
      %v599 = vld [vmem:[%s449 + $0x120] sm:$0xff]
      %v600 = vld [vmem:[%s449 + $0x128] sm:$0xff]
      %v601 = vld [vmem:[%s449 + $0x130] sm:$0xff]
      %v602 = vld [vmem:[%s449 + $0x138] sm:$0xff]
      %v603 = vld [vmem:[%s449 + $0x140] sm:$0xff]
      %v604 = vld [vmem:[%s449 + $0x148] sm:$0xff]
      %v605 = vld [vmem:[%s449 + $0x150] sm:$0xff]
      %v606 = vld [vmem:[%s449 + $0x158] sm:$0xff]
      %v607 = vld [vmem:[%s449 + $0x160] sm:$0xff]
      %v608 = vld [vmem:[%s449 + $0x168] sm:$0xff]
      %v609 = vld [vmem:[%s449 + $0x170] sm:$0xff]
      %v610 = vld [vmem:[%s449 + $0x178] sm:$0xff]
      %v611 = vld [vmem:[%s449 + $0x180] sm:$0xff]
      %v612 = vld [vmem:[%s449 + $0x188] sm:$0xff]
      %v613 = vld [vmem:[%s449 + $0x190] sm:$0xff]
      %v614 = vld [vmem:[%s449 + $0x198] sm:$0xff]
      %v615 = vld [vmem:[%s449 + $0x1a0] sm:$0xff]
      %v616 = vld [vmem:[%s449 + $0x1a8] sm:$0xff]
      %v617 = vld [vmem:[%s449 + $0x1b0] sm:$0xff]
      %v618 = vld [vmem:[%s449 + $0x1b8] sm:$0xff]
      %v619 = vld [vmem:[%s449 + $0x1c0] sm:$0xff]
      %v620 = vld [vmem:[%s449 + $0x1c8] sm:$0xff]
      %v621 = vld [vmem:[%s449 + $0x1d0] sm:$0xff]
      %v622 = vld [vmem:[%s449 + $0x1d8] sm:$0xff]
      %v623 = vld [vmem:[%s449 + $0x1e0] sm:$0xff]
      %v624 = vld [vmem:[%s449 + $0x1e8] sm:$0xff]
      %v625 = vld [vmem:[%s449 + $0x1f0] sm:$0xff]
      %v626 = vld [vmem:[%s449 + $0x1f8] sm:$0xff]
      %v627 = vld [vmem:[%s4] sm:$0x7]
      %v628 = vpack.c.bf16 %v564, %v563
      %v629 = vpack.c.bf16 %v566, %v565
      %v630 = vpack.c.bf16 %v568, %v567
      %v631 = vpack.c.bf16 %v570, %v569
      %v632 = vpack.c.bf16 %v572, %v571
      %v633 = vpack.c.bf16 %v574, %v573
      %v634 = vpack.c.bf16 %v576, %v575
      %v635 = vpack.c.bf16 %v578, %v577
      %v636 = vpack.c.bf16 %v580, %v579
      %v637 = vpack.c.bf16 %v582, %v581
      %v638 = vpack.c.bf16 %v584, %v583
      %v639 = vpack.c.bf16 %v586, %v585
      %v640 = vpack.c.bf16 %v588, %v587
      %v641 = vpack.c.bf16 %v590, %v589
      %v642 = vpack.c.bf16 %v592, %v591
      %v643 = vpack.c.bf16 %v594, %v593
      %v644 = vpack.c.bf16 %v596, %v595
      %v645 = vpack.c.bf16 %v598, %v597
      %v646 = vpack.c.bf16 %v600, %v599
      %v647 = vpack.c.bf16 %v602, %v601
      %v648 = vpack.c.bf16 %v604, %v603
      %v649 = vpack.c.bf16 %v606, %v605
      %v650 = vpack.c.bf16 %v608, %v607
      %v651 = vpack.c.bf16 %v610, %v609
      %v652 = vpack.c.bf16 %v612, %v611
      %v653 = vpack.c.bf16 %v614, %v613
      %v654 = vpack.c.bf16 %v616, %v615
      %v655 = vpack.c.bf16 %v618, %v617
      %v656 = vpack.c.bf16 %v620, %v619
      %v657 = vpack.c.bf16 %v622, %v621
      %v658 = vpack.c.bf16 %v624, %v623
      %v659 = vpack.c.bf16 %v626, %v625
      %v660 = vpack.c.bf16 %v627, %v627
      %v661 = vld [vmem:[%s5] sm:$0x1]
      %v663 = vlaneseq
      %v664 = vshrl.u32 %v663, 7
      %v665 = vsub.s32 0, %v664
      %v666 = vrot.slane %v661, %v665
      %vm668 = vcmask 23552
      %v670 = vsel %vm668, %v628, 0
      %v673 = vsel %vm668, %v629, 0
      %v676 = vsel %vm668, %v630, 0
      %v679 = vsel %vm668, %v631, 0
      %v682 = vsel %vm668, %v632, 0
      %v685 = vsel %vm668, %v633, 0
      %v688 = vsel %vm668, %v634, 0
      %v691 = vsel %vm668, %v635, 0
      %v694 = vsel %vm668, %v636, 0
      %v697 = vsel %vm668, %v637, 0
      %v700 = vsel %vm668, %v638, 0
      %v703 = vsel %vm668, %v639, 0
      %v706 = vsel %vm668, %v640, 0
      %v709 = vsel %vm668, %v641, 0
      %v712 = vsel %vm668, %v642, 0
      %v715 = vsel %vm668, %v643, 0
      %v718 = vsel %vm668, %v644, 0
      %v721 = vsel %vm668, %v645, 0
      %v724 = vsel %vm668, %v646, 0
      %v727 = vsel %vm668, %v647, 0
      %v730 = vsel %vm668, %v648, 0
      %v733 = vsel %vm668, %v649, 0
      %v736 = vsel %vm668, %v650, 0
      %v739 = vsel %vm668, %v651, 0
      %v742 = vsel %vm668, %v652, 0
      %v745 = vsel %vm668, %v653, 0
      %v748 = vsel %vm668, %v654, 0
      %v751 = vsel %vm668, %v655, 0
      %v754 = vsel %vm668, %v656, 0
      %v757 = vsel %vm668, %v657, 0
      %v760 = vsel %vm668, %v658, 0
      %v763 = vsel %vm668, %v659, 0
      %vm765 = vcmask 1040384
      %vm766 = vcmask 1041408
      %v767 = vsel %vm765, 4294967295, 65535
      %v768 = vsel %vm766, %v767, 0
      %v770 = vand.u32 %v660, %v768
      %772 = vmatprep.subr.bf16.mxu0 0
      %773 = vmatpush1.bf16.msra.mxu0 %v770
      %774 = vmatprep.subr.bf16.mxu0 0
      %775 = vmatpush1.bf16.msra.mxu0 0
      %776 = vmatprep.subr.bf16.mxu0 0
      %777 = vmatpush1.bf16.msra.mxu0 0
      %778 = vmatprep.subr.bf16.mxu0 0
      %779 = vmatpush1.bf16.msra.mxu0 0
      %780 = vmatprep.subr.bf16.mxu0 0
      %781 = vmatpush1.bf16.msra.mxu0 0
      %782 = vmatprep.subr.bf16.mxu0 0
      %783 = vmatpush1.bf16.msra.mxu0 0
      %784 = vmatprep.subr.bf16.mxu0 0
      %785 = vmatpush1.bf16.msra.mxu0 0
      %786 = vmatprep.subr.bf16.mxu0 0
      %787 = vmatpush1.bf16.msra.mxu0 0
      %788 = vmatprep.subr.bf16.mxu0 0
      %789 = vmatpush1.bf16.msra.mxu0 0
      %790 = vmatprep.subr.bf16.mxu0 0
      %791 = vmatpush1.bf16.msra.mxu0 0
      %792 = vmatprep.subr.bf16.mxu0 0
      %793 = vmatpush1.bf16.msra.mxu0 0
      %794 = vmatprep.subr.bf16.mxu0 0
      %795 = vmatpush1.bf16.msra.mxu0 0
      %796 = vmatprep.subr.bf16.mxu0 0
      %797 = vmatpush1.bf16.msra.mxu0 0
      %798 = vmatprep.subr.bf16.mxu0 0
      %799 = vmatpush1.bf16.msra.mxu0 0
      %800 = vmatprep.subr.bf16.mxu0 0
      %801 = vmatpush1.bf16.msra.mxu0 0
      %802 = vmatprep.subr.bf16.mxu0 0
      %803 = vmatpush1.bf16.msra.mxu0 0
      %804 = vmatprep.mubr.bf16.mxu0 0
      %805 = vmatmul.mubr.bf16.gmra.mrb[0].mxu0 %v670
      %v806 = vpop.f32.mrb[0].mxu0
      %v807 = vadd.f32 %v666, %v806
      %v808 = vpop.f32.mrb[0].mxu0
      %v809 = vpop.f32.mrb[0].mxu0
      %v810 = vadd.f32 %v666, %v809
      %v811 = vpop.f32.mrb[0].mxu0
      %812 = vmatprep.mubr.bf16.mxu0 0
      %813 = vmatmul.mubr.bf16.gmra.mrb[0].mxu0 %v673
      %v814 = vpop.f32.mrb[0].mxu0
      %v815 = vadd.f32 %v666, %v814
      %v816 = vpop.f32.mrb[0].mxu0
      %v817 = vpop.f32.mrb[0].mxu0
      %v818 = vadd.f32 %v666, %v817
      %v819 = vpop.f32.mrb[0].mxu0
      %820 = vmatprep.mubr.bf16.mxu0 0
      %821 = vmatmul.mubr.bf16.gmra.mrb[0].mxu0 %v676
      %v822 = vpop.f32.mrb[0].mxu0
      %v823 = vadd.f32 %v666, %v822
      %v824 = vpop.f32.mrb[0].mxu0
      %v825 = vpop.f32.mrb[0].mxu0
      %v826 = vadd.f32 %v666, %v825
      %v827 = vpop.f32.mrb[0].mxu0
      %828 = vmatprep.mubr.bf16.mxu0 0
      %829 = vmatmul.mubr.bf16.gmra.mrb[0].mxu0 %v679
      %v830 = vpop.f32.mrb[0].mxu0
      %v831 = vadd.f32 %v666, %v830
      %v832 = vpop.f32.mrb[0].mxu0
      %v833 = vpop.f32.mrb[0].mxu0
      %v834 = vadd.f32 %v666, %v833
      %v835 = vpop.f32.mrb[0].mxu0
      %836 = vmatprep.mubr.bf16.mxu0 0
      %837 = vmatmul.mubr.bf16.gmra.mrb[0].mxu0 %v682
      %v838 = vpop.f32.mrb[0].mxu0
      %v839 = vadd.f32 %v666, %v838
      %v840 = vpop.f32.mrb[0].mxu0
      %v841 = vpop.f32.mrb[0].mxu0
      %v842 = vadd.f32 %v666, %v841
      %v843 = vpop.f32.mrb[0].mxu0
      %844 = vmatprep.mubr.bf16.mxu0 0
      %845 = vmatmul.mubr.bf16.gmra.mrb[0].mxu0 %v685
      %v846 = vpop.f32.mrb[0].mxu0
      %v847 = vadd.f32 %v666, %v846
      %v848 = vpop.f32.mrb[0].mxu0
      %v849 = vpop.f32.mrb[0].mxu0
      %v850 = vadd.f32 %v666, %v849
      %v851 = vpop.f32.mrb[0].mxu0
      %852 = vmatprep.mubr.bf16.mxu0 0
      %853 = vmatmul.mubr.bf16.gmra.mrb[0].mxu0 %v688
      %v854 = vpop.f32.mrb[0].mxu0
      %v855 = vadd.f32 %v666, %v854
      %v856 = vpop.f32.mrb[0].mxu0
      %v857 = vpop.f32.mrb[0].mxu0
      %v858 = vadd.f32 %v666, %v857
      %v859 = vpop.f32.mrb[0].mxu0
      %860 = vmatprep.mubr.bf16.mxu0 0
      %861 = vmatmul.mubr.bf16.gmra.mrb[0].mxu0 %v691
      %v862 = vpop.f32.mrb[0].mxu0
      %v863 = vadd.f32 %v666, %v862
      %v864 = vpop.f32.mrb[0].mxu0
      %v865 = vpop.f32.mrb[0].mxu0
      %v866 = vadd.f32 %v666, %v865
      %v867 = vpop.f32.mrb[0].mxu0
      %868 = vmatprep.mubr.bf16.mxu0 0
      %869 = vmatmul.mubr.bf16.gmra.mrb[0].mxu0 %v694
      %v870 = vpop.f32.mrb[0].mxu0
      %v871 = vadd.f32 %v666, %v870
      %v872 = vpop.f32.mrb[0].mxu0
      %v873 = vpop.f32.mrb[0].mxu0
      %v874 = vadd.f32 %v666, %v873
      %v875 = vpop.f32.mrb[0].mxu0
      %876 = vmatprep.mubr.bf16.mxu0 0
      %877 = vmatmul.mubr.bf16.gmra.mrb[0].mxu0 %v697
      %v878 = vpop.f32.mrb[0].mxu0
      %v879 = vadd.f32 %v666, %v878
      %v880 = vpop.f32.mrb[0].mxu0
      %v881 = vpop.f32.mrb[0].mxu0
      %v882 = vadd.f32 %v666, %v881
      %v883 = vpop.f32.mrb[0].mxu0
      %884 = vmatprep.mubr.bf16.mxu0 0
      %885 = vmatmul.mubr.bf16.gmra.mrb[0].mxu0 %v700
      %v886 = vpop.f32.mrb[0].mxu0
      %v887 = vadd.f32 %v666, %v886
      %v888 = vpop.f32.mrb[0].mxu0
      %v889 = vpop.f32.mrb[0].mxu0
      %v890 = vadd.f32 %v666, %v889
      %v891 = vpop.f32.mrb[0].mxu0
      %892 = vmatprep.mubr.bf16.mxu0 0
      %893 = vmatmul.mubr.bf16.gmra.mrb[0].mxu0 %v703
      %v894 = vpop.f32.mrb[0].mxu0
      %v895 = vadd.f32 %v666, %v894
      %v896 = vpop.f32.mrb[0].mxu0
      %v897 = vpop.f32.mrb[0].mxu0
      %v898 = vadd.f32 %v666, %v897
      %v899 = vpop.f32.mrb[0].mxu0
      %900 = vmatprep.mubr.bf16.mxu0 0
      %901 = vmatmul.mubr.bf16.gmra.mrb[0].mxu0 %v706
      %v902 = vpop.f32.mrb[0].mxu0
      %v903 = vadd.f32 %v666, %v902
      %v904 = vpop.f32.mrb[0].mxu0
      %v905 = vpop.f32.mrb[0].mxu0
      %v906 = vadd.f32 %v666, %v905
      %v907 = vpop.f32.mrb[0].mxu0
      %908 = vmatprep.mubr.bf16.mxu0 0
      %909 = vmatmul.mubr.bf16.gmra.mrb[0].mxu0 %v709
      %v910 = vpop.f32.mrb[0].mxu0
      %v911 = vadd.f32 %v666, %v910
      %v912 = vpop.f32.mrb[0].mxu0
      %v913 = vpop.f32.mrb[0].mxu0
      %v914 = vadd.f32 %v666, %v913
      %v915 = vpop.f32.mrb[0].mxu0
      %916 = vmatprep.mubr.bf16.mxu0 0
      %917 = vmatmul.mubr.bf16.gmra.mrb[0].mxu0 %v712
      %v918 = vpop.f32.mrb[0].mxu0
      %v919 = vadd.f32 %v666, %v918
      %v920 = vpop.f32.mrb[0].mxu0
      %v921 = vpop.f32.mrb[0].mxu0
      %v922 = vadd.f32 %v666, %v921
      %v923 = vpop.f32.mrb[0].mxu0
      %924 = vmatprep.mubr.bf16.mxu0 0
      %925 = vmatmul.mubr.bf16.gmra.mrb[0].mxu0 %v715
      %v926 = vpop.f32.mrb[0].mxu0
      %v927 = vadd.f32 %v666, %v926
      %v928 = vpop.f32.mrb[0].mxu0
      %v929 = vpop.f32.mrb[0].mxu0
      %v930 = vadd.f32 %v666, %v929
      %v931 = vpop.f32.mrb[0].mxu0
      %932 = vmatprep.mubr.bf16.mxu0 0
      %933 = vmatmul.mubr.bf16.gmra.mrb[0].mxu0 %v718
      %v934 = vpop.f32.mrb[0].mxu0
      %v935 = vadd.f32 %v666, %v934
      %v936 = vpop.f32.mrb[0].mxu0
      %v937 = vpop.f32.mrb[0].mxu0
      %v938 = vadd.f32 %v666, %v937
      %v939 = vpop.f32.mrb[0].mxu0
      %940 = vmatprep.mubr.bf16.mxu0 0
      %941 = vmatmul.mubr.bf16.gmra.mrb[0].mxu0 %v721
      %v942 = vpop.f32.mrb[0].mxu0
      %v943 = vadd.f32 %v666, %v942
      %v944 = vpop.f32.mrb[0].mxu0
      %v945 = vpop.f32.mrb[0].mxu0
      %v946 = vadd.f32 %v666, %v945
      %v947 = vpop.f32.mrb[0].mxu0
      %948 = vmatprep.mubr.bf16.mxu0 0
      %949 = vmatmul.mubr.bf16.gmra.mrb[0].mxu0 %v724
      %v950 = vpop.f32.mrb[0].mxu0
      %v951 = vadd.f32 %v666, %v950
      %v952 = vpop.f32.mrb[0].mxu0
      %v953 = vpop.f32.mrb[0].mxu0
      %v954 = vadd.f32 %v666, %v953
      %v955 = vpop.f32.mrb[0].mxu0
      %956 = vmatprep.mubr.bf16.mxu0 0
      %957 = vmatmul.mubr.bf16.gmra.mrb[0].mxu0 %v727
      %v958 = vpop.f32.mrb[0].mxu0
      %v959 = vadd.f32 %v666, %v958
      %v960 = vpop.f32.mrb[0].mxu0
      %v961 = vpop.f32.mrb[0].mxu0
      %v962 = vadd.f32 %v666, %v961
      %v963 = vpop.f32.mrb[0].mxu0
      %964 = vmatprep.mubr.bf16.mxu0 0
      %965 = vmatmul.mubr.bf16.gmra.mrb[0].mxu0 %v730
      %v966 = vpop.f32.mrb[0].mxu0
      %v967 = vadd.f32 %v666, %v966
      %v968 = vpop.f32.mrb[0].mxu0
      %v969 = vpop.f32.mrb[0].mxu0
      %v970 = vadd.f32 %v666, %v969
      %v971 = vpop.f32.mrb[0].mxu0
      %972 = vmatprep.mubr.bf16.mxu0 0
      %973 = vmatmul.mubr.bf16.gmra.mrb[0].mxu0 %v733
      %v974 = vpop.f32.mrb[0].mxu0
      %v975 = vadd.f32 %v666, %v974
      %v976 = vpop.f32.mrb[0].mxu0
      %v977 = vpop.f32.mrb[0].mxu0
      %v978 = vadd.f32 %v666, %v977
      %v979 = vpop.f32.mrb[0].mxu0
      %980 = vmatprep.mubr.bf16.mxu0 0
      %981 = vmatmul.mubr.bf16.gmra.mrb[0].mxu0 %v736
      %v982 = vpop.f32.mrb[0].mxu0
      %v983 = vadd.f32 %v666, %v982
      %v984 = vpop.f32.mrb[0].mxu0
      %v985 = vpop.f32.mrb[0].mxu0
      %v986 = vadd.f32 %v666, %v985
      %v987 = vpop.f32.mrb[0].mxu0
      %988 = vmatprep.mubr.bf16.mxu0 0
      %989 = vmatmul.mubr.bf16.gmra.mrb[0].mxu0 %v739
      %v990 = vpop.f32.mrb[0].mxu0
      %v991 = vadd.f32 %v666, %v990
      %v992 = vpop.f32.mrb[0].mxu0
      %v993 = vpop.f32.mrb[0].mxu0
      %v994 = vadd.f32 %v666, %v993
      %v995 = vpop.f32.mrb[0].mxu0
      %996 = vmatprep.mubr.bf16.mxu0 0
      %997 = vmatmul.mubr.bf16.gmra.mrb[0].mxu0 %v742
      %v998 = vpop.f32.mrb[0].mxu0
      %v999 = vadd.f32 %v666, %v998
      %v1000 = vpop.f32.mrb[0].mxu0
      %v1001 = vpop.f32.mrb[0].mxu0
      %v1002 = vadd.f32 %v666, %v1001
      %v1003 = vpop.f32.mrb[0].mxu0
      %1004 = vmatprep.mubr.bf16.mxu0 0
      %1005 = vmatmul.mubr.bf16.gmra.mrb[0].mxu0 %v745
      %v1006 = vpop.f32.mrb[0].mxu0
      %v1007 = vadd.f32 %v666, %v1006
      %v1008 = vpop.f32.mrb[0].mxu0
      %v1009 = vpop.f32.mrb[0].mxu0
      %v1010 = vadd.f32 %v666, %v1009
      %v1011 = vpop.f32.mrb[0].mxu0
      %1012 = vmatprep.mubr.bf16.mxu0 0
      %1013 = vmatmul.mubr.bf16.gmra.mrb[0].mxu0 %v748
      %v1014 = vpop.f32.mrb[0].mxu0
      %v1015 = vadd.f32 %v666, %v1014
      %v1016 = vpop.f32.mrb[0].mxu0
      %v1017 = vpop.f32.mrb[0].mxu0
      %v1018 = vadd.f32 %v666, %v1017
      %v1019 = vpop.f32.mrb[0].mxu0
      %1020 = vmatprep.mubr.bf16.mxu0 0
      %1021 = vmatmul.mubr.bf16.gmra.mrb[0].mxu0 %v751
      %v1022 = vpop.f32.mrb[0].mxu0
      %v1023 = vadd.f32 %v666, %v1022
      %v1024 = vpop.f32.mrb[0].mxu0
      %v1025 = vpop.f32.mrb[0].mxu0
      %v1026 = vadd.f32 %v666, %v1025
      %v1027 = vpop.f32.mrb[0].mxu0
      %1028 = vmatprep.mubr.bf16.mxu0 0
      %1029 = vmatmul.mubr.bf16.gmra.mrb[0].mxu0 %v754
      %v1030 = vpop.f32.mrb[0].mxu0
      %v1031 = vadd.f32 %v666, %v1030
      %v1032 = vpop.f32.mrb[0].mxu0
      %v1033 = vpop.f32.mrb[0].mxu0
      %v1034 = vadd.f32 %v666, %v1033
      %v1035 = vpop.f32.mrb[0].mxu0
      %1036 = vmatprep.mubr.bf16.mxu0 0
      %1037 = vmatmul.mubr.bf16.gmra.mrb[0].mxu0 %v757
      %v1038 = vpop.f32.mrb[0].mxu0
      %v1039 = vadd.f32 %v666, %v1038
      %v1040 = vpop.f32.mrb[0].mxu0
      %v1041 = vpop.f32.mrb[0].mxu0
      %v1042 = vadd.f32 %v666, %v1041
      %v1043 = vpop.f32.mrb[0].mxu0
      %1044 = vmatprep.mubr.bf16.mxu0 0
      %1045 = vmatmul.mubr.bf16.gmra.mrb[0].mxu0 %v760
      %v1046 = vpop.f32.mrb[0].mxu0
      %v1047 = vadd.f32 %v666, %v1046
      %v1048 = vpop.f32.mrb[0].mxu0
      %v1049 = vpop.f32.mrb[0].mxu0
      %v1050 = vadd.f32 %v666, %v1049
      %v1051 = vpop.f32.mrb[0].mxu0
      %1052 = vmatprep.mubr.bf16.mxu0 0
      %1053 = vmatmul.mubr.bf16.gmra.mrb[0].mxu0 %v763
      %v1054 = vpop.f32.mrb[0].mxu0
      %v1055 = vadd.f32 %v666, %v1054
      %v1056 = vpop.f32.mrb[0].mxu0
      %v1057 = vpop.f32.mrb[0].mxu0
      %v1058 = vadd.f32 %v666, %v1057
      %v1059 = vpop.f32.mrb[0].mxu0
      %1060 = vdwg.mxu0
      %v1061 = vmax.f32 %v807, 0.0
      %v1062 = vmax.f32 %v810, 0.0
      %v1063 = vmax.f32 %v815, 0.0
      %v1064 = vmax.f32 %v818, 0.0
      %v1065 = vmax.f32 %v823, 0.0
      %v1066 = vmax.f32 %v826, 0.0
      %v1067 = vmax.f32 %v831, 0.0
      %v1068 = vmax.f32 %v834, 0.0
      %v1069 = vmax.f32 %v839, 0.0
      %v1070 = vmax.f32 %v842, 0.0
      %v1071 = vmax.f32 %v847, 0.0
      %v1072 = vmax.f32 %v850, 0.0
      %v1073 = vmax.f32 %v855, 0.0
      %v1074 = vmax.f32 %v858, 0.0
      %v1075 = vmax.f32 %v863, 0.0
      %v1076 = vmax.f32 %v866, 0.0
      %v1077 = vmax.f32 %v871, 0.0
      %v1078 = vmax.f32 %v874, 0.0
      %v1079 = vmax.f32 %v879, 0.0
      %v1080 = vmax.f32 %v882, 0.0
      %v1081 = vmax.f32 %v887, 0.0
      %v1082 = vmax.f32 %v890, 0.0
      %v1083 = vmax.f32 %v895, 0.0
      %v1084 = vmax.f32 %v898, 0.0
      %v1085 = vmax.f32 %v903, 0.0
      %v1086 = vmax.f32 %v906, 0.0
      %v1087 = vmax.f32 %v911, 0.0
      %v1088 = vmax.f32 %v914, 0.0
      %v1089 = vmax.f32 %v919, 0.0
      %v1090 = vmax.f32 %v922, 0.0
      %v1091 = vmax.f32 %v927, 0.0
      %v1092 = vmax.f32 %v930, 0.0
      %v1093 = vmax.f32 %v935, 0.0
      %v1094 = vmax.f32 %v938, 0.0
      %v1095 = vmax.f32 %v943, 0.0
      %v1096 = vmax.f32 %v946, 0.0
      %v1097 = vmax.f32 %v951, 0.0
      %v1098 = vmax.f32 %v954, 0.0
      %v1099 = vmax.f32 %v959, 0.0
      %v1100 = vmax.f32 %v962, 0.0
      %v1101 = vmax.f32 %v967, 0.0
      %v1102 = vmax.f32 %v970, 0.0
      %v1103 = vmax.f32 %v975, 0.0
      %v1104 = vmax.f32 %v978, 0.0
      %v1105 = vmax.f32 %v983, 0.0
      %v1106 = vmax.f32 %v986, 0.0
      %v1107 = vmax.f32 %v991, 0.0
      %v1108 = vmax.f32 %v994, 0.0
      %v1109 = vmax.f32 %v999, 0.0
      %v1110 = vmax.f32 %v1002, 0.0
      %v1111 = vmax.f32 %v1007, 0.0
      %v1112 = vmax.f32 %v1010, 0.0
      %v1113 = vmax.f32 %v1015, 0.0
      %v1114 = vmax.f32 %v1018, 0.0
      %v1115 = vmax.f32 %v1023, 0.0
      %v1116 = vmax.f32 %v1026, 0.0
      %v1117 = vmax.f32 %v1031, 0.0
      %v1118 = vmax.f32 %v1034, 0.0
      %v1119 = vmax.f32 %v1039, 0.0
      %v1120 = vmax.f32 %v1042, 0.0
      %v1121 = vmax.f32 %v1047, 0.0
      %v1122 = vmax.f32 %v1050, 0.0
      %v1123 = vmax.f32 %v1055, 0.0
      %v1124 = vmax.f32 %v1058, 0.0
      %v1125 = vld [vmem:[%s6] sm:$0x7]
      %v1126 = vpack.c.bf16 %v1062, %v1061
      %v1127 = vpack.c.bf16 %v1064, %v1063
      %v1128 = vpack.c.bf16 %v1066, %v1065
      %v1129 = vpack.c.bf16 %v1068, %v1067
      %v1130 = vpack.c.bf16 %v1070, %v1069
      %v1131 = vpack.c.bf16 %v1072, %v1071
      %v1132 = vpack.c.bf16 %v1074, %v1073
      %v1133 = vpack.c.bf16 %v1076, %v1075
      %v1134 = vpack.c.bf16 %v1078, %v1077
      %v1135 = vpack.c.bf16 %v1080, %v1079
      %v1136 = vpack.c.bf16 %v1082, %v1081
      %v1137 = vpack.c.bf16 %v1084, %v1083
      %v1138 = vpack.c.bf16 %v1086, %v1085
      %v1139 = vpack.c.bf16 %v1088, %v1087
      %v1140 = vpack.c.bf16 %v1090, %v1089
      %v1141 = vpack.c.bf16 %v1092, %v1091
      %v1142 = vpack.c.bf16 %v1094, %v1093
      %v1143 = vpack.c.bf16 %v1096, %v1095
      %v1144 = vpack.c.bf16 %v1098, %v1097
      %v1145 = vpack.c.bf16 %v1100, %v1099
      %v1146 = vpack.c.bf16 %v1102, %v1101
      %v1147 = vpack.c.bf16 %v1104, %v1103
      %v1148 = vpack.c.bf16 %v1106, %v1105
      %v1149 = vpack.c.bf16 %v1108, %v1107
      %v1150 = vpack.c.bf16 %v1110, %v1109
      %v1151 = vpack.c.bf16 %v1112, %v1111
      %v1152 = vpack.c.bf16 %v1114, %v1113
      %v1153 = vpack.c.bf16 %v1116, %v1115
      %v1154 = vpack.c.bf16 %v1118, %v1117
      %v1155 = vpack.c.bf16 %v1120, %v1119
      %v1156 = vpack.c.bf16 %v1122, %v1121
      %v1157 = vpack.c.bf16 %v1124, %v1123
      %v1158 = vpack.c.bf16 %v1125, %v1125
      %v1159 = vld [vmem:[%s7] sm:$0x1]
      %v1161 = vlaneseq
      %v1162 = vshrl.u32 %v1161, 7
      %v1163 = vsub.s32 0, %v1162
      %v1164 = vrot.slane %v1159, %v1163
      %v1167 = vsel %vm668, %v1126, 0
      %v1170 = vsel %vm668, %v1127, 0
      %v1173 = vsel %vm668, %v1128, 0
      %v1176 = vsel %vm668, %v1129, 0
      %v1179 = vsel %vm668, %v1130, 0
      %v1182 = vsel %vm668, %v1131, 0
      %v1185 = vsel %vm668, %v1132, 0
      %v1188 = vsel %vm668, %v1133, 0
      %v1191 = vsel %vm668, %v1134, 0
      %v1194 = vsel %vm668, %v1135, 0
      %v1197 = vsel %vm668, %v1136, 0
      %v1200 = vsel %vm668, %v1137, 0
      %v1203 = vsel %vm668, %v1138, 0
      %v1206 = vsel %vm668, %v1139, 0
      %v1209 = vsel %vm668, %v1140, 0
      %v1212 = vsel %vm668, %v1141, 0
      %v1215 = vsel %vm668, %v1142, 0
      %v1218 = vsel %vm668, %v1143, 0
      %v1221 = vsel %vm668, %v1144, 0
      %v1224 = vsel %vm668, %v1145, 0
      %v1227 = vsel %vm668, %v1146, 0
      %v1230 = vsel %vm668, %v1147, 0
      %v1233 = vsel %vm668, %v1148, 0
      %v1236 = vsel %vm668, %v1149, 0
      %v1239 = vsel %vm668, %v1150, 0
      %v1242 = vsel %vm668, %v1151, 0
      %v1245 = vsel %vm668, %v1152, 0
      %v1248 = vsel %vm668, %v1153, 0
      %v1251 = vsel %vm668, %v1154, 0
      %v1254 = vsel %vm668, %v1155, 0
      %v1257 = vsel %vm668, %v1156, 0
      %v1260 = vsel %vm668, %v1157, 0
      %v1263 = vand.u32 %v1158, %v768
      %1265 = vmatprep.subr.bf16.mxu0 0
      %1266 = vmatpush1.bf16.msra.mxu0 %v1263
      %1267 = vmatprep.subr.bf16.mxu0 0
      %1268 = vmatpush1.bf16.msra.mxu0 0
      %1269 = vmatprep.subr.bf16.mxu0 0
      %1270 = vmatpush1.bf16.msra.mxu0 0
      %1271 = vmatprep.subr.bf16.mxu0 0
      %1272 = vmatpush1.bf16.msra.mxu0 0
      %1273 = vmatprep.subr.bf16.mxu0 0
      %1274 = vmatpush1.bf16.msra.mxu0 0
      %1275 = vmatprep.subr.bf16.mxu0 0
      %1276 = vmatpush1.bf16.msra.mxu0 0
      %1277 = vmatprep.subr.bf16.mxu0 0
      %1278 = vmatpush1.bf16.msra.mxu0 0
      %1279 = vmatprep.subr.bf16.mxu0 0
      %1280 = vmatpush1.bf16.msra.mxu0 0
      %1281 = vmatprep.subr.bf16.mxu0 0
      %1282 = vmatpush1.bf16.msra.mxu0 0
      %1283 = vmatprep.subr.bf16.mxu0 0
      %1284 = vmatpush1.bf16.msra.mxu0 0
      %1285 = vmatprep.subr.bf16.mxu0 0
      %1286 = vmatpush1.bf16.msra.mxu0 0
      %1287 = vmatprep.subr.bf16.mxu0 0
      %1288 = vmatpush1.bf16.msra.mxu0 0
      %1289 = vmatprep.subr.bf16.mxu0 0
      %1290 = vmatpush1.bf16.msra.mxu0 0
      %1291 = vmatprep.subr.bf16.mxu0 0
      %1292 = vmatpush1.bf16.msra.mxu0 0
      %1293 = vmatprep.subr.bf16.mxu0 0
      %1294 = vmatpush1.bf16.msra.mxu0 0
      %1295 = vmatprep.subr.bf16.mxu0 0
      %1296 = vmatpush1.bf16.msra.mxu0 0
      %1297 = vmatprep.mubr.bf16.mxu0 0
      %1298 = vmatmul.mubr.bf16.gmra.mrb[0].mxu0 %v1167
      %v1299 = vpop.f32.mrb[0].mxu0
      %v1300 = vadd.f32 %v1164, %v1299
      %v1301 = vpop.f32.mrb[0].mxu0
      %v1302 = vpop.f32.mrb[0].mxu0
      %v1303 = vadd.f32 %v1164, %v1302
      %v1304 = vpop.f32.mrb[0].mxu0
      %1305 = vmatprep.mubr.bf16.mxu0 0
      %1306 = vmatmul.mubr.bf16.gmra.mrb[0].mxu0 %v1170
      %v1307 = vpop.f32.mrb[0].mxu0
      %v1308 = vadd.f32 %v1164, %v1307
      %v1309 = vpop.f32.mrb[0].mxu0
      %v1310 = vpop.f32.mrb[0].mxu0
      %v1311 = vadd.f32 %v1164, %v1310
      %v1312 = vpop.f32.mrb[0].mxu0
      %1313 = vmatprep.mubr.bf16.mxu0 0
      %1314 = vmatmul.mubr.bf16.gmra.mrb[0].mxu0 %v1173
      %v1315 = vpop.f32.mrb[0].mxu0
      %v1316 = vadd.f32 %v1164, %v1315
      %v1317 = vpop.f32.mrb[0].mxu0
      %v1318 = vpop.f32.mrb[0].mxu0
      %v1319 = vadd.f32 %v1164, %v1318
      %v1320 = vpop.f32.mrb[0].mxu0
      %1321 = vmatprep.mubr.bf16.mxu0 0
      %1322 = vmatmul.mubr.bf16.gmra.mrb[0].mxu0 %v1176
      %v1323 = vpop.f32.mrb[0].mxu0
      %v1324 = vadd.f32 %v1164, %v1323
      %v1325 = vpop.f32.mrb[0].mxu0
      %v1326 = vpop.f32.mrb[0].mxu0
      %v1327 = vadd.f32 %v1164, %v1326
      %v1328 = vpop.f32.mrb[0].mxu0
      %1329 = vmatprep.mubr.bf16.mxu0 0
      %1330 = vmatmul.mubr.bf16.gmra.mrb[0].mxu0 %v1179
      %v1331 = vpop.f32.mrb[0].mxu0
      %v1332 = vadd.f32 %v1164, %v1331
      %v1333 = vpop.f32.mrb[0].mxu0
      %v1334 = vpop.f32.mrb[0].mxu0
      %v1335 = vadd.f32 %v1164, %v1334
      %v1336 = vpop.f32.mrb[0].mxu0
      %1337 = vmatprep.mubr.bf16.mxu0 0
      %1338 = vmatmul.mubr.bf16.gmra.mrb[0].mxu0 %v1182
      %v1339 = vpop.f32.mrb[0].mxu0
      %v1340 = vadd.f32 %v1164, %v1339
      %v1341 = vpop.f32.mrb[0].mxu0
      %v1342 = vpop.f32.mrb[0].mxu0
      %v1343 = vadd.f32 %v1164, %v1342
      %v1344 = vpop.f32.mrb[0].mxu0
      %1345 = vmatprep.mubr.bf16.mxu0 0
      %1346 = vmatmul.mubr.bf16.gmra.mrb[0].mxu0 %v1185
      %v1347 = vpop.f32.mrb[0].mxu0
      %v1348 = vadd.f32 %v1164, %v1347
      %v1349 = vpop.f32.mrb[0].mxu0
      %v1350 = vpop.f32.mrb[0].mxu0
      %v1351 = vadd.f32 %v1164, %v1350
      %v1352 = vpop.f32.mrb[0].mxu0
      %1353 = vmatprep.mubr.bf16.mxu0 0
      %1354 = vmatmul.mubr.bf16.gmra.mrb[0].mxu0 %v1188
      %v1355 = vpop.f32.mrb[0].mxu0
      %v1356 = vadd.f32 %v1164, %v1355
      %v1357 = vpop.f32.mrb[0].mxu0
      %v1358 = vpop.f32.mrb[0].mxu0
      %v1359 = vadd.f32 %v1164, %v1358
      %v1360 = vpop.f32.mrb[0].mxu0
      %1361 = vmatprep.mubr.bf16.mxu0 0
      %1362 = vmatmul.mubr.bf16.gmra.mrb[0].mxu0 %v1191
      %v1363 = vpop.f32.mrb[0].mxu0
      %v1364 = vadd.f32 %v1164, %v1363
      %v1365 = vpop.f32.mrb[0].mxu0
      %v1366 = vpop.f32.mrb[0].mxu0
      %v1367 = vadd.f32 %v1164, %v1366
      %v1368 = vpop.f32.mrb[0].mxu0
      %1369 = vmatprep.mubr.bf16.mxu0 0
      %1370 = vmatmul.mubr.bf16.gmra.mrb[0].mxu0 %v1194
      %v1371 = vpop.f32.mrb[0].mxu0
      %v1372 = vadd.f32 %v1164, %v1371
      %v1373 = vpop.f32.mrb[0].mxu0
      %v1374 = vpop.f32.mrb[0].mxu0
      %v1375 = vadd.f32 %v1164, %v1374
      %v1376 = vpop.f32.mrb[0].mxu0
      %1377 = vmatprep.mubr.bf16.mxu0 0
      %1378 = vmatmul.mubr.bf16.gmra.mrb[0].mxu0 %v1197
      %v1379 = vpop.f32.mrb[0].mxu0
      %v1380 = vadd.f32 %v1164, %v1379
      %v1381 = vpop.f32.mrb[0].mxu0
      %v1382 = vpop.f32.mrb[0].mxu0
      %v1383 = vadd.f32 %v1164, %v1382
      %v1384 = vpop.f32.mrb[0].mxu0
      %1385 = vmatprep.mubr.bf16.mxu0 0
      %1386 = vmatmul.mubr.bf16.gmra.mrb[0].mxu0 %v1200
      %v1387 = vpop.f32.mrb[0].mxu0
      %v1388 = vadd.f32 %v1164, %v1387
      %v1389 = vpop.f32.mrb[0].mxu0
      %v1390 = vpop.f32.mrb[0].mxu0
      %v1391 = vadd.f32 %v1164, %v1390
      %v1392 = vpop.f32.mrb[0].mxu0
      %1393 = vmatprep.mubr.bf16.mxu0 0
      %1394 = vmatmul.mubr.bf16.gmra.mrb[0].mxu0 %v1203
      %v1395 = vpop.f32.mrb[0].mxu0
      %v1396 = vadd.f32 %v1164, %v1395
      %v1397 = vpop.f32.mrb[0].mxu0
      %v1398 = vpop.f32.mrb[0].mxu0
      %v1399 = vadd.f32 %v1164, %v1398
      %v1400 = vpop.f32.mrb[0].mxu0
      %1401 = vmatprep.mubr.bf16.mxu0 0
      %1402 = vmatmul.mubr.bf16.gmra.mrb[0].mxu0 %v1206
      %v1403 = vpop.f32.mrb[0].mxu0
      %v1404 = vadd.f32 %v1164, %v1403
      %v1405 = vpop.f32.mrb[0].mxu0
      %v1406 = vpop.f32.mrb[0].mxu0
      %v1407 = vadd.f32 %v1164, %v1406
      %v1408 = vpop.f32.mrb[0].mxu0
      %1409 = vmatprep.mubr.bf16.mxu0 0
      %1410 = vmatmul.mubr.bf16.gmra.mrb[0].mxu0 %v1209
      %v1411 = vpop.f32.mrb[0].mxu0
      %v1412 = vadd.f32 %v1164, %v1411
      %v1413 = vpop.f32.mrb[0].mxu0
      %v1414 = vpop.f32.mrb[0].mxu0
      %v1415 = vadd.f32 %v1164, %v1414
      %v1416 = vpop.f32.mrb[0].mxu0
      %1417 = vmatprep.mubr.bf16.mxu0 0
      %1418 = vmatmul.mubr.bf16.gmra.mrb[0].mxu0 %v1212
      %v1419 = vpop.f32.mrb[0].mxu0
      %v1420 = vadd.f32 %v1164, %v1419
      %v1421 = vpop.f32.mrb[0].mxu0
      %v1422 = vpop.f32.mrb[0].mxu0
      %v1423 = vadd.f32 %v1164, %v1422
      %v1424 = vpop.f32.mrb[0].mxu0
      %1425 = vmatprep.mubr.bf16.mxu0 0
      %1426 = vmatmul.mubr.bf16.gmra.mrb[0].mxu0 %v1215
      %v1427 = vpop.f32.mrb[0].mxu0
      %v1428 = vadd.f32 %v1164, %v1427
      %v1429 = vpop.f32.mrb[0].mxu0
      %v1430 = vpop.f32.mrb[0].mxu0
      %v1431 = vadd.f32 %v1164, %v1430
      %v1432 = vpop.f32.mrb[0].mxu0
      %1433 = vmatprep.mubr.bf16.mxu0 0
      %1434 = vmatmul.mubr.bf16.gmra.mrb[0].mxu0 %v1218
      %v1435 = vpop.f32.mrb[0].mxu0
      %v1436 = vadd.f32 %v1164, %v1435
      %v1437 = vpop.f32.mrb[0].mxu0
      %v1438 = vpop.f32.mrb[0].mxu0
      %v1439 = vadd.f32 %v1164, %v1438
      %v1440 = vpop.f32.mrb[0].mxu0
      %1441 = vmatprep.mubr.bf16.mxu0 0
      %1442 = vmatmul.mubr.bf16.gmra.mrb[0].mxu0 %v1221
      %v1443 = vpop.f32.mrb[0].mxu0
      %v1444 = vadd.f32 %v1164, %v1443
      %v1445 = vpop.f32.mrb[0].mxu0
      %v1446 = vpop.f32.mrb[0].mxu0
      %v1447 = vadd.f32 %v1164, %v1446
      %v1448 = vpop.f32.mrb[0].mxu0
      %1449 = vmatprep.mubr.bf16.mxu0 0
      %1450 = vmatmul.mubr.bf16.gmra.mrb[0].mxu0 %v1224
      %v1451 = vpop.f32.mrb[0].mxu0
      %v1452 = vadd.f32 %v1164, %v1451
      %v1453 = vpop.f32.mrb[0].mxu0
      %v1454 = vpop.f32.mrb[0].mxu0
      %v1455 = vadd.f32 %v1164, %v1454
      %v1456 = vpop.f32.mrb[0].mxu0
      %1457 = vmatprep.mubr.bf16.mxu0 0
      %1458 = vmatmul.mubr.bf16.gmra.mrb[0].mxu0 %v1227
      %v1459 = vpop.f32.mrb[0].mxu0
      %v1460 = vadd.f32 %v1164, %v1459
      %v1461 = vpop.f32.mrb[0].mxu0
      %v1462 = vpop.f32.mrb[0].mxu0
      %v1463 = vadd.f32 %v1164, %v1462
      %v1464 = vpop.f32.mrb[0].mxu0
      %1465 = vmatprep.mubr.bf16.mxu0 0
      %1466 = vmatmul.mubr.bf16.gmra.mrb[0].mxu0 %v1230
      %v1467 = vpop.f32.mrb[0].mxu0
      %v1468 = vadd.f32 %v1164, %v1467
      %v1469 = vpop.f32.mrb[0].mxu0
      %v1470 = vpop.f32.mrb[0].mxu0
      %v1471 = vadd.f32 %v1164, %v1470
      %v1472 = vpop.f32.mrb[0].mxu0
      %1473 = vmatprep.mubr.bf16.mxu0 0
      %1474 = vmatmul.mubr.bf16.gmra.mrb[0].mxu0 %v1233
      %v1475 = vpop.f32.mrb[0].mxu0
      %v1476 = vadd.f32 %v1164, %v1475
      %v1477 = vpop.f32.mrb[0].mxu0
      %v1478 = vpop.f32.mrb[0].mxu0
      %v1479 = vadd.f32 %v1164, %v1478
      %v1480 = vpop.f32.mrb[0].mxu0
      %1481 = vmatprep.mubr.bf16.mxu0 0
      %1482 = vmatmul.mubr.bf16.gmra.mrb[0].mxu0 %v1236
      %v1483 = vpop.f32.mrb[0].mxu0
      %v1484 = vadd.f32 %v1164, %v1483
      %v1485 = vpop.f32.mrb[0].mxu0
      %v1486 = vpop.f32.mrb[0].mxu0
      %v1487 = vadd.f32 %v1164, %v1486
      %v1488 = vpop.f32.mrb[0].mxu0
      %1489 = vmatprep.mubr.bf16.mxu0 0
      %1490 = vmatmul.mubr.bf16.gmra.mrb[0].mxu0 %v1239
      %v1491 = vpop.f32.mrb[0].mxu0
      %v1492 = vadd.f32 %v1164, %v1491
      %v1493 = vpop.f32.mrb[0].mxu0
      %v1494 = vpop.f32.mrb[0].mxu0
      %v1495 = vadd.f32 %v1164, %v1494
      %v1496 = vpop.f32.mrb[0].mxu0
      %1497 = vmatprep.mubr.bf16.mxu0 0
      %1498 = vmatmul.mubr.bf16.gmra.mrb[0].mxu0 %v1242
      %v1499 = vpop.f32.mrb[0].mxu0
      %v1500 = vadd.f32 %v1164, %v1499
      %v1501 = vpop.f32.mrb[0].mxu0
      %v1502 = vpop.f32.mrb[0].mxu0
      %v1503 = vadd.f32 %v1164, %v1502
      %v1504 = vpop.f32.mrb[0].mxu0
      %1505 = vmatprep.mubr.bf16.mxu0 0
      %1506 = vmatmul.mubr.bf16.gmra.mrb[0].mxu0 %v1245
      %v1507 = vpop.f32.mrb[0].mxu0
      %v1508 = vadd.f32 %v1164, %v1507
      %v1509 = vpop.f32.mrb[0].mxu0
      %v1510 = vpop.f32.mrb[0].mxu0
      %v1511 = vadd.f32 %v1164, %v1510
      %v1512 = vpop.f32.mrb[0].mxu0
      %1513 = vmatprep.mubr.bf16.mxu0 0
      %1514 = vmatmul.mubr.bf16.gmra.mrb[0].mxu0 %v1248
      %v1515 = vpop.f32.mrb[0].mxu0
      %v1516 = vadd.f32 %v1164, %v1515
      %v1517 = vpop.f32.mrb[0].mxu0
      %v1518 = vpop.f32.mrb[0].mxu0
      %v1519 = vadd.f32 %v1164, %v1518
      %v1520 = vpop.f32.mrb[0].mxu0
      %1521 = vmatprep.mubr.bf16.mxu0 0
      %1522 = vmatmul.mubr.bf16.gmra.mrb[0].mxu0 %v1251
      %v1523 = vpop.f32.mrb[0].mxu0
      %v1524 = vadd.f32 %v1164, %v1523
      %v1525 = vpop.f32.mrb[0].mxu0
      %v1526 = vpop.f32.mrb[0].mxu0
      %v1527 = vadd.f32 %v1164, %v1526
      %v1528 = vpop.f32.mrb[0].mxu0
      %1529 = vmatprep.mubr.bf16.mxu0 0
      %1530 = vmatmul.mubr.bf16.gmra.mrb[0].mxu0 %v1254
      %v1531 = vpop.f32.mrb[0].mxu0
      %v1532 = vadd.f32 %v1164, %v1531
      %v1533 = vpop.f32.mrb[0].mxu0
      %v1534 = vpop.f32.mrb[0].mxu0
      %v1535 = vadd.f32 %v1164, %v1534
      %v1536 = vpop.f32.mrb[0].mxu0
      %1537 = vmatprep.mubr.bf16.mxu0 0
      %1538 = vmatmul.mubr.bf16.gmra.mrb[0].mxu0 %v1257
      %v1539 = vpop.f32.mrb[0].mxu0
      %v1540 = vadd.f32 %v1164, %v1539
      %v1541 = vpop.f32.mrb[0].mxu0
      %v1542 = vpop.f32.mrb[0].mxu0
      %v1543 = vadd.f32 %v1164, %v1542
      %v1544 = vpop.f32.mrb[0].mxu0
      %1545 = vmatprep.mubr.bf16.mxu0 0
      %1546 = vmatmul.mubr.bf16.gmra.mrb[0].mxu0 %v1260
      %v1547 = vpop.f32.mrb[0].mxu0
      %v1548 = vadd.f32 %v1164, %v1547
      %v1549 = vpop.f32.mrb[0].mxu0
      %v1550 = vpop.f32.mrb[0].mxu0
      %v1551 = vadd.f32 %v1164, %v1550
      %v1552 = vpop.f32.mrb[0].mxu0
      %1553 = vdwg.mxu0
      %v1554 = vadd.f32 %v499, %v1300
      %v1555 = vadd.f32 %v500, %v1303
      %v1556 = vadd.f32 %v501, %v1308
      %v1557 = vadd.f32 %v502, %v1311
      %v1558 = vadd.f32 %v503, %v1316
      %v1559 = vadd.f32 %v504, %v1319
      %v1560 = vadd.f32 %v505, %v1324
      %v1561 = vadd.f32 %v506, %v1327
      %v1562 = vadd.f32 %v507, %v1332
      %v1563 = vadd.f32 %v508, %v1335
      %v1564 = vadd.f32 %v509, %v1340
      %v1565 = vadd.f32 %v510, %v1343
      %v1566 = vadd.f32 %v511, %v1348
      %v1567 = vadd.f32 %v512, %v1351
      %v1568 = vadd.f32 %v513, %v1356
      %v1569 = vadd.f32 %v514, %v1359
      %v1570 = vadd.f32 %v515, %v1364
      %v1571 = vadd.f32 %v516, %v1367
      %v1572 = vadd.f32 %v517, %v1372
      %v1573 = vadd.f32 %v518, %v1375
      %v1574 = vadd.f32 %v519, %v1380
      %v1575 = vadd.f32 %v520, %v1383
      %v1576 = vadd.f32 %v521, %v1388
      %v1577 = vadd.f32 %v522, %v1391
      %v1578 = vadd.f32 %v523, %v1396
      %v1579 = vadd.f32 %v524, %v1399
      %v1580 = vadd.f32 %v525, %v1404
      %v1581 = vadd.f32 %v526, %v1407
      %v1582 = vadd.f32 %v527, %v1412
      %v1583 = vadd.f32 %v528, %v1415
      %v1584 = vadd.f32 %v529, %v1420
      %v1585 = vadd.f32 %v530, %v1423
      %v1586 = vadd.f32 %v531, %v1428
      %v1587 = vadd.f32 %v532, %v1431
      %v1588 = vadd.f32 %v533, %v1436
      %v1589 = vadd.f32 %v534, %v1439
      %v1590 = vadd.f32 %v535, %v1444
      %v1591 = vadd.f32 %v536, %v1447
      %v1592 = vadd.f32 %v537, %v1452
      %v1593 = vadd.f32 %v538, %v1455
      %v1594 = vadd.f32 %v539, %v1460
      %v1595 = vadd.f32 %v540, %v1463
      %v1596 = vadd.f32 %v541, %v1468
      %v1597 = vadd.f32 %v542, %v1471
      %v1598 = vadd.f32 %v543, %v1476
      %v1599 = vadd.f32 %v544, %v1479
      %v1600 = vadd.f32 %v545, %v1484
      %v1601 = vadd.f32 %v546, %v1487
      %v1602 = vadd.f32 %v547, %v1492
      %v1603 = vadd.f32 %v548, %v1495
      %v1604 = vadd.f32 %v549, %v1500
      %v1605 = vadd.f32 %v550, %v1503
      %v1606 = vadd.f32 %v551, %v1508
      %v1607 = vadd.f32 %v552, %v1511
      %v1608 = vadd.f32 %v553, %v1516
      %v1609 = vadd.f32 %v554, %v1519
      %v1610 = vadd.f32 %v555, %v1524
      %v1611 = vadd.f32 %v556, %v1527
      %v1612 = vadd.f32 %v557, %v1532
      %v1613 = vadd.f32 %v558, %v1535
      %v1614 = vadd.f32 %v559, %v1540
      %v1615 = vadd.f32 %v560, %v1543
      %v1616 = vadd.f32 %v561, %v1548
      %v1617 = vadd.f32 %v562, %v1551
      %v1618 = vld [vmem:[%s8] sm:$0xff]
      %v1619 = vld [vmem:[%s8 + $0x8] sm:$0xff]
      %v1620 = vld [vmem:[%s8 + $0x10] sm:$0xff]
      %v1621 = vld [vmem:[%s8 + $0x18] sm:$0xff]
      %v1622 = vpack.c.bf16 %v1555, %v1554
      %v1623 = vpack.c.bf16 %v1557, %v1556
      %v1624 = vpack.c.bf16 %v1559, %v1558
      %v1625 = vpack.c.bf16 %v1561, %v1560
      %v1626 = vpack.c.bf16 %v1563, %v1562
      %v1627 = vpack.c.bf16 %v1565, %v1564
      %v1628 = vpack.c.bf16 %v1567, %v1566
      %v1629 = vpack.c.bf16 %v1569, %v1568
      %v1630 = vpack.c.bf16 %v1571, %v1570
      %v1631 = vpack.c.bf16 %v1573, %v1572
      %v1632 = vpack.c.bf16 %v1575, %v1574
      %v1633 = vpack.c.bf16 %v1577, %v1576
      %v1634 = vpack.c.bf16 %v1579, %v1578
      %v1635 = vpack.c.bf16 %v1581, %v1580
      %v1636 = vpack.c.bf16 %v1583, %v1582
      %v1637 = vpack.c.bf16 %v1585, %v1584
      %v1638 = vpack.c.bf16 %v1587, %v1586
      %v1639 = vpack.c.bf16 %v1589, %v1588
      %v1640 = vpack.c.bf16 %v1591, %v1590
      %v1641 = vpack.c.bf16 %v1593, %v1592
      %v1642 = vpack.c.bf16 %v1595, %v1594
      %v1643 = vpack.c.bf16 %v1597, %v1596
      %v1644 = vpack.c.bf16 %v1599, %v1598
      %v1645 = vpack.c.bf16 %v1601, %v1600
      %v1646 = vpack.c.bf16 %v1603, %v1602
      %v1647 = vpack.c.bf16 %v1605, %v1604
      %v1648 = vpack.c.bf16 %v1607, %v1606
      %v1649 = vpack.c.bf16 %v1609, %v1608
      %v1650 = vpack.c.bf16 %v1611, %v1610
      %v1651 = vpack.c.bf16 %v1613, %v1612
      %v1652 = vpack.c.bf16 %v1615, %v1614
      %v1653 = vpack.c.bf16 %v1617, %v1616
      %v1654 = vpack.c.bf16 %v1619, %v1618
      %v1655 = vpack.c.bf16 %v1621, %v1620
      %v1656 = vld [vmem:[%s9] sm:$0x1]
      %v1658 = vlaneseq
      %v1659 = vshrl.u32 %v1658, 7
      %v1660 = vsub.s32 0, %v1659
      %v1661 = vrot.slane %v1656, %v1660
      %vm1663 = vcmask 261120
      %v1665 = vsel %vm1663, %v1622, 0
      %v1668 = vsel %vm1663, %v1623, 0
      %v1671 = vsel %vm1663, %v1624, 0
      %v1674 = vsel %vm1663, %v1625, 0
      %v1677 = vsel %vm1663, %v1626, 0
      %v1680 = vsel %vm1663, %v1627, 0
      %v1683 = vsel %vm1663, %v1628, 0
      %v1686 = vsel %vm1663, %v1629, 0
      %v1689 = vsel %vm1663, %v1630, 0
      %v1692 = vsel %vm1663, %v1631, 0
      %v1695 = vsel %vm1663, %v1632, 0
      %v1698 = vsel %vm1663, %v1633, 0
      %v1701 = vsel %vm1663, %v1634, 0
      %v1704 = vsel %vm1663, %v1635, 0
      %v1707 = vsel %vm1663, %v1636, 0
      %v1710 = vsel %vm1663, %v1637, 0
      %v1713 = vsel %vm1663, %v1638, 0
      %v1716 = vsel %vm1663, %v1639, 0
      %v1719 = vsel %vm1663, %v1640, 0
      %v1722 = vsel %vm1663, %v1641, 0
      %v1725 = vsel %vm1663, %v1642, 0
      %v1728 = vsel %vm1663, %v1643, 0
      %v1731 = vsel %vm1663, %v1644, 0
      %v1734 = vsel %vm1663, %v1645, 0
      %v1737 = vsel %vm1663, %v1646, 0
      %v1740 = vsel %vm1663, %v1647, 0
      %v1743 = vsel %vm1663, %v1648, 0
      %v1746 = vsel %vm1663, %v1649, 0
      %v1749 = vsel %vm1663, %v1650, 0
      %v1752 = vsel %vm1663, %v1651, 0
      %v1755 = vsel %vm1663, %v1652, 0
      %v1758 = vsel %vm1663, %v1653, 0
      %1760 = vmatprep.subr.bf16.mxu0 0
      %1761 = vmatpush1.bf16.msra.mxu0 %v1654
      %1762 = vmatprep.subr.bf16.mxu0 0
      %1763 = vmatpush1.bf16.msra.mxu0 %v1655
      %1764 = vmatprep.subr.bf16.mxu0 0
      %1765 = vmatpush1.bf16.msra.mxu0 0
      %1766 = vmatprep.subr.bf16.mxu0 0
      %1767 = vmatpush1.bf16.msra.mxu0 0
      %1768 = vmatprep.subr.bf16.mxu0 0
      %1769 = vmatpush1.bf16.msra.mxu0 0
      %1770 = vmatprep.subr.bf16.mxu0 0
      %1771 = vmatpush1.bf16.msra.mxu0 0
      %1772 = vmatprep.subr.bf16.mxu0 0
      %1773 = vmatpush1.bf16.msra.mxu0 0
      %1774 = vmatprep.subr.bf16.mxu0 0
      %1775 = vmatpush1.bf16.msra.mxu0 0
      %1776 = vmatprep.subr.bf16.mxu0 0
      %1777 = vmatpush1.bf16.msra.mxu0 0
      %1778 = vmatprep.subr.bf16.mxu0 0
      %1779 = vmatpush1.bf16.msra.mxu0 0
      %1780 = vmatprep.subr.bf16.mxu0 0
      %1781 = vmatpush1.bf16.msra.mxu0 0
      %1782 = vmatprep.subr.bf16.mxu0 0
      %1783 = vmatpush1.bf16.msra.mxu0 0
      %1784 = vmatprep.subr.bf16.mxu0 0
      %1785 = vmatpush1.bf16.msra.mxu0 0
      %1786 = vmatprep.subr.bf16.mxu0 0
      %1787 = vmatpush1.bf16.msra.mxu0 0
      %1788 = vmatprep.subr.bf16.mxu0 0
      %1789 = vmatpush1.bf16.msra.mxu0 0
      %1790 = vmatprep.subr.bf16.mxu0 0
      %1791 = vmatpush1.bf16.msra.mxu0 0
      %1792 = vmatprep.mubr.bf16.mxu0 0
      %1793 = vmatmul.mubr.bf16.gmra.mrb[0].mxu0 %v1665
      %v1794 = vpop.f32.mrb[0].mxu0
      %v1795 = vadd.f32 %v1661, %v1794
      %v1796 = vpop.f32.mrb[0].mxu0
      %v1797 = vpop.f32.mrb[0].mxu0
      %v1798 = vadd.f32 %v1661, %v1797
      %v1799 = vpop.f32.mrb[0].mxu0
      %1800 = vmatprep.mubr.bf16.mxu0 0
      %1801 = vmatmul.mubr.bf16.gmra.mrb[0].mxu0 %v1668
      %v1802 = vpop.f32.mrb[0].mxu0
      %v1803 = vadd.f32 %v1661, %v1802
      %v1804 = vpop.f32.mrb[0].mxu0
      %v1805 = vpop.f32.mrb[0].mxu0
      %v1806 = vadd.f32 %v1661, %v1805
      %v1807 = vpop.f32.mrb[0].mxu0
      %1808 = vmatprep.mubr.bf16.mxu0 0
      %1809 = vmatmul.mubr.bf16.gmra.mrb[0].mxu0 %v1671
      %v1810 = vpop.f32.mrb[0].mxu0
      %v1811 = vadd.f32 %v1661, %v1810
      %v1812 = vpop.f32.mrb[0].mxu0
      %v1813 = vpop.f32.mrb[0].mxu0
      %v1814 = vadd.f32 %v1661, %v1813
      %v1815 = vpop.f32.mrb[0].mxu0
      %1816 = vmatprep.mubr.bf16.mxu0 0
      %1817 = vmatmul.mubr.bf16.gmra.mrb[0].mxu0 %v1674
      %v1818 = vpop.f32.mrb[0].mxu0
      %v1819 = vadd.f32 %v1661, %v1818
      %v1820 = vpop.f32.mrb[0].mxu0
      %v1821 = vpop.f32.mrb[0].mxu0
      %v1822 = vadd.f32 %v1661, %v1821
      %v1823 = vpop.f32.mrb[0].mxu0
      %1824 = vmatprep.mubr.bf16.mxu0 0
      %1825 = vmatmul.mubr.bf16.gmra.mrb[0].mxu0 %v1677
      %v1826 = vpop.f32.mrb[0].mxu0
      %v1827 = vadd.f32 %v1661, %v1826
      %v1828 = vpop.f32.mrb[0].mxu0
      %v1829 = vpop.f32.mrb[0].mxu0
      %v1830 = vadd.f32 %v1661, %v1829
      %v1831 = vpop.f32.mrb[0].mxu0
      %1832 = vmatprep.mubr.bf16.mxu0 0
      %1833 = vmatmul.mubr.bf16.gmra.mrb[0].mxu0 %v1680
      %v1834 = vpop.f32.mrb[0].mxu0
      %v1835 = vadd.f32 %v1661, %v1834
      %v1836 = vpop.f32.mrb[0].mxu0
      %v1837 = vpop.f32.mrb[0].mxu0
      %v1838 = vadd.f32 %v1661, %v1837
      %v1839 = vpop.f32.mrb[0].mxu0
      %1840 = vmatprep.mubr.bf16.mxu0 0
      %1841 = vmatmul.mubr.bf16.gmra.mrb[0].mxu0 %v1683
      %v1842 = vpop.f32.mrb[0].mxu0
      %v1843 = vadd.f32 %v1661, %v1842
      %v1844 = vpop.f32.mrb[0].mxu0
      %v1845 = vpop.f32.mrb[0].mxu0
      %v1846 = vadd.f32 %v1661, %v1845
      %v1847 = vpop.f32.mrb[0].mxu0
      %1848 = vmatprep.mubr.bf16.mxu0 0
      %1849 = vmatmul.mubr.bf16.gmra.mrb[0].mxu0 %v1686
      %v1850 = vpop.f32.mrb[0].mxu0
      %v1851 = vadd.f32 %v1661, %v1850
      %v1852 = vpop.f32.mrb[0].mxu0
      %v1853 = vpop.f32.mrb[0].mxu0
      %v1854 = vadd.f32 %v1661, %v1853
      %v1855 = vpop.f32.mrb[0].mxu0
      %1856 = vmatprep.mubr.bf16.mxu0 0
      %1857 = vmatmul.mubr.bf16.gmra.mrb[0].mxu0 %v1689
      %v1858 = vpop.f32.mrb[0].mxu0
      %v1859 = vadd.f32 %v1661, %v1858
      %v1860 = vpop.f32.mrb[0].mxu0
      %v1861 = vpop.f32.mrb[0].mxu0
      %v1862 = vadd.f32 %v1661, %v1861
      %v1863 = vpop.f32.mrb[0].mxu0
      %1864 = vmatprep.mubr.bf16.mxu0 0
      %1865 = vmatmul.mubr.bf16.gmra.mrb[0].mxu0 %v1692
      %v1866 = vpop.f32.mrb[0].mxu0
      %v1867 = vadd.f32 %v1661, %v1866
      %v1868 = vpop.f32.mrb[0].mxu0
      %v1869 = vpop.f32.mrb[0].mxu0
      %v1870 = vadd.f32 %v1661, %v1869
      %v1871 = vpop.f32.mrb[0].mxu0
      %1872 = vmatprep.mubr.bf16.mxu0 0
      %1873 = vmatmul.mubr.bf16.gmra.mrb[0].mxu0 %v1695
      %v1874 = vpop.f32.mrb[0].mxu0
      %v1875 = vadd.f32 %v1661, %v1874
      %v1876 = vpop.f32.mrb[0].mxu0
      %v1877 = vpop.f32.mrb[0].mxu0
      %v1878 = vadd.f32 %v1661, %v1877
      %v1879 = vpop.f32.mrb[0].mxu0
      %1880 = vmatprep.mubr.bf16.mxu0 0
      %1881 = vmatmul.mubr.bf16.gmra.mrb[0].mxu0 %v1698
      %v1882 = vpop.f32.mrb[0].mxu0
      %v1883 = vadd.f32 %v1661, %v1882
      %v1884 = vpop.f32.mrb[0].mxu0
      %v1885 = vpop.f32.mrb[0].mxu0
      %v1886 = vadd.f32 %v1661, %v1885
      %v1887 = vpop.f32.mrb[0].mxu0
      %1888 = vmatprep.mubr.bf16.mxu0 0
      %1889 = vmatmul.mubr.bf16.gmra.mrb[0].mxu0 %v1701
      %v1890 = vpop.f32.mrb[0].mxu0
      %v1891 = vadd.f32 %v1661, %v1890
      %v1892 = vpop.f32.mrb[0].mxu0
      %v1893 = vpop.f32.mrb[0].mxu0
      %v1894 = vadd.f32 %v1661, %v1893
      %v1895 = vpop.f32.mrb[0].mxu0
      %1896 = vmatprep.mubr.bf16.mxu0 0
      %1897 = vmatmul.mubr.bf16.gmra.mrb[0].mxu0 %v1704
      %v1898 = vpop.f32.mrb[0].mxu0
      %v1899 = vadd.f32 %v1661, %v1898
      %v1900 = vpop.f32.mrb[0].mxu0
      %v1901 = vpop.f32.mrb[0].mxu0
      %v1902 = vadd.f32 %v1661, %v1901
      %v1903 = vpop.f32.mrb[0].mxu0
      %1904 = vmatprep.mubr.bf16.mxu0 0
      %1905 = vmatmul.mubr.bf16.gmra.mrb[0].mxu0 %v1707
      %v1906 = vpop.f32.mrb[0].mxu0
      %v1907 = vadd.f32 %v1661, %v1906
      %v1908 = vpop.f32.mrb[0].mxu0
      %v1909 = vpop.f32.mrb[0].mxu0
      %v1910 = vadd.f32 %v1661, %v1909
      %v1911 = vpop.f32.mrb[0].mxu0
      %1912 = vmatprep.mubr.bf16.mxu0 0
      %1913 = vmatmul.mubr.bf16.gmra.mrb[0].mxu0 %v1710
      %v1914 = vpop.f32.mrb[0].mxu0
      %v1915 = vadd.f32 %v1661, %v1914
      %v1916 = vpop.f32.mrb[0].mxu0
      %v1917 = vpop.f32.mrb[0].mxu0
      %v1918 = vadd.f32 %v1661, %v1917
      %v1919 = vpop.f32.mrb[0].mxu0
      %1920 = vmatprep.mubr.bf16.mxu0 0
      %1921 = vmatmul.mubr.bf16.gmra.mrb[0].mxu0 %v1713
      %v1922 = vpop.f32.mrb[0].mxu0
      %v1923 = vadd.f32 %v1661, %v1922
      %v1924 = vpop.f32.mrb[0].mxu0
      %v1925 = vpop.f32.mrb[0].mxu0
      %v1926 = vadd.f32 %v1661, %v1925
      %v1927 = vpop.f32.mrb[0].mxu0
      %1928 = vmatprep.mubr.bf16.mxu0 0
      %1929 = vmatmul.mubr.bf16.gmra.mrb[0].mxu0 %v1716
      %v1930 = vpop.f32.mrb[0].mxu0
      %v1931 = vadd.f32 %v1661, %v1930
      %v1932 = vpop.f32.mrb[0].mxu0
      %v1933 = vpop.f32.mrb[0].mxu0
      %v1934 = vadd.f32 %v1661, %v1933
      %v1935 = vpop.f32.mrb[0].mxu0
      %1936 = vmatprep.mubr.bf16.mxu0 0
      %1937 = vmatmul.mubr.bf16.gmra.mrb[0].mxu0 %v1719
      %v1938 = vpop.f32.mrb[0].mxu0
      %v1939 = vadd.f32 %v1661, %v1938
      %v1940 = vpop.f32.mrb[0].mxu0
      %v1941 = vpop.f32.mrb[0].mxu0
      %v1942 = vadd.f32 %v1661, %v1941
      %v1943 = vpop.f32.mrb[0].mxu0
      %1944 = vmatprep.mubr.bf16.mxu0 0
      %1945 = vmatmul.mubr.bf16.gmra.mrb[0].mxu0 %v1722
      %v1946 = vpop.f32.mrb[0].mxu0
      %v1947 = vadd.f32 %v1661, %v1946
      %v1948 = vpop.f32.mrb[0].mxu0
      %v1949 = vpop.f32.mrb[0].mxu0
      %v1950 = vadd.f32 %v1661, %v1949
      %v1951 = vpop.f32.mrb[0].mxu0
      %1952 = vmatprep.mubr.bf16.mxu0 0
      %1953 = vmatmul.mubr.bf16.gmra.mrb[0].mxu0 %v1725
      %v1954 = vpop.f32.mrb[0].mxu0
      %v1955 = vadd.f32 %v1661, %v1954
      %v1956 = vpop.f32.mrb[0].mxu0
      %v1957 = vpop.f32.mrb[0].mxu0
      %v1958 = vadd.f32 %v1661, %v1957
      %v1959 = vpop.f32.mrb[0].mxu0
      %1960 = vmatprep.mubr.bf16.mxu0 0
      %1961 = vmatmul.mubr.bf16.gmra.mrb[0].mxu0 %v1728
      %v1962 = vpop.f32.mrb[0].mxu0
      %v1963 = vadd.f32 %v1661, %v1962
      %v1964 = vpop.f32.mrb[0].mxu0
      %v1965 = vpop.f32.mrb[0].mxu0
      %v1966 = vadd.f32 %v1661, %v1965
      %v1967 = vpop.f32.mrb[0].mxu0
      %1968 = vmatprep.mubr.bf16.mxu0 0
      %1969 = vmatmul.mubr.bf16.gmra.mrb[0].mxu0 %v1731
      %v1970 = vpop.f32.mrb[0].mxu0
      %v1971 = vadd.f32 %v1661, %v1970
      %v1972 = vpop.f32.mrb[0].mxu0
      %v1973 = vpop.f32.mrb[0].mxu0
      %v1974 = vadd.f32 %v1661, %v1973
      %v1975 = vpop.f32.mrb[0].mxu0
      %1976 = vmatprep.mubr.bf16.mxu0 0
      %1977 = vmatmul.mubr.bf16.gmra.mrb[0].mxu0 %v1734
      %v1978 = vpop.f32.mrb[0].mxu0
      %v1979 = vadd.f32 %v1661, %v1978
      %v1980 = vpop.f32.mrb[0].mxu0
      %v1981 = vpop.f32.mrb[0].mxu0
      %v1982 = vadd.f32 %v1661, %v1981
      %v1983 = vpop.f32.mrb[0].mxu0
      %1984 = vmatprep.mubr.bf16.mxu0 0
      %1985 = vmatmul.mubr.bf16.gmra.mrb[0].mxu0 %v1737
      %v1986 = vpop.f32.mrb[0].mxu0
      %v1987 = vadd.f32 %v1661, %v1986
      %v1988 = vpop.f32.mrb[0].mxu0
      %v1989 = vpop.f32.mrb[0].mxu0
      %v1990 = vadd.f32 %v1661, %v1989
      %v1991 = vpop.f32.mrb[0].mxu0
      %1992 = vmatprep.mubr.bf16.mxu0 0
      %1993 = vmatmul.mubr.bf16.gmra.mrb[0].mxu0 %v1740
      %v1994 = vpop.f32.mrb[0].mxu0
      %v1995 = vadd.f32 %v1661, %v1994
      %v1996 = vpop.f32.mrb[0].mxu0
      %v1997 = vpop.f32.mrb[0].mxu0
      %v1998 = vadd.f32 %v1661, %v1997
      %v1999 = vpop.f32.mrb[0].mxu0
      %2000 = vmatprep.mubr.bf16.mxu0 0
      %2001 = vmatmul.mubr.bf16.gmra.mrb[0].mxu0 %v1743
      %v2002 = vpop.f32.mrb[0].mxu0
      %v2003 = vadd.f32 %v1661, %v2002
      %v2004 = vpop.f32.mrb[0].mxu0
      %v2005 = vpop.f32.mrb[0].mxu0
      %v2006 = vadd.f32 %v1661, %v2005
      %v2007 = vpop.f32.mrb[0].mxu0
      %2008 = vmatprep.mubr.bf16.mxu0 0
      %2009 = vmatmul.mubr.bf16.gmra.mrb[0].mxu0 %v1746
      %v2010 = vpop.f32.mrb[0].mxu0
      %v2011 = vadd.f32 %v1661, %v2010
      %v2012 = vpop.f32.mrb[0].mxu0
      %v2013 = vpop.f32.mrb[0].mxu0
      %v2014 = vadd.f32 %v1661, %v2013
      %v2015 = vpop.f32.mrb[0].mxu0
      %2016 = vmatprep.mubr.bf16.mxu0 0
      %2017 = vmatmul.mubr.bf16.gmra.mrb[0].mxu0 %v1749
      %v2018 = vpop.f32.mrb[0].mxu0
      %v2019 = vadd.f32 %v1661, %v2018
      %v2020 = vpop.f32.mrb[0].mxu0
      %v2021 = vpop.f32.mrb[0].mxu0
      %v2022 = vadd.f32 %v1661, %v2021
      %v2023 = vpop.f32.mrb[0].mxu0
      %2024 = vmatprep.mubr.bf16.mxu0 0
      %2025 = vmatmul.mubr.bf16.gmra.mrb[0].mxu0 %v1752
      %v2026 = vpop.f32.mrb[0].mxu0
      %v2027 = vadd.f32 %v1661, %v2026
      %v2028 = vpop.f32.mrb[0].mxu0
      %v2029 = vpop.f32.mrb[0].mxu0
      %v2030 = vadd.f32 %v1661, %v2029
      %v2031 = vpop.f32.mrb[0].mxu0
      %2032 = vmatprep.mubr.bf16.mxu0 0
      %2033 = vmatmul.mubr.bf16.gmra.mrb[0].mxu0 %v1755
      %v2034 = vpop.f32.mrb[0].mxu0
      %v2035 = vadd.f32 %v1661, %v2034
      %v2036 = vpop.f32.mrb[0].mxu0
      %v2037 = vpop.f32.mrb[0].mxu0
      %v2038 = vadd.f32 %v1661, %v2037
      %v2039 = vpop.f32.mrb[0].mxu0
      %2040 = vmatprep.mubr.bf16.mxu0 0
      %2041 = vmatmul.mubr.bf16.gmra.mrb[0].mxu0 %v1758
      %v2042 = vpop.f32.mrb[0].mxu0
      %v2043 = vadd.f32 %v1661, %v2042
      %v2044 = vpop.f32.mrb[0].mxu0
      %v2045 = vpop.f32.mrb[0].mxu0
      %v2046 = vadd.f32 %v1661, %v2045
      %v2047 = vpop.f32.mrb[0].mxu0
      %2048 = vdwg.mxu0
      // Predicated region
      $region73: #{tpu_custom_call.1} parent=67 // pred_check
        %p2049 = pneg %p458
      $region74: #{tpu_custom_call.1} parent=67 // pred_check_branch
        %2051 = sbr.rel (%p2049) target = $region76
      $region75: #{tpu_custom_call.1} parent=67 // pred_region
        %v2052 = vld [vmem:[#allocation3] sm:$0x1]
        %vm2053 = vcmask 130048
        %v2054 = vsel %vm2053, %v1795, -inf
        %v2055 = vsel %vm2053, %v1798, -inf
        %v2056 = vsel %vm2053, %v1803, -inf
        %v2057 = vsel %vm2053, %v1806, -inf
        %v2058 = vsel %vm2053, %v1811, -inf
        %v2059 = vmax.f32 %v2054, %v2058
        %v2060 = vsel %vm2053, %v1814, -inf
        %v2061 = vmax.f32 %v2055, %v2060
        %v2062 = vsel %vm2053, %v1819, -inf
        %v2063 = vmax.f32 %v2056, %v2062
        %v2064 = vsel %vm2053, %v1822, -inf
        %v2065 = vmax.f32 %v2057, %v2064
        %v2066 = vsel %vm2053, %v1827, -inf
        %v2067 = vmax.f32 %v2059, %v2066
        %v2068 = vsel %vm2053, %v1830, -inf
        %v2069 = vmax.f32 %v2061, %v2068
        %v2070 = vsel %vm2053, %v1835, -inf
        %v2071 = vmax.f32 %v2063, %v2070
        %v2072 = vsel %vm2053, %v1838, -inf
        %v2073 = vmax.f32 %v2065, %v2072
        %v2074 = vsel %vm2053, %v1843, -inf
        %v2075 = vmax.f32 %v2067, %v2074
        %v2076 = vsel %vm2053, %v1846, -inf
        %v2077 = vmax.f32 %v2069, %v2076
        %v2078 = vsel %vm2053, %v1851, -inf
        %v2079 = vmax.f32 %v2071, %v2078
        %v2080 = vsel %vm2053, %v1854, -inf
        %v2081 = vmax.f32 %v2073, %v2080
        %v2082 = vsel %vm2053, %v1859, -inf
        %v2083 = vmax.f32 %v2075, %v2082
        %v2084 = vsel %vm2053, %v1862, -inf
        %v2085 = vmax.f32 %v2077, %v2084
        %v2086 = vsel %vm2053, %v1867, -inf
        %v2087 = vmax.f32 %v2079, %v2086
        %v2088 = vsel %vm2053, %v1870, -inf
        %v2089 = vmax.f32 %v2081, %v2088
        %v2090 = vsel %vm2053, %v1875, -inf
        %v2091 = vmax.f32 %v2083, %v2090
        %v2092 = vsel %vm2053, %v1878, -inf
        %v2093 = vmax.f32 %v2085, %v2092
        %v2094 = vsel %vm2053, %v1883, -inf
        %v2095 = vmax.f32 %v2087, %v2094
        %v2096 = vsel %vm2053, %v1886, -inf
        %v2097 = vmax.f32 %v2089, %v2096
        %v2098 = vsel %vm2053, %v1891, -inf
        %v2099 = vmax.f32 %v2091, %v2098
        %v2100 = vsel %vm2053, %v1894, -inf
        %v2101 = vmax.f32 %v2093, %v2100
        %v2102 = vsel %vm2053, %v1899, -inf
        %v2103 = vmax.f32 %v2095, %v2102
        %v2104 = vsel %vm2053, %v1902, -inf
        %v2105 = vmax.f32 %v2097, %v2104
        %v2106 = vsel %vm2053, %v1907, -inf
        %v2107 = vmax.f32 %v2099, %v2106
        %v2108 = vsel %vm2053, %v1910, -inf
        %v2109 = vmax.f32 %v2101, %v2108
        %v2110 = vsel %vm2053, %v1915, -inf
        %v2111 = vmax.f32 %v2103, %v2110
        %v2112 = vsel %vm2053, %v1918, -inf
        %v2113 = vmax.f32 %v2105, %v2112
        %v2114 = vsel %vm2053, %v1923, -inf
        %v2115 = vmax.f32 %v2107, %v2114
        %v2116 = vsel %vm2053, %v1926, -inf
        %v2117 = vmax.f32 %v2109, %v2116
        %v2118 = vsel %vm2053, %v1931, -inf
        %v2119 = vmax.f32 %v2111, %v2118
        %v2120 = vsel %vm2053, %v1934, -inf
        %v2121 = vmax.f32 %v2113, %v2120
        %v2122 = vsel %vm2053, %v1939, -inf
        %v2123 = vmax.f32 %v2115, %v2122
        %v2124 = vsel %vm2053, %v1942, -inf
        %v2125 = vmax.f32 %v2117, %v2124
        %v2126 = vsel %vm2053, %v1947, -inf
        %v2127 = vmax.f32 %v2119, %v2126
        %v2128 = vsel %vm2053, %v1950, -inf
        %v2129 = vmax.f32 %v2121, %v2128
        %v2130 = vsel %vm2053, %v1955, -inf
        %v2131 = vmax.f32 %v2123, %v2130
        %v2132 = vsel %vm2053, %v1958, -inf
        %v2133 = vmax.f32 %v2125, %v2132
        %v2134 = vsel %vm2053, %v1963, -inf
        %v2135 = vmax.f32 %v2127, %v2134
        %v2136 = vsel %vm2053, %v1966, -inf
        %v2137 = vmax.f32 %v2129, %v2136
        %v2138 = vsel %vm2053, %v1971, -inf
        %v2139 = vmax.f32 %v2131, %v2138
        %v2140 = vsel %vm2053, %v1974, -inf
        %v2141 = vmax.f32 %v2133, %v2140
        %v2142 = vsel %vm2053, %v1979, -inf
        %v2143 = vmax.f32 %v2135, %v2142
        %v2144 = vsel %vm2053, %v1982, -inf
        %v2145 = vmax.f32 %v2137, %v2144
        %v2146 = vsel %vm2053, %v1987, -inf
        %v2147 = vmax.f32 %v2139, %v2146
        %v2148 = vsel %vm2053, %v1990, -inf
        %v2149 = vmax.f32 %v2141, %v2148
        %v2150 = vsel %vm2053, %v1995, -inf
        %v2151 = vmax.f32 %v2143, %v2150
        %v2152 = vsel %vm2053, %v1998, -inf
        %v2153 = vmax.f32 %v2145, %v2152
        %v2154 = vsel %vm2053, %v2003, -inf
        %v2155 = vmax.f32 %v2147, %v2154
        %v2156 = vsel %vm2053, %v2006, -inf
        %v2157 = vmax.f32 %v2149, %v2156
        %v2158 = vsel %vm2053, %v2011, -inf
        %v2159 = vmax.f32 %v2151, %v2158
        %v2160 = vsel %vm2053, %v2014, -inf
        %v2161 = vmax.f32 %v2153, %v2160
        %v2162 = vsel %vm2053, %v2019, -inf
        %v2163 = vmax.f32 %v2155, %v2162
        %v2164 = vsel %vm2053, %v2022, -inf
        %v2165 = vmax.f32 %v2157, %v2164
        %v2166 = vsel %vm2053, %v2027, -inf
        %v2167 = vmax.f32 %v2159, %v2166
        %v2168 = vsel %vm2053, %v2030, -inf
        %v2169 = vmax.f32 %v2161, %v2168
        %v2170 = vsel %vm2053, %v2035, -inf
        %v2171 = vmax.f32 %v2163, %v2170
        %v2172 = vsel %vm2053, %v2038, -inf
        %v2173 = vmax.f32 %v2165, %v2172
        %v2174 = vsel %vm2053, %v2043, -inf
        %v2175 = vmax.f32 %v2167, %v2174
        %v2176 = vsel %vm2053, %v2046, -inf
        %v2177 = vmax.f32 %v2169, %v2176
        %v2178 = vmax.f32 %v2171, %v2173
        %v2179 = vmax.f32 %v2175, %v2177
        %v2180 = vmax.f32 %v2178, %v2179
        %v2181 = vrot.slane %v2180, 4
        %v2182 = vmax.f32 %v2180, %v2181
        %v2183 = vrot.slane %v2182, 2
        %v2184 = vmax.f32 %v2182, %v2183
        %v2185 = vrot.slane %v2184, 1
        %v2186 = vmax.f32 %v2184, %v2185
        %v2187 = vmax.f32 %v2052, %v2186
        %vm2188 = vcmask 122880
        %2189 = vst.msk [vmem:[#allocation3] sm:$0x1] %vm2188, %v2187
      $region76: #{tpu_custom_call.1} parent=67 // pred_fallthru
        _
      %p2190 = scmp.eq.s32.totalorder %s27, 1
      // Predicated region
      $region77: #{tpu_custom_call.1} parent=67 // pred_check
        %p2191 = pneg %p2190
      $region78: #{tpu_custom_call.1} parent=67 // pred_check_branch
        %2193 = sbr.rel (%p2191) target = $region80
      $region79: #{tpu_custom_call.1} parent=67 // pred_region
        %v2194 = vld [vmem:[#allocation3] sm:$0x1]
        %v2196 = vlaneseq
        %v2197 = vshrl.u32 %v2196, 7
        %v2198 = vsub.s32 0, %v2197
        %v2199 = vrot.slane %v2194, %v2198
        %v2201 = vsub.f32 %v1795, %v2199
        %v2202 = vsub.f32 %v1798, %v2199
        %v2203 = vsub.f32 %v1803, %v2199
        %v2204 = vsub.f32 %v1806, %v2199
        %v2205 = vsub.f32 %v1811, %v2199
        %v2206 = vsub.f32 %v1814, %v2199
        %v2207 = vsub.f32 %v1819, %v2199
        %v2208 = vsub.f32 %v1822, %v2199
        %v2209 = vsub.f32 %v1827, %v2199
        %v2210 = vsub.f32 %v1830, %v2199
        %v2211 = vsub.f32 %v1835, %v2199
        %v2212 = vsub.f32 %v1838, %v2199
        %v2213 = vsub.f32 %v1843, %v2199
        %v2214 = vsub.f32 %v1846, %v2199
        %v2215 = vsub.f32 %v1851, %v2199
        %v2216 = vsub.f32 %v1854, %v2199
        %v2217 = vsub.f32 %v1859, %v2199
        %v2218 = vsub.f32 %v1862, %v2199
        %v2219 = vsub.f32 %v1867, %v2199
        %v2220 = vsub.f32 %v1870, %v2199
        %v2221 = vsub.f32 %v1875, %v2199
        %v2222 = vsub.f32 %v1878, %v2199
        %v2223 = vsub.f32 %v1883, %v2199
        %v2224 = vsub.f32 %v1886, %v2199
        %v2225 = vsub.f32 %v1891, %v2199
        %v2226 = vsub.f32 %v1894, %v2199
        %v2227 = vsub.f32 %v1899, %v2199
        %v2228 = vsub.f32 %v1902, %v2199
        %v2229 = vsub.f32 %v1907, %v2199
        %v2230 = vsub.f32 %v1910, %v2199
        %v2231 = vsub.f32 %v1915, %v2199
        %v2232 = vsub.f32 %v1918, %v2199
        %v2233 = vsub.f32 %v1923, %v2199
        %v2234 = vsub.f32 %v1926, %v2199
        %v2235 = vsub.f32 %v1931, %v2199
        %v2236 = vsub.f32 %v1934, %v2199
        %v2237 = vsub.f32 %v1939, %v2199
        %v2238 = vsub.f32 %v1942, %v2199
        %v2239 = vsub.f32 %v1947, %v2199
        %v2240 = vsub.f32 %v1950, %v2199
        %v2241 = vsub.f32 %v1955, %v2199
        %v2242 = vsub.f32 %v1958, %v2199
        %v2243 = vsub.f32 %v1963, %v2199
        %v2244 = vsub.f32 %v1966, %v2199
        %v2245 = vsub.f32 %v1971, %v2199
        %v2246 = vsub.f32 %v1974, %v2199
        %v2247 = vsub.f32 %v1979, %v2199
        %v2248 = vsub.f32 %v1982, %v2199
        %v2249 = vsub.f32 %v1987, %v2199
        %v2250 = vsub.f32 %v1990, %v2199
        %v2251 = vsub.f32 %v1995, %v2199
        %v2252 = vsub.f32 %v1998, %v2199
        %v2253 = vsub.f32 %v2003, %v2199
        %v2254 = vsub.f32 %v2006, %v2199
        %v2255 = vsub.f32 %v2011, %v2199
        %v2256 = vsub.f32 %v2014, %v2199
        %v2257 = vsub.f32 %v2019, %v2199
        %v2258 = vsub.f32 %v2022, %v2199
        %v2259 = vsub.f32 %v2027, %v2199
        %v2260 = vsub.f32 %v2030, %v2199
        %v2261 = vsub.f32 %v2035, %v2199
        %v2262 = vsub.f32 %v2038, %v2199
        %v2263 = vsub.f32 %v2043, %v2199
        %v2264 = vsub.f32 %v2046, %v2199
        %v2265 = vmul.f32 %v2201, 1.442695
        %v2266 = vpow.pop %v2265
        %v2267 = vmul.f32 %v2202, 1.442695
        %v2268 = vpow.pop %v2267
        %v2269 = vmul.f32 %v2203, 1.442695
        %v2270 = vpow.pop %v2269
        %v2271 = vmul.f32 %v2204, 1.442695
        %v2272 = vpow.pop %v2271
        %v2273 = vmul.f32 %v2205, 1.442695
        %v2274 = vpow.pop %v2273
        %v2275 = vmul.f32 %v2206, 1.442695
        %v2276 = vpow.pop %v2275
        %v2277 = vmul.f32 %v2207, 1.442695
        %v2278 = vpow.pop %v2277
        %v2279 = vmul.f32 %v2208, 1.442695
        %v2280 = vpow.pop %v2279
        %v2281 = vmul.f32 %v2209, 1.442695
        %v2282 = vpow.pop %v2281
        %v2283 = vmul.f32 %v2210, 1.442695
        %v2284 = vpow.pop %v2283
        %v2285 = vmul.f32 %v2211, 1.442695
        %v2286 = vpow.pop %v2285
        %v2287 = vmul.f32 %v2212, 1.442695
        %v2288 = vpow.pop %v2287
        %v2289 = vmul.f32 %v2213, 1.442695
        %v2290 = vpow.pop %v2289
        %v2291 = vmul.f32 %v2214, 1.442695
        %v2292 = vpow.pop %v2291
        %v2293 = vmul.f32 %v2215, 1.442695
        %v2294 = vpow.pop %v2293
        %v2295 = vmul.f32 %v2216, 1.442695
        %v2296 = vpow.pop %v2295
        %v2297 = vmul.f32 %v2217, 1.442695
        %v2298 = vpow.pop %v2297
        %v2299 = vmul.f32 %v2218, 1.442695
        %v2300 = vpow.pop %v2299
        %v2301 = vmul.f32 %v2219, 1.442695
        %v2302 = vpow.pop %v2301
        %v2303 = vmul.f32 %v2220, 1.442695
        %v2304 = vpow.pop %v2303
        %v2305 = vmul.f32 %v2221, 1.442695
        %v2306 = vpow.pop %v2305
        %v2307 = vmul.f32 %v2222, 1.442695
        %v2308 = vpow.pop %v2307
        %v2309 = vmul.f32 %v2223, 1.442695
        %v2310 = vpow.pop %v2309
        %v2311 = vmul.f32 %v2224, 1.442695
        %v2312 = vpow.pop %v2311
        %v2313 = vmul.f32 %v2225, 1.442695
        %v2314 = vpow.pop %v2313
        %v2315 = vmul.f32 %v2226, 1.442695
        %v2316 = vpow.pop %v2315
        %v2317 = vmul.f32 %v2227, 1.442695
        %v2318 = vpow.pop %v2317
        %v2319 = vmul.f32 %v2228, 1.442695
        %v2320 = vpow.pop %v2319
        %v2321 = vmul.f32 %v2229, 1.442695
        %v2322 = vpow.pop %v2321
        %v2323 = vmul.f32 %v2230, 1.442695
        %v2324 = vpow.pop %v2323
        %v2325 = vmul.f32 %v2231, 1.442695
        %v2326 = vpow.pop %v2325
        %v2327 = vmul.f32 %v2232, 1.442695
        %v2328 = vpow.pop %v2327
        %v2329 = vmul.f32 %v2233, 1.442695
        %v2330 = vpow.pop %v2329
        %v2331 = vmul.f32 %v2234, 1.442695
        %v2332 = vpow.pop %v2331
        %v2333 = vmul.f32 %v2235, 1.442695
        %v2334 = vpow.pop %v2333
        %v2335 = vmul.f32 %v2236, 1.442695
        %v2336 = vpow.pop %v2335
        %v2337 = vmul.f32 %v2237, 1.442695
        %v2338 = vpow.pop %v2337
        %v2339 = vmul.f32 %v2238, 1.442695
        %v2340 = vpow.pop %v2339
        %v2341 = vmul.f32 %v2239, 1.442695
        %v2342 = vpow.pop %v2341
        %v2343 = vmul.f32 %v2240, 1.442695
        %v2344 = vpow.pop %v2343
        %v2345 = vmul.f32 %v2241, 1.442695
        %v2346 = vpow.pop %v2345
        %v2347 = vmul.f32 %v2242, 1.442695
        %v2348 = vpow.pop %v2347
        %v2349 = vmul.f32 %v2243, 1.442695
        %v2350 = vpow.pop %v2349
        %v2351 = vmul.f32 %v2244, 1.442695
        %v2352 = vpow.pop %v2351
        %v2353 = vmul.f32 %v2245, 1.442695
        %v2354 = vpow.pop %v2353
        %v2355 = vmul.f32 %v2246, 1.442695
        %v2356 = vpow.pop %v2355
        %v2357 = vmul.f32 %v2247, 1.442695
        %v2358 = vpow.pop %v2357
        %v2359 = vmul.f32 %v2248, 1.442695
        %v2360 = vpow.pop %v2359
        %v2361 = vmul.f32 %v2249, 1.442695
        %v2362 = vpow.pop %v2361
        %v2363 = vmul.f32 %v2250, 1.442695
        %v2364 = vpow.pop %v2363
        %v2365 = vmul.f32 %v2251, 1.442695
        %v2366 = vpow.pop %v2365
        %v2367 = vmul.f32 %v2252, 1.442695
        %v2368 = vpow.pop %v2367
        %v2369 = vmul.f32 %v2253, 1.442695
        %v2370 = vpow.pop %v2369
        %v2371 = vmul.f32 %v2254, 1.442695
        %v2372 = vpow.pop %v2371
        %v2373 = vmul.f32 %v2255, 1.442695
        %v2374 = vpow.pop %v2373
        %v2375 = vmul.f32 %v2256, 1.442695
        %v2376 = vpow.pop %v2375
        %v2377 = vmul.f32 %v2257, 1.442695
        %v2378 = vpow.pop %v2377
        %v2379 = vmul.f32 %v2258, 1.442695
        %v2380 = vpow.pop %v2379
        %v2381 = vmul.f32 %v2259, 1.442695
        %v2382 = vpow.pop %v2381
        %v2383 = vmul.f32 %v2260, 1.442695
        %v2384 = vpow.pop %v2383
        %v2385 = vmul.f32 %v2261, 1.442695
        %v2386 = vpow.pop %v2385
        %v2387 = vmul.f32 %v2262, 1.442695
        %v2388 = vpow.pop %v2387
        %v2389 = vmul.f32 %v2263, 1.442695
        %v2390 = vpow.pop %v2389
        %v2391 = vmul.f32 %v2264, 1.442695
        %v2392 = vpow.pop %v2391
        %v2393 = vld [vmem:[%s10] sm:$0xff]
        %v2394 = vld [vmem:[%s10 + $0x8] sm:$0xff]
        %v2395 = vld [vmem:[%s10 + $0x10] sm:$0xff]
        %v2396 = vld [vmem:[%s10 + $0x18] sm:$0xff]
        %v2397 = vpack.c.bf16 %v500, %v499
        %v2398 = vpack.c.bf16 %v502, %v501
        %v2399 = vpack.c.bf16 %v504, %v503
        %v2400 = vpack.c.bf16 %v506, %v505
        %v2401 = vpack.c.bf16 %v508, %v507
        %v2402 = vpack.c.bf16 %v510, %v509
        %v2403 = vpack.c.bf16 %v512, %v511
        %v2404 = vpack.c.bf16 %v514, %v513
        %v2405 = vpack.c.bf16 %v516, %v515
        %v2406 = vpack.c.bf16 %v518, %v517
        %v2407 = vpack.c.bf16 %v520, %v519
        %v2408 = vpack.c.bf16 %v522, %v521
        %v2409 = vpack.c.bf16 %v524, %v523
        %v2410 = vpack.c.bf16 %v526, %v525
        %v2411 = vpack.c.bf16 %v528, %v527
        %v2412 = vpack.c.bf16 %v530, %v529
        %v2413 = vpack.c.bf16 %v532, %v531
        %v2414 = vpack.c.bf16 %v534, %v533
        %v2415 = vpack.c.bf16 %v536, %v535
        %v2416 = vpack.c.bf16 %v538, %v537
        %v2417 = vpack.c.bf16 %v540, %v539
        %v2418 = vpack.c.bf16 %v542, %v541
        %v2419 = vpack.c.bf16 %v544, %v543
        %v2420 = vpack.c.bf16 %v546, %v545
        %v2421 = vpack.c.bf16 %v548, %v547
        %v2422 = vpack.c.bf16 %v550, %v549
        %v2423 = vpack.c.bf16 %v552, %v551
        %v2424 = vpack.c.bf16 %v554, %v553
        %v2425 = vpack.c.bf16 %v556, %v555
        %v2426 = vpack.c.bf16 %v558, %v557
        %v2427 = vpack.c.bf16 %v560, %v559
        %v2428 = vpack.c.bf16 %v562, %v561
        %v2429 = vpack.c.bf16 %v2394, %v2393
        %v2430 = vpack.c.bf16 %v2396, %v2395
        %v2431 = vld [vmem:[%s11] sm:$0x1]
        %v2433 = vlaneseq
        %v2434 = vshrl.u32 %v2433, 7
        %v2435 = vsub.s32 0, %v2434
        %v2436 = vrot.slane %v2431, %v2435
        %v2439 = vsel %vm1663, %v2397, 0
        %v2442 = vsel %vm1663, %v2398, 0
        %v2445 = vsel %vm1663, %v2399, 0
        %v2448 = vsel %vm1663, %v2400, 0
        %v2451 = vsel %vm1663, %v2401, 0
        %v2454 = vsel %vm1663, %v2402, 0
        %v2457 = vsel %vm1663, %v2403, 0
        %v2460 = vsel %vm1663, %v2404, 0
        %v2463 = vsel %vm1663, %v2405, 0
        %v2466 = vsel %vm1663, %v2406, 0
        %v2469 = vsel %vm1663, %v2407, 0
        %v2472 = vsel %vm1663, %v2408, 0
        %v2475 = vsel %vm1663, %v2409, 0
        %v2478 = vsel %vm1663, %v2410, 0
        %v2481 = vsel %vm1663, %v2411, 0
        %v2484 = vsel %vm1663, %v2412, 0
        %v2487 = vsel %vm1663, %v2413, 0
        %v2490 = vsel %vm1663, %v2414, 0
        %v2493 = vsel %vm1663, %v2415, 0
        %v2496 = vsel %vm1663, %v2416, 0
        %v2499 = vsel %vm1663, %v2417, 0
        %v2502 = vsel %vm1663, %v2418, 0
        %v2505 = vsel %vm1663, %v2419, 0
        %v2508 = vsel %vm1663, %v2420, 0
        %v2511 = vsel %vm1663, %v2421, 0
        %v2514 = vsel %vm1663, %v2422, 0
        %v2517 = vsel %vm1663, %v2423, 0
        %v2520 = vsel %vm1663, %v2424, 0
        %v2523 = vsel %vm1663, %v2425, 0
        %v2526 = vsel %vm1663, %v2426, 0
        %v2529 = vsel %vm1663, %v2427, 0
        %v2532 = vsel %vm1663, %v2428, 0
        %2534 = vmatprep.subr.bf16.mxu0 0
        %2535 = vmatpush1.bf16.msra.mxu0 %v2429
        %2536 = vmatprep.subr.bf16.mxu0 0
        %2537 = vmatpush1.bf16.msra.mxu0 %v2430
        %2538 = vmatprep.subr.bf16.mxu0 0
        %2539 = vmatpush1.bf16.msra.mxu0 0
        %2540 = vmatprep.subr.bf16.mxu0 0
        %2541 = vmatpush1.bf16.msra.mxu0 0
        %2542 = vmatprep.subr.bf16.mxu0 0
        %2543 = vmatpush1.bf16.msra.mxu0 0
        %2544 = vmatprep.subr.bf16.mxu0 0
        %2545 = vmatpush1.bf16.msra.mxu0 0
        %2546 = vmatprep.subr.bf16.mxu0 0
        %2547 = vmatpush1.bf16.msra.mxu0 0
        %2548 = vmatprep.subr.bf16.mxu0 0
        %2549 = vmatpush1.bf16.msra.mxu0 0
        %2550 = vmatprep.subr.bf16.mxu0 0
        %2551 = vmatpush1.bf16.msra.mxu0 0
        %2552 = vmatprep.subr.bf16.mxu0 0
        %2553 = vmatpush1.bf16.msra.mxu0 0
        %2554 = vmatprep.subr.bf16.mxu0 0
        %2555 = vmatpush1.bf16.msra.mxu0 0
        %2556 = vmatprep.subr.bf16.mxu0 0
        %2557 = vmatpush1.bf16.msra.mxu0 0
        %2558 = vmatprep.subr.bf16.mxu0 0
        %2559 = vmatpush1.bf16.msra.mxu0 0
        %2560 = vmatprep.subr.bf16.mxu0 0
        %2561 = vmatpush1.bf16.msra.mxu0 0
        %2562 = vmatprep.subr.bf16.mxu0 0
        %2563 = vmatpush1.bf16.msra.mxu0 0
        %2564 = vmatprep.subr.bf16.mxu0 0
        %2565 = vmatpush1.bf16.msra.mxu0 0
        %2566 = vmatprep.mubr.bf16.mxu0 0
        %2567 = vmatmul.mubr.bf16.gmra.mrb[0].mxu0 %v2439
        %v2568 = vpop.f32.mrb[0].mxu0
        %v2569 = vadd.f32 %v2436, %v2568
        %v2570 = vpop.f32.mrb[0].mxu0
        %v2571 = vpop.f32.mrb[0].mxu0
        %v2572 = vadd.f32 %v2436, %v2571
        %v2573 = vpop.f32.mrb[0].mxu0
        %2574 = vmatprep.mubr.bf16.mxu0 0
        %2575 = vmatmul.mubr.bf16.gmra.mrb[0].mxu0 %v2442
        %v2576 = vpop.f32.mrb[0].mxu0
        %v2577 = vadd.f32 %v2436, %v2576
        %v2578 = vpop.f32.mrb[0].mxu0
        %v2579 = vpop.f32.mrb[0].mxu0
        %v2580 = vadd.f32 %v2436, %v2579
        %v2581 = vpop.f32.mrb[0].mxu0
        %2582 = vmatprep.mubr.bf16.mxu0 0
        %2583 = vmatmul.mubr.bf16.gmra.mrb[0].mxu0 %v2445
        %v2584 = vpop.f32.mrb[0].mxu0
        %v2585 = vadd.f32 %v2436, %v2584
        %v2586 = vpop.f32.mrb[0].mxu0
        %v2587 = vpop.f32.mrb[0].mxu0
        %v2588 = vadd.f32 %v2436, %v2587
        %v2589 = vpop.f32.mrb[0].mxu0
        %2590 = vmatprep.mubr.bf16.mxu0 0
        %2591 = vmatmul.mubr.bf16.gmra.mrb[0].mxu0 %v2448
        %v2592 = vpop.f32.mrb[0].mxu0
        %v2593 = vadd.f32 %v2436, %v2592
        %v2594 = vpop.f32.mrb[0].mxu0
        %v2595 = vpop.f32.mrb[0].mxu0
        %v2596 = vadd.f32 %v2436, %v2595
        %v2597 = vpop.f32.mrb[0].mxu0
        %2598 = vmatprep.mubr.bf16.mxu0 0
        %2599 = vmatmul.mubr.bf16.gmra.mrb[0].mxu0 %v2451
        %v2600 = vpop.f32.mrb[0].mxu0
        %v2601 = vadd.f32 %v2436, %v2600
        %v2602 = vpop.f32.mrb[0].mxu0
        %v2603 = vpop.f32.mrb[0].mxu0
        %v2604 = vadd.f32 %v2436, %v2603
        %v2605 = vpop.f32.mrb[0].mxu0
        %2606 = vmatprep.mubr.bf16.mxu0 0
        %2607 = vmatmul.mubr.bf16.gmra.mrb[0].mxu0 %v2454
        %v2608 = vpop.f32.mrb[0].mxu0
        %v2609 = vadd.f32 %v2436, %v2608
        %v2610 = vpop.f32.mrb[0].mxu0
        %v2611 = vpop.f32.mrb[0].mxu0
        %v2612 = vadd.f32 %v2436, %v2611
        %v2613 = vpop.f32.mrb[0].mxu0
        %2614 = vmatprep.mubr.bf16.mxu0 0
        %2615 = vmatmul.mubr.bf16.gmra.mrb[0].mxu0 %v2457
        %v2616 = vpop.f32.mrb[0].mxu0
        %v2617 = vadd.f32 %v2436, %v2616
        %v2618 = vpop.f32.mrb[0].mxu0
        %v2619 = vpop.f32.mrb[0].mxu0
        %v2620 = vadd.f32 %v2436, %v2619
        %v2621 = vpop.f32.mrb[0].mxu0
        %2622 = vmatprep.mubr.bf16.mxu0 0
        %2623 = vmatmul.mubr.bf16.gmra.mrb[0].mxu0 %v2460
        %v2624 = vpop.f32.mrb[0].mxu0
        %v2625 = vadd.f32 %v2436, %v2624
        %v2626 = vpop.f32.mrb[0].mxu0
        %v2627 = vpop.f32.mrb[0].mxu0
        %v2628 = vadd.f32 %v2436, %v2627
        %v2629 = vpop.f32.mrb[0].mxu0
        %2630 = vmatprep.mubr.bf16.mxu0 0
        %2631 = vmatmul.mubr.bf16.gmra.mrb[0].mxu0 %v2463
        %v2632 = vpop.f32.mrb[0].mxu0
        %v2633 = vadd.f32 %v2436, %v2632
        %v2634 = vpop.f32.mrb[0].mxu0
        %v2635 = vpop.f32.mrb[0].mxu0
        %v2636 = vadd.f32 %v2436, %v2635
        %v2637 = vpop.f32.mrb[0].mxu0
        %2638 = vmatprep.mubr.bf16.mxu0 0
        %2639 = vmatmul.mubr.bf16.gmra.mrb[0].mxu0 %v2466
        %v2640 = vpop.f32.mrb[0].mxu0
        %v2641 = vadd.f32 %v2436, %v2640
        %v2642 = vpop.f32.mrb[0].mxu0
        %v2643 = vpop.f32.mrb[0].mxu0
        %v2644 = vadd.f32 %v2436, %v2643
        %v2645 = vpop.f32.mrb[0].mxu0
        %2646 = vmatprep.mubr.bf16.mxu0 0
        %2647 = vmatmul.mubr.bf16.gmra.mrb[0].mxu0 %v2469
        %v2648 = vpop.f32.mrb[0].mxu0
        %v2649 = vadd.f32 %v2436, %v2648
        %v2650 = vpop.f32.mrb[0].mxu0
        %v2651 = vpop.f32.mrb[0].mxu0
        %v2652 = vadd.f32 %v2436, %v2651
        %v2653 = vpop.f32.mrb[0].mxu0
        %2654 = vmatprep.mubr.bf16.mxu0 0
        %2655 = vmatmul.mubr.bf16.gmra.mrb[0].mxu0 %v2472
        %v2656 = vpop.f32.mrb[0].mxu0
        %v2657 = vadd.f32 %v2436, %v2656
        %v2658 = vpop.f32.mrb[0].mxu0
        %v2659 = vpop.f32.mrb[0].mxu0
        %v2660 = vadd.f32 %v2436, %v2659
        %v2661 = vpop.f32.mrb[0].mxu0
        %2662 = vmatprep.mubr.bf16.mxu0 0
        %2663 = vmatmul.mubr.bf16.gmra.mrb[0].mxu0 %v2475
        %v2664 = vpop.f32.mrb[0].mxu0
        %v2665 = vadd.f32 %v2436, %v2664
        %v2666 = vpop.f32.mrb[0].mxu0
        %v2667 = vpop.f32.mrb[0].mxu0
        %v2668 = vadd.f32 %v2436, %v2667
        %v2669 = vpop.f32.mrb[0].mxu0
        %2670 = vmatprep.mubr.bf16.mxu0 0
        %2671 = vmatmul.mubr.bf16.gmra.mrb[0].mxu0 %v2478
        %v2672 = vpop.f32.mrb[0].mxu0
        %v2673 = vadd.f32 %v2436, %v2672
        %v2674 = vpop.f32.mrb[0].mxu0
        %v2675 = vpop.f32.mrb[0].mxu0
        %v2676 = vadd.f32 %v2436, %v2675
        %v2677 = vpop.f32.mrb[0].mxu0
        %2678 = vmatprep.mubr.bf16.mxu0 0
        %2679 = vmatmul.mubr.bf16.gmra.mrb[0].mxu0 %v2481
        %v2680 = vpop.f32.mrb[0].mxu0
        %v2681 = vadd.f32 %v2436, %v2680
        %v2682 = vpop.f32.mrb[0].mxu0
        %v2683 = vpop.f32.mrb[0].mxu0
        %v2684 = vadd.f32 %v2436, %v2683
        %v2685 = vpop.f32.mrb[0].mxu0
        %2686 = vmatprep.mubr.bf16.mxu0 0
        %2687 = vmatmul.mubr.bf16.gmra.mrb[0].mxu0 %v2484
        %v2688 = vpop.f32.mrb[0].mxu0
        %v2689 = vadd.f32 %v2436, %v2688
        %v2690 = vpop.f32.mrb[0].mxu0
        %v2691 = vpop.f32.mrb[0].mxu0
        %v2692 = vadd.f32 %v2436, %v2691
        %v2693 = vpop.f32.mrb[0].mxu0
        %2694 = vmatprep.mubr.bf16.mxu0 0
        %2695 = vmatmul.mubr.bf16.gmra.mrb[0].mxu0 %v2487
        %v2696 = vpop.f32.mrb[0].mxu0
        %v2697 = vadd.f32 %v2436, %v2696
        %v2698 = vpop.f32.mrb[0].mxu0
        %v2699 = vpop.f32.mrb[0].mxu0
        %v2700 = vadd.f32 %v2436, %v2699
        %v2701 = vpop.f32.mrb[0].mxu0
        %2702 = vmatprep.mubr.bf16.mxu0 0
        %2703 = vmatmul.mubr.bf16.gmra.mrb[0].mxu0 %v2490
        %v2704 = vpop.f32.mrb[0].mxu0
        %v2705 = vadd.f32 %v2436, %v2704
        %v2706 = vpop.f32.mrb[0].mxu0
        %v2707 = vpop.f32.mrb[0].mxu0
        %v2708 = vadd.f32 %v2436, %v2707
        %v2709 = vpop.f32.mrb[0].mxu0
        %2710 = vmatprep.mubr.bf16.mxu0 0
        %2711 = vmatmul.mubr.bf16.gmra.mrb[0].mxu0 %v2493
        %v2712 = vpop.f32.mrb[0].mxu0
        %v2713 = vadd.f32 %v2436, %v2712
        %v2714 = vpop.f32.mrb[0].mxu0
        %v2715 = vpop.f32.mrb[0].mxu0
        %v2716 = vadd.f32 %v2436, %v2715
        %v2717 = vpop.f32.mrb[0].mxu0
        %2718 = vmatprep.mubr.bf16.mxu0 0
        %2719 = vmatmul.mubr.bf16.gmra.mrb[0].mxu0 %v2496
        %v2720 = vpop.f32.mrb[0].mxu0
        %v2721 = vadd.f32 %v2436, %v2720
        %v2722 = vpop.f32.mrb[0].mxu0
        %v2723 = vpop.f32.mrb[0].mxu0
        %v2724 = vadd.f32 %v2436, %v2723
        %v2725 = vpop.f32.mrb[0].mxu0
        %2726 = vmatprep.mubr.bf16.mxu0 0
        %2727 = vmatmul.mubr.bf16.gmra.mrb[0].mxu0 %v2499
        %v2728 = vpop.f32.mrb[0].mxu0
        %v2729 = vadd.f32 %v2436, %v2728
        %v2730 = vpop.f32.mrb[0].mxu0
        %v2731 = vpop.f32.mrb[0].mxu0
        %v2732 = vadd.f32 %v2436, %v2731
        %v2733 = vpop.f32.mrb[0].mxu0
        %2734 = vmatprep.mubr.bf16.mxu0 0
        %2735 = vmatmul.mubr.bf16.gmra.mrb[0].mxu0 %v2502
        %v2736 = vpop.f32.mrb[0].mxu0
        %v2737 = vadd.f32 %v2436, %v2736
        %v2738 = vpop.f32.mrb[0].mxu0
        %v2739 = vpop.f32.mrb[0].mxu0
        %v2740 = vadd.f32 %v2436, %v2739
        %v2741 = vpop.f32.mrb[0].mxu0
        %2742 = vmatprep.mubr.bf16.mxu0 0
        %2743 = vmatmul.mubr.bf16.gmra.mrb[0].mxu0 %v2505
        %v2744 = vpop.f32.mrb[0].mxu0
        %v2745 = vadd.f32 %v2436, %v2744
        %v2746 = vpop.f32.mrb[0].mxu0
        %v2747 = vpop.f32.mrb[0].mxu0
        %v2748 = vadd.f32 %v2436, %v2747
        %v2749 = vpop.f32.mrb[0].mxu0
        %2750 = vmatprep.mubr.bf16.mxu0 0
        %2751 = vmatmul.mubr.bf16.gmra.mrb[0].mxu0 %v2508
        %v2752 = vpop.f32.mrb[0].mxu0
        %v2753 = vadd.f32 %v2436, %v2752
        %v2754 = vpop.f32.mrb[0].mxu0
        %v2755 = vpop.f32.mrb[0].mxu0
        %v2756 = vadd.f32 %v2436, %v2755
        %v2757 = vpop.f32.mrb[0].mxu0
        %2758 = vmatprep.mubr.bf16.mxu0 0
        %2759 = vmatmul.mubr.bf16.gmra.mrb[0].mxu0 %v2511
        %v2760 = vpop.f32.mrb[0].mxu0
        %v2761 = vadd.f32 %v2436, %v2760
        %v2762 = vpop.f32.mrb[0].mxu0
        %v2763 = vpop.f32.mrb[0].mxu0
        %v2764 = vadd.f32 %v2436, %v2763
        %v2765 = vpop.f32.mrb[0].mxu0
        %2766 = vmatprep.mubr.bf16.mxu0 0
        %2767 = vmatmul.mubr.bf16.gmra.mrb[0].mxu0 %v2514
        %v2768 = vpop.f32.mrb[0].mxu0
        %v2769 = vadd.f32 %v2436, %v2768
        %v2770 = vpop.f32.mrb[0].mxu0
        %v2771 = vpop.f32.mrb[0].mxu0
        %v2772 = vadd.f32 %v2436, %v2771
        %v2773 = vpop.f32.mrb[0].mxu0
        %2774 = vmatprep.mubr.bf16.mxu0 0
        %2775 = vmatmul.mubr.bf16.gmra.mrb[0].mxu0 %v2517
        %v2776 = vpop.f32.mrb[0].mxu0
        %v2777 = vadd.f32 %v2436, %v2776
        %v2778 = vpop.f32.mrb[0].mxu0
        %v2779 = vpop.f32.mrb[0].mxu0
        %v2780 = vadd.f32 %v2436, %v2779
        %v2781 = vpop.f32.mrb[0].mxu0
        %2782 = vmatprep.mubr.bf16.mxu0 0
        %2783 = vmatmul.mubr.bf16.gmra.mrb[0].mxu0 %v2520
        %v2784 = vpop.f32.mrb[0].mxu0
        %v2785 = vadd.f32 %v2436, %v2784
        %v2786 = vpop.f32.mrb[0].mxu0
        %v2787 = vpop.f32.mrb[0].mxu0
        %v2788 = vadd.f32 %v2436, %v2787
        %v2789 = vpop.f32.mrb[0].mxu0
        %2790 = vmatprep.mubr.bf16.mxu0 0
        %2791 = vmatmul.mubr.bf16.gmra.mrb[0].mxu0 %v2523
        %v2792 = vpop.f32.mrb[0].mxu0
        %v2793 = vadd.f32 %v2436, %v2792
        %v2794 = vpop.f32.mrb[0].mxu0
        %v2795 = vpop.f32.mrb[0].mxu0
        %v2796 = vadd.f32 %v2436, %v2795
        %v2797 = vpop.f32.mrb[0].mxu0
        %2798 = vmatprep.mubr.bf16.mxu0 0
        %2799 = vmatmul.mubr.bf16.gmra.mrb[0].mxu0 %v2526
        %v2800 = vpop.f32.mrb[0].mxu0
        %v2801 = vadd.f32 %v2436, %v2800
        %v2802 = vpop.f32.mrb[0].mxu0
        %v2803 = vpop.f32.mrb[0].mxu0
        %v2804 = vadd.f32 %v2436, %v2803
        %v2805 = vpop.f32.mrb[0].mxu0
        %2806 = vmatprep.mubr.bf16.mxu0 0
        %2807 = vmatmul.mubr.bf16.gmra.mrb[0].mxu0 %v2529
        %v2808 = vpop.f32.mrb[0].mxu0
        %v2809 = vadd.f32 %v2436, %v2808
        %v2810 = vpop.f32.mrb[0].mxu0
        %v2811 = vpop.f32.mrb[0].mxu0
        %v2812 = vadd.f32 %v2436, %v2811
        %v2813 = vpop.f32.mrb[0].mxu0
        %2814 = vmatprep.mubr.bf16.mxu0 0
        %2815 = vmatmul.mubr.bf16.gmra.mrb[0].mxu0 %v2532
        %v2816 = vpop.f32.mrb[0].mxu0
        %v2817 = vadd.f32 %v2436, %v2816
        %v2818 = vpop.f32.mrb[0].mxu0
        %v2819 = vpop.f32.mrb[0].mxu0
        %v2820 = vadd.f32 %v2436, %v2819
        %v2821 = vpop.f32.mrb[0].mxu0
        %2822 = vdwg.mxu0
        %v2823 = vmul.f32 %v2569, %v2266
        %v2824 = vmul.f32 %v2572, %v2268
        %v2825 = vmul.f32 %v2577, %v2270
        %v2826 = vmul.f32 %v2580, %v2272
        %v2827 = vmul.f32 %v2585, %v2274
        %v2828 = vmul.f32 %v2588, %v2276
        %v2829 = vmul.f32 %v2593, %v2278
        %v2830 = vmul.f32 %v2596, %v2280
        %v2831 = vmul.f32 %v2601, %v2282
        %v2832 = vmul.f32 %v2604, %v2284
        %v2833 = vmul.f32 %v2609, %v2286
        %v2834 = vmul.f32 %v2612, %v2288
        %v2835 = vmul.f32 %v2617, %v2290
        %v2836 = vmul.f32 %v2620, %v2292
        %v2837 = vmul.f32 %v2625, %v2294
        %v2838 = vmul.f32 %v2628, %v2296
        %v2839 = vmul.f32 %v2633, %v2298
        %v2840 = vmul.f32 %v2636, %v2300
        %v2841 = vmul.f32 %v2641, %v2302
        %v2842 = vmul.f32 %v2644, %v2304
        %v2843 = vmul.f32 %v2649, %v2306
        %v2844 = vmul.f32 %v2652, %v2308
        %v2845 = vmul.f32 %v2657, %v2310
        %v2846 = vmul.f32 %v2660, %v2312
        %v2847 = vmul.f32 %v2665, %v2314
        %v2848 = vmul.f32 %v2668, %v2316
        %v2849 = vmul.f32 %v2673, %v2318
        %v2850 = vmul.f32 %v2676, %v2320
        %v2851 = vmul.f32 %v2681, %v2322
        %v2852 = vmul.f32 %v2684, %v2324
        %v2853 = vmul.f32 %v2689, %v2326
        %v2854 = vmul.f32 %v2692, %v2328
        %v2855 = vmul.f32 %v2697, %v2330
        %v2856 = vmul.f32 %v2700, %v2332
        %v2857 = vmul.f32 %v2705, %v2334
        %v2858 = vmul.f32 %v2708, %v2336
        %v2859 = vmul.f32 %v2713, %v2338
        %v2860 = vmul.f32 %v2716, %v2340
        %v2861 = vmul.f32 %v2721, %v2342
        %v2862 = vmul.f32 %v2724, %v2344
        %v2863 = vmul.f32 %v2729, %v2346
        %v2864 = vmul.f32 %v2732, %v2348
        %v2865 = vmul.f32 %v2737, %v2350
        %v2866 = vmul.f32 %v2740, %v2352
        %v2867 = vmul.f32 %v2745, %v2354
        %v2868 = vmul.f32 %v2748, %v2356
        %v2869 = vmul.f32 %v2753, %v2358
        %v2870 = vmul.f32 %v2756, %v2360
        %v2871 = vmul.f32 %v2761, %v2362
        %v2872 = vmul.f32 %v2764, %v2364
        %v2873 = vmul.f32 %v2769, %v2366
        %v2874 = vmul.f32 %v2772, %v2368
        %v2875 = vmul.f32 %v2777, %v2370
        %v2876 = vmul.f32 %v2780, %v2372
        %v2877 = vmul.f32 %v2785, %v2374
        %v2878 = vmul.f32 %v2788, %v2376
        %v2879 = vmul.f32 %v2793, %v2378
        %v2880 = vmul.f32 %v2796, %v2380
        %v2881 = vmul.f32 %v2801, %v2382
        %v2882 = vmul.f32 %v2804, %v2384
        %v2883 = vmul.f32 %v2809, %v2386
        %v2884 = vmul.f32 %v2812, %v2388
        %v2885 = vmul.f32 %v2817, %v2390
        %v2886 = vmul.f32 %v2820, %v2392
        %2951 = vrot.lane.b32.xlu0 %v2266, 16
        %v2952 = vpop.permute.xlu0 %2951
        %2953 = vrot.lane.b32.xlu0 %v2268, 16
        %v2954 = vpop.permute.xlu0 %2953
        %2955 = vrot.lane.b32.xlu0 %v2270, 16
        %v2956 = vpop.permute.xlu0 %2955
        %2957 = vrot.lane.b32.xlu0 %v2272, 16
        %v2958 = vpop.permute.xlu0 %2957
        %2959 = vrot.lane.b32.xlu0 %v2274, 16
        %v2960 = vpop.permute.xlu0 %2959
        %2961 = vrot.lane.b32.xlu0 %v2276, 16
        %v2962 = vpop.permute.xlu0 %2961
        %2963 = vrot.lane.b32.xlu0 %v2278, 16
        %v2964 = vpop.permute.xlu0 %2963
        %2965 = vrot.lane.b32.xlu0 %v2280, 16
        %v2966 = vpop.permute.xlu0 %2965
        %2967 = vrot.lane.b32.xlu0 %v2282, 16
        %v2968 = vpop.permute.xlu0 %2967
        %2969 = vrot.lane.b32.xlu0 %v2284, 16
        %v2970 = vpop.permute.xlu0 %2969
        %2971 = vrot.lane.b32.xlu0 %v2286, 16
        %v2972 = vpop.permute.xlu0 %2971
        %2973 = vrot.lane.b32.xlu0 %v2288, 16
        %v2974 = vpop.permute.xlu0 %2973
        %2975 = vrot.lane.b32.xlu0 %v2290, 16
        %v2976 = vpop.permute.xlu0 %2975
        %2977 = vrot.lane.b32.xlu0 %v2292, 16
        %v2978 = vpop.permute.xlu0 %2977
        %2979 = vrot.lane.b32.xlu0 %v2294, 16
        %v2980 = vpop.permute.xlu0 %2979
        %2981 = vrot.lane.b32.xlu0 %v2296, 16
        %v2982 = vpop.permute.xlu0 %2981
        %2983 = vrot.lane.b32.xlu0 %v2298, 16
        %v2984 = vpop.permute.xlu0 %2983
        %2985 = vrot.lane.b32.xlu0 %v2300, 16
        %v2986 = vpop.permute.xlu0 %2985
        %2987 = vrot.lane.b32.xlu0 %v2302, 16
        %v2988 = vpop.permute.xlu0 %2987
        %2989 = vrot.lane.b32.xlu0 %v2304, 16
        %v2990 = vpop.permute.xlu0 %2989
        %2991 = vrot.lane.b32.xlu0 %v2306, 16
        %v2992 = vpop.permute.xlu0 %2991
        %2993 = vrot.lane.b32.xlu0 %v2308, 16
        %v2994 = vpop.permute.xlu0 %2993
        %2995 = vrot.lane.b32.xlu0 %v2310, 16
        %v2996 = vpop.permute.xlu0 %2995
        %2997 = vrot.lane.b32.xlu0 %v2312, 16
        %v2998 = vpop.permute.xlu0 %2997
        %2999 = vrot.lane.b32.xlu0 %v2314, 16
        %v3000 = vpop.permute.xlu0 %2999
        %3001 = vrot.lane.b32.xlu0 %v2316, 16
        %v3002 = vpop.permute.xlu0 %3001
        %3003 = vrot.lane.b32.xlu0 %v2318, 16
        %v3004 = vpop.permute.xlu0 %3003
        %3005 = vrot.lane.b32.xlu0 %v2320, 16
        %v3006 = vpop.permute.xlu0 %3005
        %3007 = vrot.lane.b32.xlu0 %v2322, 16
        %v3008 = vpop.permute.xlu0 %3007
        %3009 = vrot.lane.b32.xlu0 %v2324, 16
        %v3010 = vpop.permute.xlu0 %3009
        %3011 = vrot.lane.b32.xlu0 %v2326, 16
        %v3012 = vpop.permute.xlu0 %3011
        %3013 = vrot.lane.b32.xlu0 %v2328, 16
        %v3014 = vpop.permute.xlu0 %3013
        %3015 = vrot.lane.b32.xlu0 %v2330, 16
        %v3016 = vpop.permute.xlu0 %3015
        %3017 = vrot.lane.b32.xlu0 %v2332, 16
        %v3018 = vpop.permute.xlu0 %3017
        %3019 = vrot.lane.b32.xlu0 %v2334, 16
        %v3020 = vpop.permute.xlu0 %3019
        %3021 = vrot.lane.b32.xlu0 %v2336, 16
        %v3022 = vpop.permute.xlu0 %3021
        %3023 = vrot.lane.b32.xlu0 %v2338, 16
        %v3024 = vpop.permute.xlu0 %3023
        %3025 = vrot.lane.b32.xlu0 %v2340, 16
        %v3026 = vpop.permute.xlu0 %3025
        %3027 = vrot.lane.b32.xlu0 %v2342, 16
        %v3028 = vpop.permute.xlu0 %3027
        %3029 = vrot.lane.b32.xlu0 %v2344, 16
        %v3030 = vpop.permute.xlu0 %3029
        %3031 = vrot.lane.b32.xlu0 %v2346, 16
        %v3032 = vpop.permute.xlu0 %3031
        %3033 = vrot.lane.b32.xlu0 %v2348, 16
        %v3034 = vpop.permute.xlu0 %3033
        %3035 = vrot.lane.b32.xlu0 %v2350, 16
        %v3036 = vpop.permute.xlu0 %3035
        %3037 = vrot.lane.b32.xlu0 %v2352, 16
        %v3038 = vpop.permute.xlu0 %3037
        %3039 = vrot.lane.b32.xlu0 %v2354, 16
        %v3040 = vpop.permute.xlu0 %3039
        %3041 = vrot.lane.b32.xlu0 %v2356, 16
        %v3042 = vpop.permute.xlu0 %3041
        %3043 = vrot.lane.b32.xlu0 %v2358, 16
        %v3044 = vpop.permute.xlu0 %3043
        %3045 = vrot.lane.b32.xlu0 %v2360, 16
        %v3046 = vpop.permute.xlu0 %3045
        %3047 = vrot.lane.b32.xlu0 %v2362, 16
        %v3048 = vpop.permute.xlu0 %3047
        %3049 = vrot.lane.b32.xlu0 %v2364, 16
        %v3050 = vpop.permute.xlu0 %3049
        %3051 = vrot.lane.b32.xlu0 %v2366, 16
        %v3052 = vpop.permute.xlu0 %3051
        %3053 = vrot.lane.b32.xlu0 %v2368, 16
        %v3054 = vpop.permute.xlu0 %3053
        %3055 = vrot.lane.b32.xlu0 %v2370, 16
        %v3056 = vpop.permute.xlu0 %3055
        %3057 = vrot.lane.b32.xlu0 %v2372, 16
        %v3058 = vpop.permute.xlu0 %3057
        %3059 = vrot.lane.b32.xlu0 %v2374, 16
        %v3060 = vpop.permute.xlu0 %3059
        %3061 = vrot.lane.b32.xlu0 %v2376, 16
        %v3062 = vpop.permute.xlu0 %3061
        %3063 = vrot.lane.b32.xlu0 %v2378, 16
        %v3064 = vpop.permute.xlu0 %3063
        %3065 = vrot.lane.b32.xlu0 %v2380, 16
        %v3066 = vpop.permute.xlu0 %3065
        %3067 = vrot.lane.b32.xlu0 %v2382, 16
        %v3068 = vpop.permute.xlu0 %3067
        %3069 = vrot.lane.b32.xlu0 %v2384, 16
        %v3070 = vpop.permute.xlu0 %3069
        %3071 = vrot.lane.b32.xlu0 %v2386, 16
        %v3072 = vpop.permute.xlu0 %3071
        %3073 = vrot.lane.b32.xlu0 %v2388, 16
        %v3074 = vpop.permute.xlu0 %3073
        %3075 = vrot.lane.b32.xlu0 %v2390, 16
        %v3076 = vpop.permute.xlu0 %3075
        %3077 = vrot.lane.b32.xlu0 %v2392, 16
        %v3078 = vpop.permute.xlu0 %3077
        %vm3143 = vcmask 130048
        %v3144 = vsel %vm3143, %v2823, %v2952
        %v3145 = vsel %vm3143, %v2824, %v2954
        %v3146 = vsel %vm3143, %v2825, %v2956
        %v3147 = vsel %vm3143, %v2826, %v2958
        %v3148 = vsel %vm3143, %v2827, %v2960
        %v3149 = vsel %vm3143, %v2828, %v2962
        %v3150 = vsel %vm3143, %v2829, %v2964
        %v3151 = vsel %vm3143, %v2830, %v2966
        %v3152 = vsel %vm3143, %v2831, %v2968
        %v3153 = vsel %vm3143, %v2832, %v2970
        %v3154 = vsel %vm3143, %v2833, %v2972
        %v3155 = vsel %vm3143, %v2834, %v2974
        %v3156 = vsel %vm3143, %v2835, %v2976
        %v3157 = vsel %vm3143, %v2836, %v2978
        %v3158 = vsel %vm3143, %v2837, %v2980
        %v3159 = vsel %vm3143, %v2838, %v2982
        %v3160 = vsel %vm3143, %v2839, %v2984
        %v3161 = vsel %vm3143, %v2840, %v2986
        %v3162 = vsel %vm3143, %v2841, %v2988
        %v3163 = vsel %vm3143, %v2842, %v2990
        %v3164 = vsel %vm3143, %v2843, %v2992
        %v3165 = vsel %vm3143, %v2844, %v2994
        %v3166 = vsel %vm3143, %v2845, %v2996
        %v3167 = vsel %vm3143, %v2846, %v2998
        %v3168 = vsel %vm3143, %v2847, %v3000
        %v3169 = vsel %vm3143, %v2848, %v3002
        %v3170 = vsel %vm3143, %v2849, %v3004
        %v3171 = vsel %vm3143, %v2850, %v3006
        %v3172 = vsel %vm3143, %v2851, %v3008
        %v3173 = vsel %vm3143, %v2852, %v3010
        %v3174 = vsel %vm3143, %v2853, %v3012
        %v3175 = vsel %vm3143, %v2854, %v3014
        %v3176 = vsel %vm3143, %v2855, %v3016
        %v3177 = vsel %vm3143, %v2856, %v3018
        %v3178 = vsel %vm3143, %v2857, %v3020
        %v3179 = vsel %vm3143, %v2858, %v3022
        %v3180 = vsel %vm3143, %v2859, %v3024
        %v3181 = vsel %vm3143, %v2860, %v3026
        %v3182 = vsel %vm3143, %v2861, %v3028
        %v3183 = vsel %vm3143, %v2862, %v3030
        %v3184 = vsel %vm3143, %v2863, %v3032
        %v3185 = vsel %vm3143, %v2864, %v3034
        %v3186 = vsel %vm3143, %v2865, %v3036
        %v3187 = vsel %vm3143, %v2866, %v3038
        %v3188 = vsel %vm3143, %v2867, %v3040
        %v3189 = vsel %vm3143, %v2868, %v3042
        %v3190 = vsel %vm3143, %v2869, %v3044
        %v3191 = vsel %vm3143, %v2870, %v3046
        %v3192 = vsel %vm3143, %v2871, %v3048
        %v3193 = vsel %vm3143, %v2872, %v3050
        %v3194 = vsel %vm3143, %v2873, %v3052
        %v3195 = vsel %vm3143, %v2874, %v3054
        %v3196 = vsel %vm3143, %v2875, %v3056
        %v3197 = vsel %vm3143, %v2876, %v3058
        %v3198 = vsel %vm3143, %v2877, %v3060
        %v3199 = vsel %vm3143, %v2878, %v3062
        %v3200 = vsel %vm3143, %v2879, %v3064
        %v3201 = vsel %vm3143, %v2880, %v3066
        %v3202 = vsel %vm3143, %v2881, %v3068
        %v3203 = vsel %vm3143, %v2882, %v3070
        %v3204 = vsel %vm3143, %v2883, %v3072
        %v3205 = vsel %vm3143, %v2884, %v3074
        %v3206 = vsel %vm3143, %v2885, %v3076
        %v3207 = vsel %vm3143, %v2886, %v3078
        %v3208 = vlaneseq
        %v3209 = vand.u32 %v3208, 127
        %v3210 = vadd.s32 %v3209, 128
        %v3211 = vld [vmem:[%s455] sm:$0xff]
        %v3212 = vld [vmem:[%s455 + $0x8] sm:$0xff]
        %v3213 = vld [vmem:[%s455 + $0x10] sm:$0xff]
        %v3214 = vld [vmem:[%s455 + $0x18] sm:$0xff]
        %v3215 = vld [vmem:[%s455 + $0x20] sm:$0xff]
        %v3216 = vld [vmem:[%s455 + $0x28] sm:$0xff]
        %v3217 = vld [vmem:[%s455 + $0x30] sm:$0xff]
        %v3218 = vld [vmem:[%s455 + $0x38] sm:$0xff]
        %v3219 = vld [vmem:[%s455 + $0x40] sm:$0xff]
        %v3220 = vld [vmem:[%s455 + $0x48] sm:$0xff]
        %v3221 = vld [vmem:[%s455 + $0x50] sm:$0xff]
        %v3222 = vld [vmem:[%s455 + $0x58] sm:$0xff]
        %v3223 = vld [vmem:[%s455 + $0x60] sm:$0xff]
        %v3224 = vld [vmem:[%s455 + $0x68] sm:$0xff]
        %v3225 = vld [vmem:[%s455 + $0x70] sm:$0xff]
        %v3226 = vld [vmem:[%s455 + $0x78] sm:$0xff]
        %v3227 = vld [vmem:[%s455 + $0x80] sm:$0xff]
        %v3228 = vld [vmem:[%s455 + $0x88] sm:$0xff]
        %v3229 = vld [vmem:[%s455 + $0x90] sm:$0xff]
        %v3230 = vld [vmem:[%s455 + $0x98] sm:$0xff]
        %v3231 = vld [vmem:[%s455 + $0xa0] sm:$0xff]
        %v3232 = vld [vmem:[%s455 + $0xa8] sm:$0xff]
        %v3233 = vld [vmem:[%s455 + $0xb0] sm:$0xff]
        %v3234 = vld [vmem:[%s455 + $0xb8] sm:$0xff]
        %v3235 = vld [vmem:[%s455 + $0xc0] sm:$0xff]
        %v3236 = vld [vmem:[%s455 + $0xc8] sm:$0xff]
        %v3237 = vld [vmem:[%s455 + $0xd0] sm:$0xff]
        %v3238 = vld [vmem:[%s455 + $0xd8] sm:$0xff]
        %v3239 = vld [vmem:[%s455 + $0xe0] sm:$0xff]
        %v3240 = vld [vmem:[%s455 + $0xe8] sm:$0xff]
        %v3241 = vld [vmem:[%s455 + $0xf0] sm:$0xff]
        %v3242 = vld [vmem:[%s455 + $0xf8] sm:$0xff]
        %v3243 = vld [vmem:[%s455 + $0x100] sm:$0xff]
        %v3244 = vld [vmem:[%s455 + $0x108] sm:$0xff]
        %v3245 = vld [vmem:[%s455 + $0x110] sm:$0xff]
        %v3246 = vld [vmem:[%s455 + $0x118] sm:$0xff]
        %v3247 = vld [vmem:[%s455 + $0x120] sm:$0xff]
        %v3248 = vld [vmem:[%s455 + $0x128] sm:$0xff]
        %v3249 = vld [vmem:[%s455 + $0x130] sm:$0xff]
        %v3250 = vld [vmem:[%s455 + $0x138] sm:$0xff]
        %v3251 = vld [vmem:[%s455 + $0x140] sm:$0xff]
        %v3252 = vld [vmem:[%s455 + $0x148] sm:$0xff]
        %v3253 = vld [vmem:[%s455 + $0x150] sm:$0xff]
        %v3254 = vld [vmem:[%s455 + $0x158] sm:$0xff]
        %v3255 = vld [vmem:[%s455 + $0x160] sm:$0xff]
        %v3256 = vld [vmem:[%s455 + $0x168] sm:$0xff]
        %v3257 = vld [vmem:[%s455 + $0x170] sm:$0xff]
        %v3258 = vld [vmem:[%s455 + $0x178] sm:$0xff]
        %v3259 = vld [vmem:[%s455 + $0x180] sm:$0xff]
        %v3260 = vld [vmem:[%s455 + $0x188] sm:$0xff]
        %v3261 = vld [vmem:[%s455 + $0x190] sm:$0xff]
        %v3262 = vld [vmem:[%s455 + $0x198] sm:$0xff]
        %v3263 = vld [vmem:[%s455 + $0x1a0] sm:$0xff]
        %v3264 = vld [vmem:[%s455 + $0x1a8] sm:$0xff]
        %v3265 = vld [vmem:[%s455 + $0x1b0] sm:$0xff]
        %v3266 = vld [vmem:[%s455 + $0x1b8] sm:$0xff]
        %v3267 = vld [vmem:[%s455 + $0x1c0] sm:$0xff]
        %v3268 = vld [vmem:[%s455 + $0x1c8] sm:$0xff]
        %v3269 = vld [vmem:[%s455 + $0x1d0] sm:$0xff]
        %v3270 = vld [vmem:[%s455 + $0x1d8] sm:$0xff]
        %v3271 = vld [vmem:[%s455 + $0x1e0] sm:$0xff]
        %v3272 = vld [vmem:[%s455 + $0x1e8] sm:$0xff]
        %v3273 = vld [vmem:[%s455 + $0x1f0] sm:$0xff]
        %v3274 = vld [vmem:[%s455 + $0x1f8] sm:$0xff]
        %3275 = vset.pattern.permute.xlu0 0
        %3276 = vperm.xlu0 %3275, %v3211
        %v3277 = vpop.permute.xlu0 %3276
        %3278 = vset.pattern.permute.xlu0 0
        %3279 = vperm.xlu0 %3278, %v3212
        %v3280 = vpop.permute.xlu0 %3279
        %3281 = vset.pattern.permute.xlu0 0
        %3282 = vperm.xlu0 %3281, %v3213
        %v3283 = vpop.permute.xlu0 %3282
        %3284 = vset.pattern.permute.xlu0 0
        %3285 = vperm.xlu0 %3284, %v3214
        %v3286 = vpop.permute.xlu0 %3285
        %3287 = vset.pattern.permute.xlu0 0
        %3288 = vperm.xlu0 %3287, %v3215
        %v3289 = vpop.permute.xlu0 %3288
        %3290 = vset.pattern.permute.xlu0 0
        %3291 = vperm.xlu0 %3290, %v3216
        %v3292 = vpop.permute.xlu0 %3291
        %3293 = vset.pattern.permute.xlu0 0
        %3294 = vperm.xlu0 %3293, %v3217
        %v3295 = vpop.permute.xlu0 %3294
        %3296 = vset.pattern.permute.xlu0 0
        %3297 = vperm.xlu0 %3296, %v3218
        %v3298 = vpop.permute.xlu0 %3297
        %3299 = vset.pattern.permute.xlu0 0
        %3300 = vperm.xlu0 %3299, %v3219
        %v3301 = vpop.permute.xlu0 %3300
        %3302 = vset.pattern.permute.xlu0 0
        %3303 = vperm.xlu0 %3302, %v3220
        %v3304 = vpop.permute.xlu0 %3303
        %3305 = vset.pattern.permute.xlu0 0
        %3306 = vperm.xlu0 %3305, %v3221
        %v3307 = vpop.permute.xlu0 %3306
        %3308 = vset.pattern.permute.xlu0 0
        %3309 = vperm.xlu0 %3308, %v3222
        %v3310 = vpop.permute.xlu0 %3309
        %3311 = vset.pattern.permute.xlu0 0
        %3312 = vperm.xlu0 %3311, %v3223
        %v3313 = vpop.permute.xlu0 %3312
        %3314 = vset.pattern.permute.xlu0 0
        %3315 = vperm.xlu0 %3314, %v3224
        %v3316 = vpop.permute.xlu0 %3315
        %3317 = vset.pattern.permute.xlu0 0
        %3318 = vperm.xlu0 %3317, %v3225
        %v3319 = vpop.permute.xlu0 %3318
        %3320 = vset.pattern.permute.xlu0 0
        %3321 = vperm.xlu0 %3320, %v3226
        %v3322 = vpop.permute.xlu0 %3321
        %3323 = vset.pattern.permute.xlu0 0
        %3324 = vperm.xlu0 %3323, %v3227
        %v3325 = vpop.permute.xlu0 %3324
        %3326 = vset.pattern.permute.xlu0 0
        %3327 = vperm.xlu0 %3326, %v3228
        %v3328 = vpop.permute.xlu0 %3327
        %3329 = vset.pattern.permute.xlu0 0
        %3330 = vperm.xlu0 %3329, %v3229
        %v3331 = vpop.permute.xlu0 %3330
        %3332 = vset.pattern.permute.xlu0 0
        %3333 = vperm.xlu0 %3332, %v3230
        %v3334 = vpop.permute.xlu0 %3333
        %3335 = vset.pattern.permute.xlu0 0
        %3336 = vperm.xlu0 %3335, %v3231
        %v3337 = vpop.permute.xlu0 %3336
        %3338 = vset.pattern.permute.xlu0 0
        %3339 = vperm.xlu0 %3338, %v3232
        %v3340 = vpop.permute.xlu0 %3339
        %3341 = vset.pattern.permute.xlu0 0
        %3342 = vperm.xlu0 %3341, %v3233
        %v3343 = vpop.permute.xlu0 %3342
        %3344 = vset.pattern.permute.xlu0 0
        %3345 = vperm.xlu0 %3344, %v3234
        %v3346 = vpop.permute.xlu0 %3345
        %3347 = vset.pattern.permute.xlu0 0
        %3348 = vperm.xlu0 %3347, %v3235
        %v3349 = vpop.permute.xlu0 %3348
        %3350 = vset.pattern.permute.xlu0 0
        %3351 = vperm.xlu0 %3350, %v3236
        %v3352 = vpop.permute.xlu0 %3351
        %3353 = vset.pattern.permute.xlu0 0
        %3354 = vperm.xlu0 %3353, %v3237
        %v3355 = vpop.permute.xlu0 %3354
        %3356 = vset.pattern.permute.xlu0 0
        %3357 = vperm.xlu0 %3356, %v3238
        %v3358 = vpop.permute.xlu0 %3357
        %3359 = vset.pattern.permute.xlu0 0
        %3360 = vperm.xlu0 %3359, %v3239
        %v3361 = vpop.permute.xlu0 %3360
        %3362 = vset.pattern.permute.xlu0 0
        %3363 = vperm.xlu0 %3362, %v3240
        %v3364 = vpop.permute.xlu0 %3363
        %3365 = vset.pattern.permute.xlu0 0
        %3366 = vperm.xlu0 %3365, %v3241
        %v3367 = vpop.permute.xlu0 %3366
        %3368 = vset.pattern.permute.xlu0 0
        %3369 = vperm.xlu0 %3368, %v3242
        %v3370 = vpop.permute.xlu0 %3369
        %3371 = vset.pattern.permute.xlu0 0
        %3372 = vperm.xlu0 %3371, %v3243
        %v3373 = vpop.permute.xlu0 %3372
        %3374 = vset.pattern.permute.xlu0 0
        %3375 = vperm.xlu0 %3374, %v3244
        %v3376 = vpop.permute.xlu0 %3375
        %3377 = vset.pattern.permute.xlu0 0
        %3378 = vperm.xlu0 %3377, %v3245
        %v3379 = vpop.permute.xlu0 %3378
        %3380 = vset.pattern.permute.xlu0 0
        %3381 = vperm.xlu0 %3380, %v3246
        %v3382 = vpop.permute.xlu0 %3381
        %3383 = vset.pattern.permute.xlu0 0
        %3384 = vperm.xlu0 %3383, %v3247
        %v3385 = vpop.permute.xlu0 %3384
        %3386 = vset.pattern.permute.xlu0 0
        %3387 = vperm.xlu0 %3386, %v3248
        %v3388 = vpop.permute.xlu0 %3387
        %3389 = vset.pattern.permute.xlu0 0
        %3390 = vperm.xlu0 %3389, %v3249
        %v3391 = vpop.permute.xlu0 %3390
        %3392 = vset.pattern.permute.xlu0 0
        %3393 = vperm.xlu0 %3392, %v3250
        %v3394 = vpop.permute.xlu0 %3393
        %3395 = vset.pattern.permute.xlu0 0
        %3396 = vperm.xlu0 %3395, %v3251
        %v3397 = vpop.permute.xlu0 %3396
        %3398 = vset.pattern.permute.xlu0 0
        %3399 = vperm.xlu0 %3398, %v3252
        %v3400 = vpop.permute.xlu0 %3399
        %3401 = vset.pattern.permute.xlu0 0
        %3402 = vperm.xlu0 %3401, %v3253
        %v3403 = vpop.permute.xlu0 %3402
        %3404 = vset.pattern.permute.xlu0 0
        %3405 = vperm.xlu0 %3404, %v3254
        %v3406 = vpop.permute.xlu0 %3405
        %3407 = vset.pattern.permute.xlu0 0
        %3408 = vperm.xlu0 %3407, %v3255
        %v3409 = vpop.permute.xlu0 %3408
        %3410 = vset.pattern.permute.xlu0 0
        %3411 = vperm.xlu0 %3410, %v3256
        %v3412 = vpop.permute.xlu0 %3411
        %3413 = vset.pattern.permute.xlu0 0
        %3414 = vperm.xlu0 %3413, %v3257
        %v3415 = vpop.permute.xlu0 %3414
        %3416 = vset.pattern.permute.xlu0 0
        %3417 = vperm.xlu0 %3416, %v3258
        %v3418 = vpop.permute.xlu0 %3417
        %3419 = vset.pattern.permute.xlu0 0
        %3420 = vperm.xlu0 %3419, %v3259
        %v3421 = vpop.permute.xlu0 %3420
        %3422 = vset.pattern.permute.xlu0 0
        %3423 = vperm.xlu0 %3422, %v3260
        %v3424 = vpop.permute.xlu0 %3423
        %3425 = vset.pattern.permute.xlu0 0
        %3426 = vperm.xlu0 %3425, %v3261
        %v3427 = vpop.permute.xlu0 %3426
        %3428 = vset.pattern.permute.xlu0 0
        %3429 = vperm.xlu0 %3428, %v3262
        %v3430 = vpop.permute.xlu0 %3429
        %3431 = vset.pattern.permute.xlu0 0
        %3432 = vperm.xlu0 %3431, %v3263
        %v3433 = vpop.permute.xlu0 %3432
        %3434 = vset.pattern.permute.xlu0 0
        %3435 = vperm.xlu0 %3434, %v3264
        %v3436 = vpop.permute.xlu0 %3435
        %3437 = vset.pattern.permute.xlu0 0
        %3438 = vperm.xlu0 %3437, %v3265
        %v3439 = vpop.permute.xlu0 %3438
        %3440 = vset.pattern.permute.xlu0 0
        %3441 = vperm.xlu0 %3440, %v3266
        %v3442 = vpop.permute.xlu0 %3441
        %3443 = vset.pattern.permute.xlu0 0
        %3444 = vperm.xlu0 %3443, %v3267
        %v3445 = vpop.permute.xlu0 %3444
        %3446 = vset.pattern.permute.xlu0 0
        %3447 = vperm.xlu0 %3446, %v3268
        %v3448 = vpop.permute.xlu0 %3447
        %3449 = vset.pattern.permute.xlu0 0
        %3450 = vperm.xlu0 %3449, %v3269
        %v3451 = vpop.permute.xlu0 %3450
        %3452 = vset.pattern.permute.xlu0 0
        %3453 = vperm.xlu0 %3452, %v3270
        %v3454 = vpop.permute.xlu0 %3453
        %3455 = vset.pattern.permute.xlu0 0
        %3456 = vperm.xlu0 %3455, %v3271
        %v3457 = vpop.permute.xlu0 %3456
        %3458 = vset.pattern.permute.xlu0 0
        %3459 = vperm.xlu0 %3458, %v3272
        %v3460 = vpop.permute.xlu0 %3459
        %3461 = vset.pattern.permute.xlu0 0
        %3462 = vperm.xlu0 %3461, %v3273
        %v3463 = vpop.permute.xlu0 %3462
        %3464 = vset.pattern.permute.xlu0 0
        %3465 = vperm.xlu0 %3464, %v3274
        %v3466 = vpop.permute.xlu0 %3465
        %vm3467 = vcmp.eq.s32.totalorder %v3209, %v3277
        %vm3468 = vcmp.eq.s32.totalorder %v3210, %v3277
        %vm3469 = vcmp.eq.s32.totalorder %v3209, %v3280
        %vm3470 = vcmp.eq.s32.totalorder %v3210, %v3280
        %vm3471 = vcmp.eq.s32.totalorder %v3209, %v3283
        %vm3472 = vcmp.eq.s32.totalorder %v3210, %v3283
        %vm3473 = vcmp.eq.s32.totalorder %v3209, %v3286
        %vm3474 = vcmp.eq.s32.totalorder %v3210, %v3286
        %vm3475 = vcmp.eq.s32.totalorder %v3209, %v3289
        %vm3476 = vcmp.eq.s32.totalorder %v3210, %v3289
        %vm3477 = vcmp.eq.s32.totalorder %v3209, %v3292
        %vm3478 = vcmp.eq.s32.totalorder %v3210, %v3292
        %vm3479 = vcmp.eq.s32.totalorder %v3209, %v3295
        %vm3480 = vcmp.eq.s32.totalorder %v3210, %v3295
        %vm3481 = vcmp.eq.s32.totalorder %v3209, %v3298
        %vm3482 = vcmp.eq.s32.totalorder %v3210, %v3298
        %vm3483 = vcmp.eq.s32.totalorder %v3209, %v3301
        %vm3484 = vcmp.eq.s32.totalorder %v3210, %v3301
        %vm3485 = vcmp.eq.s32.totalorder %v3209, %v3304
        %vm3486 = vcmp.eq.s32.totalorder %v3210, %v3304
        %vm3487 = vcmp.eq.s32.totalorder %v3209, %v3307
        %vm3488 = vcmp.eq.s32.totalorder %v3210, %v3307
        %vm3489 = vcmp.eq.s32.totalorder %v3209, %v3310
        %vm3490 = vcmp.eq.s32.totalorder %v3210, %v3310
        %vm3491 = vcmp.eq.s32.totalorder %v3209, %v3313
        %vm3492 = vcmp.eq.s32.totalorder %v3210, %v3313
        %vm3493 = vcmp.eq.s32.totalorder %v3209, %v3316
        %vm3494 = vcmp.eq.s32.totalorder %v3210, %v3316
        %vm3495 = vcmp.eq.s32.totalorder %v3209, %v3319
        %vm3496 = vcmp.eq.s32.totalorder %v3210, %v3319
        %vm3497 = vcmp.eq.s32.totalorder %v3209, %v3322
        %vm3498 = vcmp.eq.s32.totalorder %v3210, %v3322
        %vm3499 = vcmp.eq.s32.totalorder %v3209, %v3325
        %vm3500 = vcmp.eq.s32.totalorder %v3210, %v3325
        %vm3501 = vcmp.eq.s32.totalorder %v3209, %v3328
        %vm3502 = vcmp.eq.s32.totalorder %v3210, %v3328
        %vm3503 = vcmp.eq.s32.totalorder %v3209, %v3331
        %vm3504 = vcmp.eq.s32.totalorder %v3210, %v3331
        %vm3505 = vcmp.eq.s32.totalorder %v3209, %v3334
        %vm3506 = vcmp.eq.s32.totalorder %v3210, %v3334
        %vm3507 = vcmp.eq.s32.totalorder %v3209, %v3337
        %vm3508 = vcmp.eq.s32.totalorder %v3210, %v3337
        %vm3509 = vcmp.eq.s32.totalorder %v3209, %v3340
        %vm3510 = vcmp.eq.s32.totalorder %v3210, %v3340
        %vm3511 = vcmp.eq.s32.totalorder %v3209, %v3343
        %vm3512 = vcmp.eq.s32.totalorder %v3210, %v3343
        %vm3513 = vcmp.eq.s32.totalorder %v3209, %v3346
        %vm3514 = vcmp.eq.s32.totalorder %v3210, %v3346
        %vm3515 = vcmp.eq.s32.totalorder %v3209, %v3349
        %vm3516 = vcmp.eq.s32.totalorder %v3210, %v3349
        %vm3517 = vcmp.eq.s32.totalorder %v3209, %v3352
        %vm3518 = vcmp.eq.s32.totalorder %v3210, %v3352
        %vm3519 = vcmp.eq.s32.totalorder %v3209, %v3355
        %vm3520 = vcmp.eq.s32.totalorder %v3210, %v3355
        %vm3521 = vcmp.eq.s32.totalorder %v3209, %v3358
        %vm3522 = vcmp.eq.s32.totalorder %v3210, %v3358
        %vm3523 = vcmp.eq.s32.totalorder %v3209, %v3361
        %vm3524 = vcmp.eq.s32.totalorder %v3210, %v3361
        %vm3525 = vcmp.eq.s32.totalorder %v3209, %v3364
        %vm3526 = vcmp.eq.s32.totalorder %v3210, %v3364
        %vm3527 = vcmp.eq.s32.totalorder %v3209, %v3367
        %vm3528 = vcmp.eq.s32.totalorder %v3210, %v3367
        %vm3529 = vcmp.eq.s32.totalorder %v3209, %v3370
        %vm3530 = vcmp.eq.s32.totalorder %v3210, %v3370
        %vm3531 = vcmp.eq.s32.totalorder %v3209, %v3373
        %vm3532 = vcmp.eq.s32.totalorder %v3210, %v3373
        %vm3533 = vcmp.eq.s32.totalorder %v3209, %v3376
        %vm3534 = vcmp.eq.s32.totalorder %v3210, %v3376
        %vm3535 = vcmp.eq.s32.totalorder %v3209, %v3379
        %vm3536 = vcmp.eq.s32.totalorder %v3210, %v3379
        %vm3537 = vcmp.eq.s32.totalorder %v3209, %v3382
        %vm3538 = vcmp.eq.s32.totalorder %v3210, %v3382
        %vm3539 = vcmp.eq.s32.totalorder %v3209, %v3385
        %vm3540 = vcmp.eq.s32.totalorder %v3210, %v3385
        %vm3541 = vcmp.eq.s32.totalorder %v3209, %v3388
        %vm3542 = vcmp.eq.s32.totalorder %v3210, %v3388
        %vm3543 = vcmp.eq.s32.totalorder %v3209, %v3391
        %vm3544 = vcmp.eq.s32.totalorder %v3210, %v3391
        %vm3545 = vcmp.eq.s32.totalorder %v3209, %v3394
        %vm3546 = vcmp.eq.s32.totalorder %v3210, %v3394
        %vm3547 = vcmp.eq.s32.totalorder %v3209, %v3397
        %vm3548 = vcmp.eq.s32.totalorder %v3210, %v3397
        %vm3549 = vcmp.eq.s32.totalorder %v3209, %v3400
        %vm3550 = vcmp.eq.s32.totalorder %v3210, %v3400
        %vm3551 = vcmp.eq.s32.totalorder %v3209, %v3403
        %vm3552 = vcmp.eq.s32.totalorder %v3210, %v3403
        %vm3553 = vcmp.eq.s32.totalorder %v3209, %v3406
        %vm3554 = vcmp.eq.s32.totalorder %v3210, %v3406
        %vm3555 = vcmp.eq.s32.totalorder %v3209, %v3409
        %vm3556 = vcmp.eq.s32.totalorder %v3210, %v3409
        %vm3557 = vcmp.eq.s32.totalorder %v3209, %v3412
        %vm3558 = vcmp.eq.s32.totalorder %v3210, %v3412
        %vm3559 = vcmp.eq.s32.totalorder %v3209, %v3415
        %vm3560 = vcmp.eq.s32.totalorder %v3210, %v3415
        %vm3561 = vcmp.eq.s32.totalorder %v3209, %v3418
        %vm3562 = vcmp.eq.s32.totalorder %v3210, %v3418
        %vm3563 = vcmp.eq.s32.totalorder %v3209, %v3421
        %vm3564 = vcmp.eq.s32.totalorder %v3210, %v3421
        %vm3565 = vcmp.eq.s32.totalorder %v3209, %v3424
        %vm3566 = vcmp.eq.s32.totalorder %v3210, %v3424
        %vm3567 = vcmp.eq.s32.totalorder %v3209, %v3427
        %vm3568 = vcmp.eq.s32.totalorder %v3210, %v3427
        %vm3569 = vcmp.eq.s32.totalorder %v3209, %v3430
        %vm3570 = vcmp.eq.s32.totalorder %v3210, %v3430
        %vm3571 = vcmp.eq.s32.totalorder %v3209, %v3433
        %vm3572 = vcmp.eq.s32.totalorder %v3210, %v3433
        %vm3573 = vcmp.eq.s32.totalorder %v3209, %v3436
        %vm3574 = vcmp.eq.s32.totalorder %v3210, %v3436
        %vm3575 = vcmp.eq.s32.totalorder %v3209, %v3439
        %vm3576 = vcmp.eq.s32.totalorder %v3210, %v3439
        %vm3577 = vcmp.eq.s32.totalorder %v3209, %v3442
        %vm3578 = vcmp.eq.s32.totalorder %v3210, %v3442
        %vm3579 = vcmp.eq.s32.totalorder %v3209, %v3445
        %vm3580 = vcmp.eq.s32.totalorder %v3210, %v3445
        %vm3581 = vcmp.eq.s32.totalorder %v3209, %v3448
        %vm3582 = vcmp.eq.s32.totalorder %v3210, %v3448
        %vm3583 = vcmp.eq.s32.totalorder %v3209, %v3451
        %vm3584 = vcmp.eq.s32.totalorder %v3210, %v3451
        %vm3585 = vcmp.eq.s32.totalorder %v3209, %v3454
        %vm3586 = vcmp.eq.s32.totalorder %v3210, %v3454
        %vm3587 = vcmp.eq.s32.totalorder %v3209, %v3457
        %vm3588 = vcmp.eq.s32.totalorder %v3210, %v3457
        %vm3589 = vcmp.eq.s32.totalorder %v3209, %v3460
        %vm3590 = vcmp.eq.s32.totalorder %v3210, %v3460
        %vm3591 = vcmp.eq.s32.totalorder %v3209, %v3463
        %vm3592 = vcmp.eq.s32.totalorder %v3210, %v3463
        %vm3593 = vcmp.eq.s32.totalorder %v3209, %v3466
        %vm3594 = vcmp.eq.s32.totalorder %v3210, %v3466
        %v3595 = vsel %vm3467, 1, 0
        %v3596 = vsel %vm3468, 1, 0
        %v3597 = vsel %vm3469, 1, 0
        %v3598 = vsel %vm3470, 1, 0
        %v3599 = vsel %vm3471, 1, 0
        %v3600 = vsel %vm3472, 1, 0
        %v3601 = vsel %vm3473, 1, 0
        %v3602 = vsel %vm3474, 1, 0
        %v3603 = vsel %vm3475, 1, 0
        %v3604 = vsel %vm3476, 1, 0
        %v3605 = vsel %vm3477, 1, 0
        %v3606 = vsel %vm3478, 1, 0
        %v3607 = vsel %vm3479, 1, 0
        %v3608 = vsel %vm3480, 1, 0
        %v3609 = vsel %vm3481, 1, 0
        %v3610 = vsel %vm3482, 1, 0
        %v3611 = vsel %vm3483, 1, 0
        %v3612 = vsel %vm3484, 1, 0
        %v3613 = vsel %vm3485, 1, 0
        %v3614 = vsel %vm3486, 1, 0
        %v3615 = vsel %vm3487, 1, 0
        %v3616 = vsel %vm3488, 1, 0
        %v3617 = vsel %vm3489, 1, 0
        %v3618 = vsel %vm3490, 1, 0
        %v3619 = vsel %vm3491, 1, 0
        %v3620 = vsel %vm3492, 1, 0
        %v3621 = vsel %vm3493, 1, 0
        %v3622 = vsel %vm3494, 1, 0
        %v3623 = vsel %vm3495, 1, 0
        %v3624 = vsel %vm3496, 1, 0
        %v3625 = vsel %vm3497, 1, 0
        %v3626 = vsel %vm3498, 1, 0
        %v3627 = vsel %vm3499, 1, 0
        %v3628 = vsel %vm3500, 1, 0
        %v3629 = vsel %vm3501, 1, 0
        %v3630 = vsel %vm3502, 1, 0
        %v3631 = vsel %vm3503, 1, 0
        %v3632 = vsel %vm3504, 1, 0
        %v3633 = vsel %vm3505, 1, 0
        %v3634 = vsel %vm3506, 1, 0
        %v3635 = vsel %vm3507, 1, 0
        %v3636 = vsel %vm3508, 1, 0
        %v3637 = vsel %vm3509, 1, 0
        %v3638 = vsel %vm3510, 1, 0
        %v3639 = vsel %vm3511, 1, 0
        %v3640 = vsel %vm3512, 1, 0
        %v3641 = vsel %vm3513, 1, 0
        %v3642 = vsel %vm3514, 1, 0
        %v3643 = vsel %vm3515, 1, 0
        %v3644 = vsel %vm3516, 1, 0
        %v3645 = vsel %vm3517, 1, 0
        %v3646 = vsel %vm3518, 1, 0
        %v3647 = vsel %vm3519, 1, 0
        %v3648 = vsel %vm3520, 1, 0
        %v3649 = vsel %vm3521, 1, 0
        %v3650 = vsel %vm3522, 1, 0
        %v3651 = vsel %vm3523, 1, 0
        %v3652 = vsel %vm3524, 1, 0
        %v3653 = vsel %vm3525, 1, 0
        %v3654 = vsel %vm3526, 1, 0
        %v3655 = vsel %vm3527, 1, 0
        %v3656 = vsel %vm3528, 1, 0
        %v3657 = vsel %vm3529, 1, 0
        %v3658 = vsel %vm3530, 1, 0
        %v3659 = vsel %vm3531, 1, 0
        %v3660 = vsel %vm3532, 1, 0
        %v3661 = vsel %vm3533, 1, 0
        %v3662 = vsel %vm3534, 1, 0
        %v3663 = vsel %vm3535, 1, 0
        %v3664 = vsel %vm3536, 1, 0
        %v3665 = vsel %vm3537, 1, 0
        %v3666 = vsel %vm3538, 1, 0
        %v3667 = vsel %vm3539, 1, 0
        %v3668 = vsel %vm3540, 1, 0
        %v3669 = vsel %vm3541, 1, 0
        %v3670 = vsel %vm3542, 1, 0
        %v3671 = vsel %vm3543, 1, 0
        %v3672 = vsel %vm3544, 1, 0
        %v3673 = vsel %vm3545, 1, 0
        %v3674 = vsel %vm3546, 1, 0
        %v3675 = vsel %vm3547, 1, 0
        %v3676 = vsel %vm3548, 1, 0
        %v3677 = vsel %vm3549, 1, 0
        %v3678 = vsel %vm3550, 1, 0
        %v3679 = vsel %vm3551, 1, 0
        %v3680 = vsel %vm3552, 1, 0
        %v3681 = vsel %vm3553, 1, 0
        %v3682 = vsel %vm3554, 1, 0
        %v3683 = vsel %vm3555, 1, 0
        %v3684 = vsel %vm3556, 1, 0
        %v3685 = vsel %vm3557, 1, 0
        %v3686 = vsel %vm3558, 1, 0
        %v3687 = vsel %vm3559, 1, 0
        %v3688 = vsel %vm3560, 1, 0
        %v3689 = vsel %vm3561, 1, 0
        %v3690 = vsel %vm3562, 1, 0
        %v3691 = vsel %vm3563, 1, 0
        %v3692 = vsel %vm3564, 1, 0
        %v3693 = vsel %vm3565, 1, 0
        %v3694 = vsel %vm3566, 1, 0
        %v3695 = vsel %vm3567, 1, 0
        %v3696 = vsel %vm3568, 1, 0
        %v3697 = vsel %vm3569, 1, 0
        %v3698 = vsel %vm3570, 1, 0
        %v3699 = vsel %vm3571, 1, 0
        %v3700 = vsel %vm3572, 1, 0
        %v3701 = vsel %vm3573, 1, 0
        %v3702 = vsel %vm3574, 1, 0
        %v3703 = vsel %vm3575, 1, 0
        %v3704 = vsel %vm3576, 1, 0
        %v3705 = vsel %vm3577, 1, 0
        %v3706 = vsel %vm3578, 1, 0
        %v3707 = vsel %vm3579, 1, 0
        %v3708 = vsel %vm3580, 1, 0
        %v3709 = vsel %vm3581, 1, 0
        %v3710 = vsel %vm3582, 1, 0
        %v3711 = vsel %vm3583, 1, 0
        %v3712 = vsel %vm3584, 1, 0
        %v3713 = vsel %vm3585, 1, 0
        %v3714 = vsel %vm3586, 1, 0
        %v3715 = vsel %vm3587, 1, 0
        %v3716 = vsel %vm3588, 1, 0
        %v3717 = vsel %vm3589, 1, 0
        %v3718 = vsel %vm3590, 1, 0
        %v3719 = vsel %vm3591, 1, 0
        %v3720 = vsel %vm3592, 1, 0
        %v3721 = vsel %vm3593, 1, 0
        %v3722 = vsel %vm3594, 1, 0
        %v3723 = vcvt.s32.f32 %v3595
        %v3724 = vcvt.s32.f32 %v3596
        %v3725 = vcvt.s32.f32 %v3597
        %v3726 = vcvt.s32.f32 %v3598
        %v3727 = vcvt.s32.f32 %v3599
        %v3728 = vcvt.s32.f32 %v3600
        %v3729 = vcvt.s32.f32 %v3601
        %v3730 = vcvt.s32.f32 %v3602
        %v3731 = vcvt.s32.f32 %v3603
        %v3732 = vcvt.s32.f32 %v3604
        %v3733 = vcvt.s32.f32 %v3605
        %v3734 = vcvt.s32.f32 %v3606
        %v3735 = vcvt.s32.f32 %v3607
        %v3736 = vcvt.s32.f32 %v3608
        %v3737 = vcvt.s32.f32 %v3609
        %v3738 = vcvt.s32.f32 %v3610
        %v3739 = vcvt.s32.f32 %v3611
        %v3740 = vcvt.s32.f32 %v3612
        %v3741 = vcvt.s32.f32 %v3613
        %v3742 = vcvt.s32.f32 %v3614
        %v3743 = vcvt.s32.f32 %v3615
        %v3744 = vcvt.s32.f32 %v3616
        %v3745 = vcvt.s32.f32 %v3617
        %v3746 = vcvt.s32.f32 %v3618
        %v3747 = vcvt.s32.f32 %v3619
        %v3748 = vcvt.s32.f32 %v3620
        %v3749 = vcvt.s32.f32 %v3621
        %v3750 = vcvt.s32.f32 %v3622
        %v3751 = vcvt.s32.f32 %v3623
        %v3752 = vcvt.s32.f32 %v3624
        %v3753 = vcvt.s32.f32 %v3625
        %v3754 = vcvt.s32.f32 %v3626
        %v3755 = vcvt.s32.f32 %v3627
        %v3756 = vcvt.s32.f32 %v3628
        %v3757 = vcvt.s32.f32 %v3629
        %v3758 = vcvt.s32.f32 %v3630
        %v3759 = vcvt.s32.f32 %v3631
        %v3760 = vcvt.s32.f32 %v3632
        %v3761 = vcvt.s32.f32 %v3633
        %v3762 = vcvt.s32.f32 %v3634
        %v3763 = vcvt.s32.f32 %v3635
        %v3764 = vcvt.s32.f32 %v3636
        %v3765 = vcvt.s32.f32 %v3637
        %v3766 = vcvt.s32.f32 %v3638
        %v3767 = vcvt.s32.f32 %v3639
        %v3768 = vcvt.s32.f32 %v3640
        %v3769 = vcvt.s32.f32 %v3641
        %v3770 = vcvt.s32.f32 %v3642
        %v3771 = vcvt.s32.f32 %v3643
        %v3772 = vcvt.s32.f32 %v3644
        %v3773 = vcvt.s32.f32 %v3645
        %v3774 = vcvt.s32.f32 %v3646
        %v3775 = vcvt.s32.f32 %v3647
        %v3776 = vcvt.s32.f32 %v3648
        %v3777 = vcvt.s32.f32 %v3649
        %v3778 = vcvt.s32.f32 %v3650
        %v3779 = vcvt.s32.f32 %v3651
        %v3780 = vcvt.s32.f32 %v3652
        %v3781 = vcvt.s32.f32 %v3653
        %v3782 = vcvt.s32.f32 %v3654
        %v3783 = vcvt.s32.f32 %v3655
        %v3784 = vcvt.s32.f32 %v3656
        %v3785 = vcvt.s32.f32 %v3657
        %v3786 = vcvt.s32.f32 %v3658
        %v3787 = vcvt.s32.f32 %v3659
        %v3788 = vcvt.s32.f32 %v3660
        %v3789 = vcvt.s32.f32 %v3661
        %v3790 = vcvt.s32.f32 %v3662
        %v3791 = vcvt.s32.f32 %v3663
        %v3792 = vcvt.s32.f32 %v3664
        %v3793 = vcvt.s32.f32 %v3665
        %v3794 = vcvt.s32.f32 %v3666
        %v3795 = vcvt.s32.f32 %v3667
        %v3796 = vcvt.s32.f32 %v3668
        %v3797 = vcvt.s32.f32 %v3669
        %v3798 = vcvt.s32.f32 %v3670
        %v3799 = vcvt.s32.f32 %v3671
        %v3800 = vcvt.s32.f32 %v3672
        %v3801 = vcvt.s32.f32 %v3673
        %v3802 = vcvt.s32.f32 %v3674
        %v3803 = vcvt.s32.f32 %v3675
        %v3804 = vcvt.s32.f32 %v3676
        %v3805 = vcvt.s32.f32 %v3677
        %v3806 = vcvt.s32.f32 %v3678
        %v3807 = vcvt.s32.f32 %v3679
        %v3808 = vcvt.s32.f32 %v3680
        %v3809 = vcvt.s32.f32 %v3681
        %v3810 = vcvt.s32.f32 %v3682
        %v3811 = vcvt.s32.f32 %v3683
        %v3812 = vcvt.s32.f32 %v3684
        %v3813 = vcvt.s32.f32 %v3685
        %v3814 = vcvt.s32.f32 %v3686
        %v3815 = vcvt.s32.f32 %v3687
        %v3816 = vcvt.s32.f32 %v3688
        %v3817 = vcvt.s32.f32 %v3689
        %v3818 = vcvt.s32.f32 %v3690
        %v3819 = vcvt.s32.f32 %v3691
        %v3820 = vcvt.s32.f32 %v3692
        %v3821 = vcvt.s32.f32 %v3693
        %v3822 = vcvt.s32.f32 %v3694
        %v3823 = vcvt.s32.f32 %v3695
        %v3824 = vcvt.s32.f32 %v3696
        %v3825 = vcvt.s32.f32 %v3697
        %v3826 = vcvt.s32.f32 %v3698
        %v3827 = vcvt.s32.f32 %v3699
        %v3828 = vcvt.s32.f32 %v3700
        %v3829 = vcvt.s32.f32 %v3701
        %v3830 = vcvt.s32.f32 %v3702
        %v3831 = vcvt.s32.f32 %v3703
        %v3832 = vcvt.s32.f32 %v3704
        %v3833 = vcvt.s32.f32 %v3705
        %v3834 = vcvt.s32.f32 %v3706
        %v3835 = vcvt.s32.f32 %v3707
        %v3836 = vcvt.s32.f32 %v3708
        %v3837 = vcvt.s32.f32 %v3709
        %v3838 = vcvt.s32.f32 %v3710
        %v3839 = vcvt.s32.f32 %v3711
        %v3840 = vcvt.s32.f32 %v3712
        %v3841 = vcvt.s32.f32 %v3713
        %v3842 = vcvt.s32.f32 %v3714
        %v3843 = vcvt.s32.f32 %v3715
        %v3844 = vcvt.s32.f32 %v3716
        %v3845 = vcvt.s32.f32 %v3717
        %v3846 = vcvt.s32.f32 %v3718
        %v3847 = vcvt.s32.f32 %v3719
        %v3848 = vcvt.s32.f32 %v3720
        %v3849 = vcvt.s32.f32 %v3721
        %v3850 = vcvt.s32.f32 %v3722
        %v3851 = vpack.c.bf16 %v3725, %v3723
        %v3852 = vpack.c.bf16 %v3726, %v3724
        %v3853 = vpack.c.bf16 %v3729, %v3727
        %v3854 = vpack.c.bf16 %v3730, %v3728
        %v3855 = vpack.c.bf16 %v3733, %v3731
        %v3856 = vpack.c.bf16 %v3734, %v3732
        %v3857 = vpack.c.bf16 %v3737, %v3735
        %v3858 = vpack.c.bf16 %v3738, %v3736
        %v3859 = vpack.c.bf16 %v3741, %v3739
        %v3860 = vpack.c.bf16 %v3742, %v3740
        %v3861 = vpack.c.bf16 %v3745, %v3743
        %v3862 = vpack.c.bf16 %v3746, %v3744
        %v3863 = vpack.c.bf16 %v3749, %v3747
        %v3864 = vpack.c.bf16 %v3750, %v3748
        %v3865 = vpack.c.bf16 %v3753, %v3751
        %v3866 = vpack.c.bf16 %v3754, %v3752
        %v3867 = vpack.c.bf16 %v3757, %v3755
        %v3868 = vpack.c.bf16 %v3758, %v3756
        %v3869 = vpack.c.bf16 %v3761, %v3759
        %v3870 = vpack.c.bf16 %v3762, %v3760
        %v3871 = vpack.c.bf16 %v3765, %v3763
        %v3872 = vpack.c.bf16 %v3766, %v3764
        %v3873 = vpack.c.bf16 %v3769, %v3767
        %v3874 = vpack.c.bf16 %v3770, %v3768
        %v3875 = vpack.c.bf16 %v3773, %v3771
        %v3876 = vpack.c.bf16 %v3774, %v3772
        %v3877 = vpack.c.bf16 %v3777, %v3775
        %v3878 = vpack.c.bf16 %v3778, %v3776
        %v3879 = vpack.c.bf16 %v3781, %v3779
        %v3880 = vpack.c.bf16 %v3782, %v3780
        %v3881 = vpack.c.bf16 %v3785, %v3783
        %v3882 = vpack.c.bf16 %v3786, %v3784
        %v3883 = vpack.c.bf16 %v3789, %v3787
        %v3884 = vpack.c.bf16 %v3790, %v3788
        %v3885 = vpack.c.bf16 %v3793, %v3791
        %v3886 = vpack.c.bf16 %v3794, %v3792
        %v3887 = vpack.c.bf16 %v3797, %v3795
        %v3888 = vpack.c.bf16 %v3798, %v3796
        %v3889 = vpack.c.bf16 %v3801, %v3799
        %v3890 = vpack.c.bf16 %v3802, %v3800
        %v3891 = vpack.c.bf16 %v3805, %v3803
        %v3892 = vpack.c.bf16 %v3806, %v3804
        %v3893 = vpack.c.bf16 %v3809, %v3807
        %v3894 = vpack.c.bf16 %v3810, %v3808
        %v3895 = vpack.c.bf16 %v3813, %v3811
        %v3896 = vpack.c.bf16 %v3814, %v3812
        %v3897 = vpack.c.bf16 %v3817, %v3815
        %v3898 = vpack.c.bf16 %v3818, %v3816
        %v3899 = vpack.c.bf16 %v3821, %v3819
        %v3900 = vpack.c.bf16 %v3822, %v3820
        %v3901 = vpack.c.bf16 %v3825, %v3823
        %v3902 = vpack.c.bf16 %v3826, %v3824
        %v3903 = vpack.c.bf16 %v3829, %v3827
        %v3904 = vpack.c.bf16 %v3830, %v3828
        %v3905 = vpack.c.bf16 %v3833, %v3831
        %v3906 = vpack.c.bf16 %v3834, %v3832
        %v3907 = vpack.c.bf16 %v3837, %v3835
        %v3908 = vpack.c.bf16 %v3838, %v3836
        %v3909 = vpack.c.bf16 %v3841, %v3839
        %v3910 = vpack.c.bf16 %v3842, %v3840
        %v3911 = vpack.c.bf16 %v3845, %v3843
        %v3912 = vpack.c.bf16 %v3846, %v3844
        %v3913 = vpack.c.bf16 %v3849, %v3847
        %v3914 = vpack.c.bf16 %v3850, %v3848
        %v3915 = vpack.c.bf16 %v3145, %v3144
        %v3916 = vpack.c.bf16 %v3147, %v3146
        %v3917 = vpack.c.bf16 %v3149, %v3148
        %v3918 = vpack.c.bf16 %v3151, %v3150
        %v3919 = vpack.c.bf16 %v3153, %v3152
        %v3920 = vpack.c.bf16 %v3155, %v3154
        %v3921 = vpack.c.bf16 %v3157, %v3156
        %v3922 = vpack.c.bf16 %v3159, %v3158
        %v3923 = vpack.c.bf16 %v3161, %v3160
        %v3924 = vpack.c.bf16 %v3163, %v3162
        %v3925 = vpack.c.bf16 %v3165, %v3164
        %v3926 = vpack.c.bf16 %v3167, %v3166
        %v3927 = vpack.c.bf16 %v3169, %v3168
        %v3928 = vpack.c.bf16 %v3171, %v3170
        %v3929 = vpack.c.bf16 %v3173, %v3172
        %v3930 = vpack.c.bf16 %v3175, %v3174
        %v3931 = vpack.c.bf16 %v3177, %v3176
        %v3932 = vpack.c.bf16 %v3179, %v3178
        %v3933 = vpack.c.bf16 %v3181, %v3180
        %v3934 = vpack.c.bf16 %v3183, %v3182
        %v3935 = vpack.c.bf16 %v3185, %v3184
        %v3936 = vpack.c.bf16 %v3187, %v3186
        %v3937 = vpack.c.bf16 %v3189, %v3188
        %v3938 = vpack.c.bf16 %v3191, %v3190
        %v3939 = vpack.c.bf16 %v3193, %v3192
        %v3940 = vpack.c.bf16 %v3195, %v3194
        %v3941 = vpack.c.bf16 %v3197, %v3196
        %v3942 = vpack.c.bf16 %v3199, %v3198
        %v3943 = vpack.c.bf16 %v3201, %v3200
        %v3944 = vpack.c.bf16 %v3203, %v3202
        %v3945 = vpack.c.bf16 %v3205, %v3204
        %v3946 = vpack.c.bf16 %v3207, %v3206
        %3947 = vxpose.xlu0.c.b16.start [1/8] %v3851, 128
        %3948 = vxpose.xlu0.c.b16.cont [2/8] %v3853, 128
        %3949 = vxpose.xlu0.c.b16.cont [3/8] %v3855, 128
        %3950 = vxpose.xlu0.c.b16.cont [4/8] %v3857, 128
        %3951 = vxpose.xlu0.c.b16.cont [5/8] %v3859, 128
        %3952 = vxpose.xlu0.c.b16.cont [6/8] %v3861, 128
        %3953 = vxpose.xlu0.c.b16.cont [7/8] %v3863, 128
        %3954 = vxpose.xlu0.c.b16.end [8/8] %v3865, 128
        %v3955 = vpop.trf.xlu0
        %v3956 = vpop.trf.xlu0
        %v3957 = vpop.trf.xlu0
        %v3958 = vpop.trf.xlu0
        %v3959 = vpop.trf.xlu0
        %v3960 = vpop.trf.xlu0
        %v3961 = vpop.trf.xlu0
        %v3962 = vpop.trf.xlu0
        %3963 = vxpose.xlu0.c.b16.start [1/8] %v3852, 128
        %3964 = vxpose.xlu0.c.b16.cont [2/8] %v3854, 128
        %3965 = vxpose.xlu0.c.b16.cont [3/8] %v3856, 128
        %3966 = vxpose.xlu0.c.b16.cont [4/8] %v3858, 128
        %3967 = vxpose.xlu0.c.b16.cont [5/8] %v3860, 128
        %3968 = vxpose.xlu0.c.b16.cont [6/8] %v3862, 128
        %3969 = vxpose.xlu0.c.b16.cont [7/8] %v3864, 128
        %3970 = vxpose.xlu0.c.b16.end [8/8] %v3866, 128
        %v3971 = vpop.trf.xlu0
        %v3972 = vpop.trf.xlu0
        %v3973 = vpop.trf.xlu0
        %v3974 = vpop.trf.xlu0
        %v3975 = vpop.trf.xlu0
        %v3976 = vpop.trf.xlu0
        %v3977 = vpop.trf.xlu0
        %v3978 = vpop.trf.xlu0
        %3979 = vxpose.xlu0.c.b16.start [1/8] %v3867, 128
        %3980 = vxpose.xlu0.c.b16.cont [2/8] %v3869, 128
        %3981 = vxpose.xlu0.c.b16.cont [3/8] %v3871, 128
        %3982 = vxpose.xlu0.c.b16.cont [4/8] %v3873, 128
        %3983 = vxpose.xlu0.c.b16.cont [5/8] %v3875, 128
        %3984 = vxpose.xlu0.c.b16.cont [6/8] %v3877, 128
        %3985 = vxpose.xlu0.c.b16.cont [7/8] %v3879, 128
        %3986 = vxpose.xlu0.c.b16.end [8/8] %v3881, 128
        %v3987 = vpop.trf.xlu0
        %v3988 = vpop.trf.xlu0
        %v3989 = vpop.trf.xlu0
        %v3990 = vpop.trf.xlu0
        %v3991 = vpop.trf.xlu0
        %v3992 = vpop.trf.xlu0
        %v3993 = vpop.trf.xlu0
        %v3994 = vpop.trf.xlu0
        %3995 = vxpose.xlu0.c.b16.start [1/8] %v3868, 128
        %3996 = vxpose.xlu0.c.b16.cont [2/8] %v3870, 128
        %3997 = vxpose.xlu0.c.b16.cont [3/8] %v3872, 128
        %3998 = vxpose.xlu0.c.b16.cont [4/8] %v3874, 128
        %3999 = vxpose.xlu0.c.b16.cont [5/8] %v3876, 128
        %4000 = vxpose.xlu0.c.b16.cont [6/8] %v3878, 128
        %4001 = vxpose.xlu0.c.b16.cont [7/8] %v3880, 128
        %4002 = vxpose.xlu0.c.b16.end [8/8] %v3882, 128
        %v4003 = vpop.trf.xlu0
        %v4004 = vpop.trf.xlu0
        %v4005 = vpop.trf.xlu0
        %v4006 = vpop.trf.xlu0
        %v4007 = vpop.trf.xlu0
        %v4008 = vpop.trf.xlu0
        %v4009 = vpop.trf.xlu0
        %v4010 = vpop.trf.xlu0
        %4011 = vxpose.xlu0.c.b16.start [1/8] %v3883, 128
        %4012 = vxpose.xlu0.c.b16.cont [2/8] %v3885, 128
        %4013 = vxpose.xlu0.c.b16.cont [3/8] %v3887, 128
        %4014 = vxpose.xlu0.c.b16.cont [4/8] %v3889, 128
        %4015 = vxpose.xlu0.c.b16.cont [5/8] %v3891, 128
        %4016 = vxpose.xlu0.c.b16.cont [6/8] %v3893, 128
        %4017 = vxpose.xlu0.c.b16.cont [7/8] %v3895, 128
        %4018 = vxpose.xlu0.c.b16.end [8/8] %v3897, 128
        %v4019 = vpop.trf.xlu0
        %v4020 = vpop.trf.xlu0
        %v4021 = vpop.trf.xlu0
        %v4022 = vpop.trf.xlu0
        %v4023 = vpop.trf.xlu0
        %v4024 = vpop.trf.xlu0
        %v4025 = vpop.trf.xlu0
        %v4026 = vpop.trf.xlu0
        %4027 = vxpose.xlu0.c.b16.start [1/8] %v3884, 128
        %4028 = vxpose.xlu0.c.b16.cont [2/8] %v3886, 128
        %4029 = vxpose.xlu0.c.b16.cont [3/8] %v3888, 128
        %4030 = vxpose.xlu0.c.b16.cont [4/8] %v3890, 128
        %4031 = vxpose.xlu0.c.b16.cont [5/8] %v3892, 128
        %4032 = vxpose.xlu0.c.b16.cont [6/8] %v3894, 128
        %4033 = vxpose.xlu0.c.b16.cont [7/8] %v3896, 128
        %4034 = vxpose.xlu0.c.b16.end [8/8] %v3898, 128
        %v4035 = vpop.trf.xlu0
        %v4036 = vpop.trf.xlu0
        %v4037 = vpop.trf.xlu0
        %v4038 = vpop.trf.xlu0
        %v4039 = vpop.trf.xlu0
        %v4040 = vpop.trf.xlu0
        %v4041 = vpop.trf.xlu0
        %v4042 = vpop.trf.xlu0
        %4043 = vxpose.xlu0.c.b16.start [1/8] %v3899, 128
        %4044 = vxpose.xlu0.c.b16.cont [2/8] %v3901, 128
        %4045 = vxpose.xlu0.c.b16.cont [3/8] %v3903, 128
        %4046 = vxpose.xlu0.c.b16.cont [4/8] %v3905, 128
        %4047 = vxpose.xlu0.c.b16.cont [5/8] %v3907, 128
        %4048 = vxpose.xlu0.c.b16.cont [6/8] %v3909, 128
        %4049 = vxpose.xlu0.c.b16.cont [7/8] %v3911, 128
        %4050 = vxpose.xlu0.c.b16.end [8/8] %v3913, 128
        %v4051 = vpop.trf.xlu0
        %v4052 = vpop.trf.xlu0
        %v4053 = vpop.trf.xlu0
        %v4054 = vpop.trf.xlu0
        %v4055 = vpop.trf.xlu0
        %v4056 = vpop.trf.xlu0
        %v4057 = vpop.trf.xlu0
        %v4058 = vpop.trf.xlu0
        %4059 = vxpose.xlu0.c.b16.start [1/8] %v3900, 128
        %4060 = vxpose.xlu0.c.b16.cont [2/8] %v3902, 128
        %4061 = vxpose.xlu0.c.b16.cont [3/8] %v3904, 128
        %4062 = vxpose.xlu0.c.b16.cont [4/8] %v3906, 128
        %4063 = vxpose.xlu0.c.b16.cont [5/8] %v3908, 128
        %4064 = vxpose.xlu0.c.b16.cont [6/8] %v3910, 128
        %4065 = vxpose.xlu0.c.b16.cont [7/8] %v3912, 128
        %4066 = vxpose.xlu0.c.b16.end [8/8] %v3914, 128
        %v4067 = vpop.trf.xlu0
        %v4068 = vpop.trf.xlu0
        %v4069 = vpop.trf.xlu0
        %v4070 = vpop.trf.xlu0
        %v4071 = vpop.trf.xlu0
        %v4072 = vpop.trf.xlu0
        %v4073 = vpop.trf.xlu0
        %v4074 = vpop.trf.xlu0
        %4075 = vmatprep.subr.bf16.mxu0 0
        %4076 = vmatpush1.bf16.msra.mxu0 %v3915
        %4077 = vmatprep.subr.bf16.mxu0 0
        %4078 = vmatpush1.bf16.msra.mxu0 %v3916
        %4079 = vmatprep.subr.bf16.mxu0 0
        %4080 = vmatpush1.bf16.msra.mxu0 %v3917
        %4081 = vmatprep.subr.bf16.mxu0 0
        %4082 = vmatpush1.bf16.msra.mxu0 %v3918
        %4083 = vmatprep.subr.bf16.mxu0 0
        %4084 = vmatpush1.bf16.msra.mxu0 %v3919
        %4085 = vmatprep.subr.bf16.mxu0 0
        %4086 = vmatpush1.bf16.msra.mxu0 %v3920
        %4087 = vmatprep.subr.bf16.mxu0 0
        %4088 = vmatpush1.bf16.msra.mxu0 %v3921
        %4089 = vmatprep.subr.bf16.mxu0 0
        %4090 = vmatpush1.bf16.msra.mxu0 %v3922
        %4091 = vmatprep.subr.bf16.mxu0 0
        %4092 = vmatpush1.bf16.msra.mxu0 %v3923
        %4093 = vmatprep.subr.bf16.mxu0 0
        %4094 = vmatpush1.bf16.msra.mxu0 %v3924
        %4095 = vmatprep.subr.bf16.mxu0 0
        %4096 = vmatpush1.bf16.msra.mxu0 %v3925
        %4097 = vmatprep.subr.bf16.mxu0 0
        %4098 = vmatpush1.bf16.msra.mxu0 %v3926
        %4099 = vmatprep.subr.bf16.mxu0 0
        %4100 = vmatpush1.bf16.msra.mxu0 %v3927
        %4101 = vmatprep.subr.bf16.mxu0 0
        %4102 = vmatpush1.bf16.msra.mxu0 %v3928
        %4103 = vmatprep.subr.bf16.mxu0 0
        %4104 = vmatpush1.bf16.msra.mxu0 %v3929
        %4105 = vmatprep.subr.bf16.mxu0 0
        %4106 = vmatpush1.bf16.msra.mxu0 %v3930
        %4107 = vmatprep.mubr.bf16.mxu0 %v3987
        %4108 = vmatmul.mubr.bf16.gmra.mrb[0].mxu0 %v3955
        %v4109 = vpop.f32.mrb[0].mxu0
        %v4110 = vadd.f32 0.0, %v4109
        %v4111 = vpop.f32.mrb[0].mxu0
        %v4112 = vpop.f32.mrb[0].mxu0
        %v4113 = vadd.f32 0.0, %v4112
        %v4114 = vpop.f32.mrb[0].mxu0
        %4115 = vmatprep.mubr.bf16.mxu0 %v3988
        %4116 = vmatmul.mubr.bf16.gmra.mrb[0].mxu0 %v3956
        %v4117 = vpop.f32.mrb[0].mxu0
        %v4118 = vadd.f32 0.0, %v4117
        %v4119 = vpop.f32.mrb[0].mxu0
        %v4120 = vpop.f32.mrb[0].mxu0
        %v4121 = vadd.f32 0.0, %v4120
        %v4122 = vpop.f32.mrb[0].mxu0
        %4123 = vmatprep.mubr.bf16.mxu0 %v3989
        %4124 = vmatmul.mubr.bf16.gmra.mrb[0].mxu0 %v3957
        %v4125 = vpop.f32.mrb[0].mxu0
        %v4126 = vadd.f32 0.0, %v4125
        %v4127 = vpop.f32.mrb[0].mxu0
        %v4128 = vpop.f32.mrb[0].mxu0
        %v4129 = vadd.f32 0.0, %v4128
        %v4130 = vpop.f32.mrb[0].mxu0
        %4131 = vmatprep.mubr.bf16.mxu0 %v3990
        %4132 = vmatmul.mubr.bf16.gmra.mrb[0].mxu0 %v3958
        %v4133 = vpop.f32.mrb[0].mxu0
        %v4134 = vadd.f32 0.0, %v4133
        %v4135 = vpop.f32.mrb[0].mxu0
        %v4136 = vpop.f32.mrb[0].mxu0
        %v4137 = vadd.f32 0.0, %v4136
        %v4138 = vpop.f32.mrb[0].mxu0
        %4139 = vmatprep.mubr.bf16.mxu0 %v3991
        %4140 = vmatmul.mubr.bf16.gmra.mrb[0].mxu0 %v3959
        %v4141 = vpop.f32.mrb[0].mxu0
        %v4142 = vadd.f32 0.0, %v4141
        %v4143 = vpop.f32.mrb[0].mxu0
        %v4144 = vpop.f32.mrb[0].mxu0
        %v4145 = vadd.f32 0.0, %v4144
        %v4146 = vpop.f32.mrb[0].mxu0
        %4147 = vmatprep.mubr.bf16.mxu0 %v3992
        %4148 = vmatmul.mubr.bf16.gmra.mrb[0].mxu0 %v3960
        %v4149 = vpop.f32.mrb[0].mxu0
        %v4150 = vadd.f32 0.0, %v4149
        %v4151 = vpop.f32.mrb[0].mxu0
        %v4152 = vpop.f32.mrb[0].mxu0
        %v4153 = vadd.f32 0.0, %v4152
        %v4154 = vpop.f32.mrb[0].mxu0
        %4155 = vmatprep.mubr.bf16.mxu0 %v3993
        %4156 = vmatmul.mubr.bf16.gmra.mrb[0].mxu0 %v3961
        %v4157 = vpop.f32.mrb[0].mxu0
        %v4158 = vadd.f32 0.0, %v4157
        %v4159 = vpop.f32.mrb[0].mxu0
        %v4160 = vpop.f32.mrb[0].mxu0
        %v4161 = vadd.f32 0.0, %v4160
        %v4162 = vpop.f32.mrb[0].mxu0
        %4163 = vmatprep.mubr.bf16.mxu0 %v3994
        %4164 = vmatmul.mubr.bf16.gmra.mrb[0].mxu0 %v3962
        %v4165 = vpop.f32.mrb[0].mxu0
        %v4166 = vadd.f32 0.0, %v4165
        %v4167 = vpop.f32.mrb[0].mxu0
        %v4168 = vpop.f32.mrb[0].mxu0
        %v4169 = vadd.f32 0.0, %v4168
        %v4170 = vpop.f32.mrb[0].mxu0
        %4171 = vmatprep.mubr.bf16.mxu0 %v4003
        %4172 = vmatmul.mubr.bf16.gmra.mrb[0].mxu0 %v3971
        %v4173 = vpop.f32.mrb[0].mxu0
        %v4174 = vadd.f32 0.0, %v4173
        %v4175 = vpop.f32.mrb[0].mxu0
        %v4176 = vpop.f32.mrb[0].mxu0
        %v4177 = vadd.f32 0.0, %v4176
        %v4178 = vpop.f32.mrb[0].mxu0
        %4179 = vmatprep.mubr.bf16.mxu0 %v4004
        %4180 = vmatmul.mubr.bf16.gmra.mrb[0].mxu0 %v3972
        %v4181 = vpop.f32.mrb[0].mxu0
        %v4182 = vadd.f32 0.0, %v4181
        %v4183 = vpop.f32.mrb[0].mxu0
        %v4184 = vpop.f32.mrb[0].mxu0
        %v4185 = vadd.f32 0.0, %v4184
        %v4186 = vpop.f32.mrb[0].mxu0
        %4187 = vmatprep.mubr.bf16.mxu0 %v4005
        %4188 = vmatmul.mubr.bf16.gmra.mrb[0].mxu0 %v3973
        %v4189 = vpop.f32.mrb[0].mxu0
        %v4190 = vadd.f32 0.0, %v4189
        %v4191 = vpop.f32.mrb[0].mxu0
        %v4192 = vpop.f32.mrb[0].mxu0
        %v4193 = vadd.f32 0.0, %v4192
        %v4194 = vpop.f32.mrb[0].mxu0
        %4195 = vmatprep.mubr.bf16.mxu0 %v4006
        %4196 = vmatmul.mubr.bf16.gmra.mrb[0].mxu0 %v3974
        %v4197 = vpop.f32.mrb[0].mxu0
        %v4198 = vadd.f32 0.0, %v4197
        %v4199 = vpop.f32.mrb[0].mxu0
        %v4200 = vpop.f32.mrb[0].mxu0
        %v4201 = vadd.f32 0.0, %v4200
        %v4202 = vpop.f32.mrb[0].mxu0
        %4203 = vmatprep.mubr.bf16.mxu0 %v4007
        %4204 = vmatmul.mubr.bf16.gmra.mrb[0].mxu0 %v3975
        %v4205 = vpop.f32.mrb[0].mxu0
        %v4206 = vadd.f32 0.0, %v4205
        %v4207 = vpop.f32.mrb[0].mxu0
        %v4208 = vpop.f32.mrb[0].mxu0
        %v4209 = vadd.f32 0.0, %v4208
        %v4210 = vpop.f32.mrb[0].mxu0
        %4211 = vmatprep.mubr.bf16.mxu0 %v4008
        %4212 = vmatmul.mubr.bf16.gmra.mrb[0].mxu0 %v3976
        %v4213 = vpop.f32.mrb[0].mxu0
        %v4214 = vadd.f32 0.0, %v4213
        %v4215 = vpop.f32.mrb[0].mxu0
        %v4216 = vpop.f32.mrb[0].mxu0
        %v4217 = vadd.f32 0.0, %v4216
        %v4218 = vpop.f32.mrb[0].mxu0
        %4219 = vmatprep.mubr.bf16.mxu0 %v4009
        %4220 = vmatmul.mubr.bf16.gmra.mrb[0].mxu0 %v3977
        %v4221 = vpop.f32.mrb[0].mxu0
        %v4222 = vadd.f32 0.0, %v4221
        %v4223 = vpop.f32.mrb[0].mxu0
        %v4224 = vpop.f32.mrb[0].mxu0
        %v4225 = vadd.f32 0.0, %v4224
        %v4226 = vpop.f32.mrb[0].mxu0
        %4227 = vmatprep.mubr.bf16.mxu0 %v4010
        %4228 = vmatmul.mubr.bf16.gmra.mrb[0].mxu0 %v3978
        %v4229 = vpop.f32.mrb[0].mxu0
        %v4230 = vadd.f32 0.0, %v4229
        %v4231 = vpop.f32.mrb[0].mxu0
        %v4232 = vpop.f32.mrb[0].mxu0
        %v4233 = vadd.f32 0.0, %v4232
        %v4234 = vpop.f32.mrb[0].mxu0
        %4235 = vdwg.mxu0
        %4236 = vmatprep.subr.bf16.mxu0 0
        %4237 = vmatpush1.bf16.msra.mxu0 %v3931
        %4238 = vmatprep.subr.bf16.mxu0 0
        %4239 = vmatpush1.bf16.msra.mxu0 %v3932
        %4240 = vmatprep.subr.bf16.mxu0 0
        %4241 = vmatpush1.bf16.msra.mxu0 %v3933
        %4242 = vmatprep.subr.bf16.mxu0 0
        %4243 = vmatpush1.bf16.msra.mxu0 %v3934
        %4244 = vmatprep.subr.bf16.mxu0 0
        %4245 = vmatpush1.bf16.msra.mxu0 %v3935
        %4246 = vmatprep.subr.bf16.mxu0 0
        %4247 = vmatpush1.bf16.msra.mxu0 %v3936
        %4248 = vmatprep.subr.bf16.mxu0 0
        %4249 = vmatpush1.bf16.msra.mxu0 %v3937
        %4250 = vmatprep.subr.bf16.mxu0 0
        %4251 = vmatpush1.bf16.msra.mxu0 %v3938
        %4252 = vmatprep.subr.bf16.mxu0 0
        %4253 = vmatpush1.bf16.msra.mxu0 %v3939
        %4254 = vmatprep.subr.bf16.mxu0 0
        %4255 = vmatpush1.bf16.msra.mxu0 %v3940
        %4256 = vmatprep.subr.bf16.mxu0 0
        %4257 = vmatpush1.bf16.msra.mxu0 %v3941
        %4258 = vmatprep.subr.bf16.mxu0 0
        %4259 = vmatpush1.bf16.msra.mxu0 %v3942
        %4260 = vmatprep.subr.bf16.mxu0 0
        %4261 = vmatpush1.bf16.msra.mxu0 %v3943
        %4262 = vmatprep.subr.bf16.mxu0 0
        %4263 = vmatpush1.bf16.msra.mxu0 %v3944
        %4264 = vmatprep.subr.bf16.mxu0 0
        %4265 = vmatpush1.bf16.msra.mxu0 %v3945
        %4266 = vmatprep.subr.bf16.mxu0 0
        %4267 = vmatpush1.bf16.msra.mxu0 %v3946
        %4268 = vmatprep.mubr.bf16.mxu0 %v4051
        %4269 = vmatmul.mubr.bf16.gmra.mrb[0].mxu0 %v4019
        %v4270 = vpop.f32.mrb[0].mxu0
        %v4271 = vadd.f32 %v4110, %v4270
        %v4272 = vpop.f32.mrb[0].mxu0
        %v4273 = vpop.f32.mrb[0].mxu0
        %v4274 = vadd.f32 %v4113, %v4273
        %v4275 = vpop.f32.mrb[0].mxu0
        %4276 = vmatprep.mubr.bf16.mxu0 %v4052
        %4277 = vmatmul.mubr.bf16.gmra.mrb[0].mxu0 %v4020
        %v4278 = vpop.f32.mrb[0].mxu0
        %v4279 = vadd.f32 %v4118, %v4278
        %v4280 = vpop.f32.mrb[0].mxu0
        %v4281 = vpop.f32.mrb[0].mxu0
        %v4282 = vadd.f32 %v4121, %v4281
        %v4283 = vpop.f32.mrb[0].mxu0
        %4284 = vmatprep.mubr.bf16.mxu0 %v4053
        %4285 = vmatmul.mubr.bf16.gmra.mrb[0].mxu0 %v4021
        %v4286 = vpop.f32.mrb[0].mxu0
        %v4287 = vadd.f32 %v4126, %v4286
        %v4288 = vpop.f32.mrb[0].mxu0
        %v4289 = vpop.f32.mrb[0].mxu0
        %v4290 = vadd.f32 %v4129, %v4289
        %v4291 = vpop.f32.mrb[0].mxu0
        %4292 = vmatprep.mubr.bf16.mxu0 %v4054
        %4293 = vmatmul.mubr.bf16.gmra.mrb[0].mxu0 %v4022
        %v4294 = vpop.f32.mrb[0].mxu0
        %v4295 = vadd.f32 %v4134, %v4294
        %v4296 = vpop.f32.mrb[0].mxu0
        %v4297 = vpop.f32.mrb[0].mxu0
        %v4298 = vadd.f32 %v4137, %v4297
        %v4299 = vpop.f32.mrb[0].mxu0
        %4300 = vmatprep.mubr.bf16.mxu0 %v4055
        %4301 = vmatmul.mubr.bf16.gmra.mrb[0].mxu0 %v4023
        %v4302 = vpop.f32.mrb[0].mxu0
        %v4303 = vadd.f32 %v4142, %v4302
        %v4304 = vpop.f32.mrb[0].mxu0
        %v4305 = vpop.f32.mrb[0].mxu0
        %v4306 = vadd.f32 %v4145, %v4305
        %v4307 = vpop.f32.mrb[0].mxu0
        %4308 = vmatprep.mubr.bf16.mxu0 %v4056
        %4309 = vmatmul.mubr.bf16.gmra.mrb[0].mxu0 %v4024
        %v4310 = vpop.f32.mrb[0].mxu0
        %v4311 = vadd.f32 %v4150, %v4310
        %v4312 = vpop.f32.mrb[0].mxu0
        %v4313 = vpop.f32.mrb[0].mxu0
        %v4314 = vadd.f32 %v4153, %v4313
        %v4315 = vpop.f32.mrb[0].mxu0
        %4316 = vmatprep.mubr.bf16.mxu0 %v4057
        %4317 = vmatmul.mubr.bf16.gmra.mrb[0].mxu0 %v4025
        %v4318 = vpop.f32.mrb[0].mxu0
        %v4319 = vadd.f32 %v4158, %v4318
        %v4320 = vpop.f32.mrb[0].mxu0
        %v4321 = vpop.f32.mrb[0].mxu0
        %v4322 = vadd.f32 %v4161, %v4321
        %v4323 = vpop.f32.mrb[0].mxu0
        %4324 = vmatprep.mubr.bf16.mxu0 %v4058
        %4325 = vmatmul.mubr.bf16.gmra.mrb[0].mxu0 %v4026
        %v4326 = vpop.f32.mrb[0].mxu0
        %v4327 = vadd.f32 %v4166, %v4326
        %v4328 = vpop.f32.mrb[0].mxu0
        %v4329 = vpop.f32.mrb[0].mxu0
        %v4330 = vadd.f32 %v4169, %v4329
        %v4331 = vpop.f32.mrb[0].mxu0
        %4332 = vmatprep.mubr.bf16.mxu0 %v4067
        %4333 = vmatmul.mubr.bf16.gmra.mrb[0].mxu0 %v4035
        %v4334 = vpop.f32.mrb[0].mxu0
        %v4335 = vadd.f32 %v4174, %v4334
        %v4336 = vpop.f32.mrb[0].mxu0
        %v4337 = vpop.f32.mrb[0].mxu0
        %v4338 = vadd.f32 %v4177, %v4337
        %v4339 = vpop.f32.mrb[0].mxu0
        %4340 = vmatprep.mubr.bf16.mxu0 %v4068
        %4341 = vmatmul.mubr.bf16.gmra.mrb[0].mxu0 %v4036
        %v4342 = vpop.f32.mrb[0].mxu0
        %v4343 = vadd.f32 %v4182, %v4342
        %v4344 = vpop.f32.mrb[0].mxu0
        %v4345 = vpop.f32.mrb[0].mxu0
        %v4346 = vadd.f32 %v4185, %v4345
        %v4347 = vpop.f32.mrb[0].mxu0
        %4348 = vmatprep.mubr.bf16.mxu0 %v4069
        %4349 = vmatmul.mubr.bf16.gmra.mrb[0].mxu0 %v4037
        %v4350 = vpop.f32.mrb[0].mxu0
        %v4351 = vadd.f32 %v4190, %v4350
        %v4352 = vpop.f32.mrb[0].mxu0
        %v4353 = vpop.f32.mrb[0].mxu0
        %v4354 = vadd.f32 %v4193, %v4353
        %v4355 = vpop.f32.mrb[0].mxu0
        %4356 = vmatprep.mubr.bf16.mxu0 %v4070
        %4357 = vmatmul.mubr.bf16.gmra.mrb[0].mxu0 %v4038
        %v4358 = vpop.f32.mrb[0].mxu0
        %v4359 = vadd.f32 %v4198, %v4358
        %v4360 = vpop.f32.mrb[0].mxu0
        %v4361 = vpop.f32.mrb[0].mxu0
        %v4362 = vadd.f32 %v4201, %v4361
        %v4363 = vpop.f32.mrb[0].mxu0
        %4364 = vmatprep.mubr.bf16.mxu0 %v4071
        %4365 = vmatmul.mubr.bf16.gmra.mrb[0].mxu0 %v4039
        %v4366 = vpop.f32.mrb[0].mxu0
        %v4367 = vadd.f32 %v4206, %v4366
        %v4368 = vpop.f32.mrb[0].mxu0
        %v4369 = vpop.f32.mrb[0].mxu0
        %v4370 = vadd.f32 %v4209, %v4369
        %v4371 = vpop.f32.mrb[0].mxu0
        %4372 = vmatprep.mubr.bf16.mxu0 %v4072
        %4373 = vmatmul.mubr.bf16.gmra.mrb[0].mxu0 %v4040
        %v4374 = vpop.f32.mrb[0].mxu0
        %v4375 = vadd.f32 %v4214, %v4374
        %v4376 = vpop.f32.mrb[0].mxu0
        %v4377 = vpop.f32.mrb[0].mxu0
        %v4378 = vadd.f32 %v4217, %v4377
        %v4379 = vpop.f32.mrb[0].mxu0
        %4380 = vmatprep.mubr.bf16.mxu0 %v4073
        %4381 = vmatmul.mubr.bf16.gmra.mrb[0].mxu0 %v4041
        %v4382 = vpop.f32.mrb[0].mxu0
        %v4383 = vadd.f32 %v4222, %v4382
        %v4384 = vpop.f32.mrb[0].mxu0
        %v4385 = vpop.f32.mrb[0].mxu0
        %v4386 = vadd.f32 %v4225, %v4385
        %v4387 = vpop.f32.mrb[0].mxu0
        %4388 = vmatprep.mubr.bf16.mxu0 %v4074
        %4389 = vmatmul.mubr.bf16.gmra.mrb[0].mxu0 %v4042
        %v4390 = vpop.f32.mrb[0].mxu0
        %v4391 = vadd.f32 %v4230, %v4390
        %v4392 = vpop.f32.mrb[0].mxu0
        %v4393 = vpop.f32.mrb[0].mxu0
        %v4394 = vadd.f32 %v4233, %v4393
        %v4395 = vpop.f32.mrb[0].mxu0
        %4396 = vdwg.mxu0
        %v4397 = vld [vmem:[#allocation2] sm:$0xff]
        %v4398 = vld [vmem:[#allocation2 + $0x8] sm:$0xff]
        %v4399 = vld [vmem:[#allocation2 + $0x10] sm:$0xff]
        %v4400 = vld [vmem:[#allocation2 + $0x18] sm:$0xff]
        %v4401 = vld [vmem:[#allocation2 + $0x20] sm:$0xff]
        %v4402 = vld [vmem:[#allocation2 + $0x28] sm:$0xff]
        %v4403 = vld [vmem:[#allocation2 + $0x30] sm:$0xff]
        %v4404 = vld [vmem:[#allocation2 + $0x38] sm:$0xff]
        %v4405 = vld [vmem:[#allocation2 + $0x40] sm:$0xff]
        %v4406 = vld [vmem:[#allocation2 + $0x48] sm:$0xff]
        %v4407 = vld [vmem:[#allocation2 + $0x50] sm:$0xff]
        %v4408 = vld [vmem:[#allocation2 + $0x58] sm:$0xff]
        %v4409 = vld [vmem:[#allocation2 + $0x60] sm:$0xff]
        %v4410 = vld [vmem:[#allocation2 + $0x68] sm:$0xff]
        %v4411 = vld [vmem:[#allocation2 + $0x70] sm:$0xff]
        %v4412 = vld [vmem:[#allocation2 + $0x78] sm:$0xff]
        %v4413 = vld [vmem:[#allocation2 + $0x80] sm:$0xff]
        %v4414 = vld [vmem:[#allocation2 + $0x88] sm:$0xff]
        %v4415 = vld [vmem:[#allocation2 + $0x90] sm:$0xff]
        %v4416 = vld [vmem:[#allocation2 + $0x98] sm:$0xff]
        %v4417 = vld [vmem:[#allocation2 + $0xa0] sm:$0xff]
        %v4418 = vld [vmem:[#allocation2 + $0xa8] sm:$0xff]
        %v4419 = vld [vmem:[#allocation2 + $0xb0] sm:$0xff]
        %v4420 = vld [vmem:[#allocation2 + $0xb8] sm:$0xff]
        %v4421 = vld [vmem:[#allocation2 + $0xc0] sm:$0xff]
        %v4422 = vld [vmem:[#allocation2 + $0xc8] sm:$0xff]
        %v4423 = vld [vmem:[#allocation2 + $0xd0] sm:$0xff]
        %v4424 = vld [vmem:[#allocation2 + $0xd8] sm:$0xff]
        %v4425 = vld [vmem:[#allocation2 + $0xe0] sm:$0xff]
        %v4426 = vld [vmem:[#allocation2 + $0xe8] sm:$0xff]
        %v4427 = vld [vmem:[#allocation2 + $0xf0] sm:$0xff]
        %v4428 = vld [vmem:[#allocation2 + $0xf8] sm:$0xff]
        %v4429 = vadd.f32 %v4397, %v4271
        %v4430 = vadd.f32 %v4398, %v4274
        %v4431 = vadd.f32 %v4399, %v4279
        %v4432 = vadd.f32 %v4400, %v4282
        %v4433 = vadd.f32 %v4401, %v4287
        %v4434 = vadd.f32 %v4402, %v4290
        %v4435 = vadd.f32 %v4403, %v4295
        %v4436 = vadd.f32 %v4404, %v4298
        %v4437 = vadd.f32 %v4405, %v4303
        %v4438 = vadd.f32 %v4406, %v4306
        %v4439 = vadd.f32 %v4407, %v4311
        %v4440 = vadd.f32 %v4408, %v4314
        %v4441 = vadd.f32 %v4409, %v4319
        %v4442 = vadd.f32 %v4410, %v4322
        %v4443 = vadd.f32 %v4411, %v4327
        %v4444 = vadd.f32 %v4412, %v4330
        %v4445 = vadd.f32 %v4413, %v4335
        %v4446 = vadd.f32 %v4414, %v4338
        %v4447 = vadd.f32 %v4415, %v4343
        %v4448 = vadd.f32 %v4416, %v4346
        %v4449 = vadd.f32 %v4417, %v4351
        %v4450 = vadd.f32 %v4418, %v4354
        %v4451 = vadd.f32 %v4419, %v4359
        %v4452 = vadd.f32 %v4420, %v4362
        %v4453 = vadd.f32 %v4421, %v4367
        %v4454 = vadd.f32 %v4422, %v4370
        %v4455 = vadd.f32 %v4423, %v4375
        %v4456 = vadd.f32 %v4424, %v4378
        %v4457 = vadd.f32 %v4425, %v4383
        %v4458 = vadd.f32 %v4426, %v4386
        %v4459 = vadd.f32 %v4427, %v4391
        %v4460 = vadd.f32 %v4428, %v4394
        %4461 = vst.msk [vmem:[#allocation2] sm:$0xff] %vm1663, %v4429
        %4462 = vst.msk [vmem:[#allocation2 + $0x8] sm:$0xff] %vm1663, %v4430
        %4463 = vst.msk [vmem:[#allocation2 + $0x10] sm:$0xff] %vm1663, %v4431
        %4464 = vst.msk [vmem:[#allocation2 + $0x18] sm:$0xff] %vm1663, %v4432
        %4465 = vst.msk [vmem:[#allocation2 + $0x20] sm:$0xff] %vm1663, %v4433
        %4466 = vst.msk [vmem:[#allocation2 + $0x28] sm:$0xff] %vm1663, %v4434
        %4467 = vst.msk [vmem:[#allocation2 + $0x30] sm:$0xff] %vm1663, %v4435
        %4468 = vst.msk [vmem:[#allocation2 + $0x38] sm:$0xff] %vm1663, %v4436
        %4469 = vst.msk [vmem:[#allocation2 + $0x40] sm:$0xff] %vm1663, %v4437
        %4470 = vst.msk [vmem:[#allocation2 + $0x48] sm:$0xff] %vm1663, %v4438
        %4471 = vst.msk [vmem:[#allocation2 + $0x50] sm:$0xff] %vm1663, %v4439
        %4472 = vst.msk [vmem:[#allocation2 + $0x58] sm:$0xff] %vm1663, %v4440
        %4473 = vst.msk [vmem:[#allocation2 + $0x60] sm:$0xff] %vm1663, %v4441
        %4474 = vst.msk [vmem:[#allocation2 + $0x68] sm:$0xff] %vm1663, %v4442
        %4475 = vst.msk [vmem:[#allocation2 + $0x70] sm:$0xff] %vm1663, %v4443
        %4476 = vst.msk [vmem:[#allocation2 + $0x78] sm:$0xff] %vm1663, %v4444
        %4477 = vst.msk [vmem:[#allocation2 + $0x80] sm:$0xff] %vm1663, %v4445
        %4478 = vst.msk [vmem:[#allocation2 + $0x88] sm:$0xff] %vm1663, %v4446
        %4479 = vst.msk [vmem:[#allocation2 + $0x90] sm:$0xff] %vm1663, %v4447
        %4480 = vst.msk [vmem:[#allocation2 + $0x98] sm:$0xff] %vm1663, %v4448
        %4481 = vst.msk [vmem:[#allocation2 + $0xa0] sm:$0xff] %vm1663, %v4449
        %4482 = vst.msk [vmem:[#allocation2 + $0xa8] sm:$0xff] %vm1663, %v4450
        %4483 = vst.msk [vmem:[#allocation2 + $0xb0] sm:$0xff] %vm1663, %v4451
        %4484 = vst.msk [vmem:[#allocation2 + $0xb8] sm:$0xff] %vm1663, %v4452
        %4485 = vst.msk [vmem:[#allocation2 + $0xc0] sm:$0xff] %vm1663, %v4453
        %4486 = vst.msk [vmem:[#allocation2 + $0xc8] sm:$0xff] %vm1663, %v4454
        %4487 = vst.msk [vmem:[#allocation2 + $0xd0] sm:$0xff] %vm1663, %v4455
        %4488 = vst.msk [vmem:[#allocation2 + $0xd8] sm:$0xff] %vm1663, %v4456
        %4489 = vst.msk [vmem:[#allocation2 + $0xe0] sm:$0xff] %vm1663, %v4457
        %4490 = vst.msk [vmem:[#allocation2 + $0xe8] sm:$0xff] %vm1663, %v4458
        %4491 = vst.msk [vmem:[#allocation2 + $0xf0] sm:$0xff] %vm1663, %v4459
        %4492 = vst.msk [vmem:[#allocation2 + $0xf8] sm:$0xff] %vm1663, %v4460
      $region80: #{tpu_custom_call.1} parent=67 // pred_fallthru
        _
      %p4493 = scmp.eq.s32.totalorder %s28, 7
      %p4494 = pnand %p2190, %p4493
      %p4495 = pneg %p4494
      // Predicated region
      $region81: #{tpu_custom_call.1} parent=67 // pred_check
        _
      $region82: #{tpu_custom_call.1} parent=67 // pred_check_branch
        %4497 = sbr.rel (%p4494) target = $region84
      $region83: #{tpu_custom_call.1} parent=67 // pred_region
        %v4498 = vld [vmem:[#allocation2] sm:$0xff]
        %v4499 = vld [vmem:[#allocation2 + $0x8] sm:$0xff]
        %v4500 = vld [vmem:[#allocation2 + $0x10] sm:$0xff]
        %v4501 = vld [vmem:[#allocation2 + $0x18] sm:$0xff]
        %v4502 = vld [vmem:[#allocation2 + $0x20] sm:$0xff]
        %v4503 = vld [vmem:[#allocation2 + $0x28] sm:$0xff]
        %v4504 = vld [vmem:[#allocation2 + $0x30] sm:$0xff]
        %v4505 = vld [vmem:[#allocation2 + $0x38] sm:$0xff]
        %v4506 = vld [vmem:[#allocation2 + $0x40] sm:$0xff]
        %v4507 = vld [vmem:[#allocation2 + $0x48] sm:$0xff]
        %v4508 = vld [vmem:[#allocation2 + $0x50] sm:$0xff]
        %v4509 = vld [vmem:[#allocation2 + $0x58] sm:$0xff]
        %v4510 = vld [vmem:[#allocation2 + $0x60] sm:$0xff]
        %v4511 = vld [vmem:[#allocation2 + $0x68] sm:$0xff]
        %v4512 = vld [vmem:[#allocation2 + $0x70] sm:$0xff]
        %v4513 = vld [vmem:[#allocation2 + $0x78] sm:$0xff]
        %v4514 = vld [vmem:[#allocation2 + $0x80] sm:$0xff]
        %v4515 = vld [vmem:[#allocation2 + $0x88] sm:$0xff]
        %v4516 = vld [vmem:[#allocation2 + $0x90] sm:$0xff]
        %v4517 = vld [vmem:[#allocation2 + $0x98] sm:$0xff]
        %v4518 = vld [vmem:[#allocation2 + $0xa0] sm:$0xff]
        %v4519 = vld [vmem:[#allocation2 + $0xa8] sm:$0xff]
        %v4520 = vld [vmem:[#allocation2 + $0xb0] sm:$0xff]
        %v4521 = vld [vmem:[#allocation2 + $0xb8] sm:$0xff]
        %v4522 = vld [vmem:[#allocation2 + $0xc0] sm:$0xff]
        %v4523 = vld [vmem:[#allocation2 + $0xc8] sm:$0xff]
        %v4524 = vld [vmem:[#allocation2 + $0xd0] sm:$0xff]
        %v4525 = vld [vmem:[#allocation2 + $0xd8] sm:$0xff]
        %v4526 = vld [vmem:[#allocation2 + $0xe0] sm:$0xff]
        %v4527 = vld [vmem:[#allocation2 + $0xe8] sm:$0xff]
        %v4528 = vld [vmem:[#allocation2 + $0xf0] sm:$0xff]
        %v4529 = vld [vmem:[#allocation2 + $0xf8] sm:$0xff]
        %v4530 = vmax.f32 %v4498, 1e-30
        %v4531 = vmax.f32 %v4499, 1e-30
        %v4532 = vmax.f32 %v4500, 1e-30
        %v4533 = vmax.f32 %v4501, 1e-30
        %v4534 = vmax.f32 %v4502, 1e-30
        %v4535 = vmax.f32 %v4503, 1e-30
        %v4536 = vmax.f32 %v4504, 1e-30
        %v4537 = vmax.f32 %v4505, 1e-30
        %v4538 = vmax.f32 %v4506, 1e-30
        %v4539 = vmax.f32 %v4507, 1e-30
        %v4540 = vmax.f32 %v4508, 1e-30
        %v4541 = vmax.f32 %v4509, 1e-30
        %v4542 = vmax.f32 %v4510, 1e-30
        %v4543 = vmax.f32 %v4511, 1e-30
        %v4544 = vmax.f32 %v4512, 1e-30
        %v4545 = vmax.f32 %v4513, 1e-30
        %v4546 = vmax.f32 %v4514, 1e-30
        %v4547 = vmax.f32 %v4515, 1e-30
        %v4548 = vmax.f32 %v4516, 1e-30
        %v4549 = vmax.f32 %v4517, 1e-30
        %v4550 = vmax.f32 %v4518, 1e-30
        %v4551 = vmax.f32 %v4519, 1e-30
        %v4552 = vmax.f32 %v4520, 1e-30
        %v4553 = vmax.f32 %v4521, 1e-30
        %v4554 = vmax.f32 %v4522, 1e-30
        %v4555 = vmax.f32 %v4523, 1e-30
        %v4556 = vmax.f32 %v4524, 1e-30
        %v4557 = vmax.f32 %v4525, 1e-30
        %v4558 = vmax.f32 %v4526, 1e-30
        %v4559 = vmax.f32 %v4527, 1e-30
        %v4560 = vmax.f32 %v4528, 1e-30
        %v4561 = vmax.f32 %v4529, 1e-30
        %v4562 = vrcp.pop %v4530
        %v4563 = vrcp.pop %v4531
        %v4564 = vrcp.pop %v4532
        %v4565 = vrcp.pop %v4533
        %v4566 = vrcp.pop %v4534
        %v4567 = vrcp.pop %v4535
        %v4568 = vrcp.pop %v4536
        %v4569 = vrcp.pop %v4537
        %v4570 = vrcp.pop %v4538
        %v4571 = vrcp.pop %v4539
        %v4572 = vrcp.pop %v4540
        %v4573 = vrcp.pop %v4541
        %v4574 = vrcp.pop %v4542
        %v4575 = vrcp.pop %v4543
        %v4576 = vrcp.pop %v4544
        %v4577 = vrcp.pop %v4545
        %v4578 = vrcp.pop %v4546
        %v4579 = vrcp.pop %v4547
        %v4580 = vrcp.pop %v4548
        %v4581 = vrcp.pop %v4549
        %v4582 = vrcp.pop %v4550
        %v4583 = vrcp.pop %v4551
        %v4584 = vrcp.pop %v4552
        %v4585 = vrcp.pop %v4553
        %v4586 = vrcp.pop %v4554
        %v4587 = vrcp.pop %v4555
        %v4588 = vrcp.pop %v4556
        %v4589 = vrcp.pop %v4557
        %v4590 = vrcp.pop %v4558
        %v4591 = vrcp.pop %v4559
        %v4592 = vrcp.pop %v4560
        %v4593 = vrcp.pop %v4561
        %4626 = vrot.lane.b32.xlu0 %v4562, 112
        %v4627 = vpop.permute.xlu0 %4626
        %4628 = vrot.lane.b32.xlu0 %v4563, 112
        %v4629 = vpop.permute.xlu0 %4628
        %4630 = vrot.lane.b32.xlu0 %v4564, 112
        %v4631 = vpop.permute.xlu0 %4630
        %4632 = vrot.lane.b32.xlu0 %v4565, 112
        %v4633 = vpop.permute.xlu0 %4632
        %4634 = vrot.lane.b32.xlu0 %v4566, 112
        %v4635 = vpop.permute.xlu0 %4634
        %4636 = vrot.lane.b32.xlu0 %v4567, 112
        %v4637 = vpop.permute.xlu0 %4636
        %4638 = vrot.lane.b32.xlu0 %v4568, 112
        %v4639 = vpop.permute.xlu0 %4638
        %4640 = vrot.lane.b32.xlu0 %v4569, 112
        %v4641 = vpop.permute.xlu0 %4640
        %4642 = vrot.lane.b32.xlu0 %v4570, 112
        %v4643 = vpop.permute.xlu0 %4642
        %4644 = vrot.lane.b32.xlu0 %v4571, 112
        %v4645 = vpop.permute.xlu0 %4644
        %4646 = vrot.lane.b32.xlu0 %v4572, 112
        %v4647 = vpop.permute.xlu0 %4646
        %4648 = vrot.lane.b32.xlu0 %v4573, 112
        %v4649 = vpop.permute.xlu0 %4648
        %4650 = vrot.lane.b32.xlu0 %v4574, 112
        %v4651 = vpop.permute.xlu0 %4650
        %4652 = vrot.lane.b32.xlu0 %v4575, 112
        %v4653 = vpop.permute.xlu0 %4652
        %4654 = vrot.lane.b32.xlu0 %v4576, 112
        %v4655 = vpop.permute.xlu0 %4654
        %4656 = vrot.lane.b32.xlu0 %v4577, 112
        %v4657 = vpop.permute.xlu0 %4656
        %4658 = vrot.lane.b32.xlu0 %v4578, 112
        %v4659 = vpop.permute.xlu0 %4658
        %4660 = vrot.lane.b32.xlu0 %v4579, 112
        %v4661 = vpop.permute.xlu0 %4660
        %4662 = vrot.lane.b32.xlu0 %v4580, 112
        %v4663 = vpop.permute.xlu0 %4662
        %4664 = vrot.lane.b32.xlu0 %v4581, 112
        %v4665 = vpop.permute.xlu0 %4664
        %4666 = vrot.lane.b32.xlu0 %v4582, 112
        %v4667 = vpop.permute.xlu0 %4666
        %4668 = vrot.lane.b32.xlu0 %v4583, 112
        %v4669 = vpop.permute.xlu0 %4668
        %4670 = vrot.lane.b32.xlu0 %v4584, 112
        %v4671 = vpop.permute.xlu0 %4670
        %4672 = vrot.lane.b32.xlu0 %v4585, 112
        %v4673 = vpop.permute.xlu0 %4672
        %4674 = vrot.lane.b32.xlu0 %v4586, 112
        %v4675 = vpop.permute.xlu0 %4674
        %4676 = vrot.lane.b32.xlu0 %v4587, 112
        %v4677 = vpop.permute.xlu0 %4676
        %4678 = vrot.lane.b32.xlu0 %v4588, 112
        %v4679 = vpop.permute.xlu0 %4678
        %4680 = vrot.lane.b32.xlu0 %v4589, 112
        %v4681 = vpop.permute.xlu0 %4680
        %4682 = vrot.lane.b32.xlu0 %v4590, 112
        %v4683 = vpop.permute.xlu0 %4682
        %4684 = vrot.lane.b32.xlu0 %v4591, 112
        %v4685 = vpop.permute.xlu0 %4684
        %4686 = vrot.lane.b32.xlu0 %v4592, 112
        %v4687 = vpop.permute.xlu0 %4686
        %4688 = vrot.lane.b32.xlu0 %v4593, 112
        %v4689 = vpop.permute.xlu0 %4688
        %v4722 = vmul.f32 %v4498, %v4627
        %v4723 = vmul.f32 %v4499, %v4629
        %v4724 = vmul.f32 %v4500, %v4631
        %v4725 = vmul.f32 %v4501, %v4633
        %v4726 = vmul.f32 %v4502, %v4635
        %v4727 = vmul.f32 %v4503, %v4637
        %v4728 = vmul.f32 %v4504, %v4639
        %v4729 = vmul.f32 %v4505, %v4641
        %v4730 = vmul.f32 %v4506, %v4643
        %v4731 = vmul.f32 %v4507, %v4645
        %v4732 = vmul.f32 %v4508, %v4647
        %v4733 = vmul.f32 %v4509, %v4649
        %v4734 = vmul.f32 %v4510, %v4651
        %v4735 = vmul.f32 %v4511, %v4653
        %v4736 = vmul.f32 %v4512, %v4655
        %v4737 = vmul.f32 %v4513, %v4657
        %v4738 = vmul.f32 %v4514, %v4659
        %v4739 = vmul.f32 %v4515, %v4661
        %v4740 = vmul.f32 %v4516, %v4663
        %v4741 = vmul.f32 %v4517, %v4665
        %v4742 = vmul.f32 %v4518, %v4667
        %v4743 = vmul.f32 %v4519, %v4669
        %v4744 = vmul.f32 %v4520, %v4671
        %v4745 = vmul.f32 %v4521, %v4673
        %v4746 = vmul.f32 %v4522, %v4675
        %v4747 = vmul.f32 %v4523, %v4677
        %v4748 = vmul.f32 %v4524, %v4679
        %v4749 = vmul.f32 %v4525, %v4681
        %v4750 = vmul.f32 %v4526, %v4683
        %v4751 = vmul.f32 %v4527, %v4685
        %v4752 = vmul.f32 %v4528, %v4687
        %v4753 = vmul.f32 %v4529, %v4689
        %4786 = vrot.lane.b32.xlu0 %v4722, 16
        %v4787 = vpop.permute.xlu0 %4786
        %4788 = vrot.lane.b32.xlu0 %v4723, 16
        %v4789 = vpop.permute.xlu0 %4788
        %4790 = vrot.lane.b32.xlu0 %v4724, 16
        %v4791 = vpop.permute.xlu0 %4790
        %4792 = vrot.lane.b32.xlu0 %v4725, 16
        %v4793 = vpop.permute.xlu0 %4792
        %4794 = vrot.lane.b32.xlu0 %v4726, 16
        %v4795 = vpop.permute.xlu0 %4794
        %4796 = vrot.lane.b32.xlu0 %v4727, 16
        %v4797 = vpop.permute.xlu0 %4796
        %4798 = vrot.lane.b32.xlu0 %v4728, 16
        %v4799 = vpop.permute.xlu0 %4798
        %4800 = vrot.lane.b32.xlu0 %v4729, 16
        %v4801 = vpop.permute.xlu0 %4800
        %4802 = vrot.lane.b32.xlu0 %v4730, 16
        %v4803 = vpop.permute.xlu0 %4802
        %4804 = vrot.lane.b32.xlu0 %v4731, 16
        %v4805 = vpop.permute.xlu0 %4804
        %4806 = vrot.lane.b32.xlu0 %v4732, 16
        %v4807 = vpop.permute.xlu0 %4806
        %4808 = vrot.lane.b32.xlu0 %v4733, 16
        %v4809 = vpop.permute.xlu0 %4808
        %4810 = vrot.lane.b32.xlu0 %v4734, 16
        %v4811 = vpop.permute.xlu0 %4810
        %4812 = vrot.lane.b32.xlu0 %v4735, 16
        %v4813 = vpop.permute.xlu0 %4812
        %4814 = vrot.lane.b32.xlu0 %v4736, 16
        %v4815 = vpop.permute.xlu0 %4814
        %4816 = vrot.lane.b32.xlu0 %v4737, 16
        %v4817 = vpop.permute.xlu0 %4816
        %4818 = vrot.lane.b32.xlu0 %v4738, 16
        %v4819 = vpop.permute.xlu0 %4818
        %4820 = vrot.lane.b32.xlu0 %v4739, 16
        %v4821 = vpop.permute.xlu0 %4820
        %4822 = vrot.lane.b32.xlu0 %v4740, 16
        %v4823 = vpop.permute.xlu0 %4822
        %4824 = vrot.lane.b32.xlu0 %v4741, 16
        %v4825 = vpop.permute.xlu0 %4824
        %4826 = vrot.lane.b32.xlu0 %v4742, 16
        %v4827 = vpop.permute.xlu0 %4826
        %4828 = vrot.lane.b32.xlu0 %v4743, 16
        %v4829 = vpop.permute.xlu0 %4828
        %4830 = vrot.lane.b32.xlu0 %v4744, 16
        %v4831 = vpop.permute.xlu0 %4830
        %4832 = vrot.lane.b32.xlu0 %v4745, 16
        %v4833 = vpop.permute.xlu0 %4832
        %4834 = vrot.lane.b32.xlu0 %v4746, 16
        %v4835 = vpop.permute.xlu0 %4834
        %4836 = vrot.lane.b32.xlu0 %v4747, 16
        %v4837 = vpop.permute.xlu0 %4836
        %4838 = vrot.lane.b32.xlu0 %v4748, 16
        %v4839 = vpop.permute.xlu0 %4838
        %4840 = vrot.lane.b32.xlu0 %v4749, 16
        %v4841 = vpop.permute.xlu0 %4840
        %4842 = vrot.lane.b32.xlu0 %v4750, 16
        %v4843 = vpop.permute.xlu0 %4842
        %4844 = vrot.lane.b32.xlu0 %v4751, 16
        %v4845 = vpop.permute.xlu0 %4844
        %4846 = vrot.lane.b32.xlu0 %v4752, 16
        %v4847 = vpop.permute.xlu0 %4846
        %4848 = vrot.lane.b32.xlu0 %v4753, 16
        %v4849 = vpop.permute.xlu0 %4848
        %vm4882 = vcmask 130048
        %v4883 = vsel %vm4882, %v4722, %v4787
        %v4884 = vsel %vm4882, %v4723, %v4789
        %v4885 = vsel %vm4882, %v4724, %v4791
        %v4886 = vsel %vm4882, %v4725, %v4793
        %v4887 = vsel %vm4882, %v4726, %v4795
        %v4888 = vsel %vm4882, %v4727, %v4797
        %v4889 = vsel %vm4882, %v4728, %v4799
        %v4890 = vsel %vm4882, %v4729, %v4801
        %v4891 = vsel %vm4882, %v4730, %v4803
        %v4892 = vsel %vm4882, %v4731, %v4805
        %v4893 = vsel %vm4882, %v4732, %v4807
        %v4894 = vsel %vm4882, %v4733, %v4809
        %v4895 = vsel %vm4882, %v4734, %v4811
        %v4896 = vsel %vm4882, %v4735, %v4813
        %v4897 = vsel %vm4882, %v4736, %v4815
        %v4898 = vsel %vm4882, %v4737, %v4817
        %v4899 = vsel %vm4882, %v4738, %v4819
        %v4900 = vsel %vm4882, %v4739, %v4821
        %v4901 = vsel %vm4882, %v4740, %v4823
        %v4902 = vsel %vm4882, %v4741, %v4825
        %v4903 = vsel %vm4882, %v4742, %v4827
        %v4904 = vsel %vm4882, %v4743, %v4829
        %v4905 = vsel %vm4882, %v4744, %v4831
        %v4906 = vsel %vm4882, %v4745, %v4833
        %v4907 = vsel %vm4882, %v4746, %v4835
        %v4908 = vsel %vm4882, %v4747, %v4837
        %v4909 = vsel %vm4882, %v4748, %v4839
        %v4910 = vsel %vm4882, %v4749, %v4841
        %v4911 = vsel %vm4882, %v4750, %v4843
        %v4912 = vsel %vm4882, %v4751, %v4845
        %v4913 = vsel %vm4882, %v4752, %v4847
        %v4914 = vsel %vm4882, %v4753, %v4849
        %v4915 = vld [vmem:[%s3] sm:$0xff]
        %v4916 = vld [vmem:[%s3 + $0x8] sm:$0xff]
        %v4917 = vld [vmem:[%s3 + $0x10] sm:$0xff]
        %v4918 = vld [vmem:[%s3 + $0x18] sm:$0xff]
        %v4919 = vld [vmem:[%s3 + $0x20] sm:$0xff]
        %v4920 = vld [vmem:[%s3 + $0x28] sm:$0xff]
        %v4921 = vld [vmem:[%s3 + $0x30] sm:$0xff]
        %v4922 = vld [vmem:[%s3 + $0x38] sm:$0xff]
        %v4923 = vld [vmem:[%s3 + $0x40] sm:$0xff]
        %v4924 = vld [vmem:[%s3 + $0x48] sm:$0xff]
        %v4925 = vld [vmem:[%s3 + $0x50] sm:$0xff]
        %v4926 = vld [vmem:[%s3 + $0x58] sm:$0xff]
        %v4927 = vld [vmem:[%s3 + $0x60] sm:$0xff]
        %v4928 = vld [vmem:[%s3 + $0x68] sm:$0xff]
        %v4929 = vld [vmem:[%s3 + $0x70] sm:$0xff]
        %v4930 = vld [vmem:[%s3 + $0x78] sm:$0xff]
        %v4931 = vld [vmem:[%s3 + $0x80] sm:$0xff]
        %v4932 = vld [vmem:[%s3 + $0x88] sm:$0xff]
        %v4933 = vld [vmem:[%s3 + $0x90] sm:$0xff]
        %v4934 = vld [vmem:[%s3 + $0x98] sm:$0xff]
        %v4935 = vld [vmem:[%s3 + $0xa0] sm:$0xff]
        %v4936 = vld [vmem:[%s3 + $0xa8] sm:$0xff]
        %v4937 = vld [vmem:[%s3 + $0xb0] sm:$0xff]
        %v4938 = vld [vmem:[%s3 + $0xb8] sm:$0xff]
        %v4939 = vld [vmem:[%s3 + $0xc0] sm:$0xff]
        %v4940 = vld [vmem:[%s3 + $0xc8] sm:$0xff]
        %v4941 = vld [vmem:[%s3 + $0xd0] sm:$0xff]
        %v4942 = vld [vmem:[%s3 + $0xd8] sm:$0xff]
        %v4943 = vld [vmem:[%s3 + $0xe0] sm:$0xff]
        %v4944 = vld [vmem:[%s3 + $0xe8] sm:$0xff]
        %v4945 = vld [vmem:[%s3 + $0xf0] sm:$0xff]
        %v4946 = vld [vmem:[%s3 + $0xf8] sm:$0xff]
        %v4947 = vadd.f32 %v4915, %v4883
        %v4948 = vadd.f32 %v4916, %v4884
        %v4949 = vadd.f32 %v4917, %v4885
        %v4950 = vadd.f32 %v4918, %v4886
        %v4951 = vadd.f32 %v4919, %v4887
        %v4952 = vadd.f32 %v4920, %v4888
        %v4953 = vadd.f32 %v4921, %v4889
        %v4954 = vadd.f32 %v4922, %v4890
        %v4955 = vadd.f32 %v4923, %v4891
        %v4956 = vadd.f32 %v4924, %v4892
        %v4957 = vadd.f32 %v4925, %v4893
        %v4958 = vadd.f32 %v4926, %v4894
        %v4959 = vadd.f32 %v4927, %v4895
        %v4960 = vadd.f32 %v4928, %v4896
        %v4961 = vadd.f32 %v4929, %v4897
        %v4962 = vadd.f32 %v4930, %v4898
        %v4963 = vadd.f32 %v4931, %v4899
        %v4964 = vadd.f32 %v4932, %v4900
        %v4965 = vadd.f32 %v4933, %v4901
        %v4966 = vadd.f32 %v4934, %v4902
        %v4967 = vadd.f32 %v4935, %v4903
        %v4968 = vadd.f32 %v4936, %v4904
        %v4969 = vadd.f32 %v4937, %v4905
        %v4970 = vadd.f32 %v4938, %v4906
        %v4971 = vadd.f32 %v4939, %v4907
        %v4972 = vadd.f32 %v4940, %v4908
        %v4973 = vadd.f32 %v4941, %v4909
        %v4974 = vadd.f32 %v4942, %v4910
        %v4975 = vadd.f32 %v4943, %v4911
        %v4976 = vadd.f32 %v4944, %v4912
        %v4977 = vadd.f32 %v4945, %v4913
        %v4978 = vadd.f32 %v4946, %v4914
        %4979 = vst.msk [vmem:[%s12] sm:$0xff] %vm1663, %v4947
        %4980 = vst.msk [vmem:[%s12 + $0x8] sm:$0xff] %vm1663, %v4948
        %4981 = vst.msk [vmem:[%s12 + $0x10] sm:$0xff] %vm1663, %v4949
        %4982 = vst.msk [vmem:[%s12 + $0x18] sm:$0xff] %vm1663, %v4950
        %4983 = vst.msk [vmem:[%s12 + $0x20] sm:$0xff] %vm1663, %v4951
        %4984 = vst.msk [vmem:[%s12 + $0x28] sm:$0xff] %vm1663, %v4952
        %4985 = vst.msk [vmem:[%s12 + $0x30] sm:$0xff] %vm1663, %v4953
        %4986 = vst.msk [vmem:[%s12 + $0x38] sm:$0xff] %vm1663, %v4954
        %4987 = vst.msk [vmem:[%s12 + $0x40] sm:$0xff] %vm1663, %v4955
        %4988 = vst.msk [vmem:[%s12 + $0x48] sm:$0xff] %vm1663, %v4956
        %4989 = vst.msk [vmem:[%s12 + $0x50] sm:$0xff] %vm1663, %v4957
        %4990 = vst.msk [vmem:[%s12 + $0x58] sm:$0xff] %vm1663, %v4958
        %4991 = vst.msk [vmem:[%s12 + $0x60] sm:$0xff] %vm1663, %v4959
        %4992 = vst.msk [vmem:[%s12 + $0x68] sm:$0xff] %vm1663, %v4960
        %4993 = vst.msk [vmem:[%s12 + $0x70] sm:$0xff] %vm1663, %v4961
        %4994 = vst.msk [vmem:[%s12 + $0x78] sm:$0xff] %vm1663, %v4962
        %4995 = vst.msk [vmem:[%s12 + $0x80] sm:$0xff] %vm1663, %v4963
        %4996 = vst.msk [vmem:[%s12 + $0x88] sm:$0xff] %vm1663, %v4964
        %4997 = vst.msk [vmem:[%s12 + $0x90] sm:$0xff] %vm1663, %v4965
        %4998 = vst.msk [vmem:[%s12 + $0x98] sm:$0xff] %vm1663, %v4966
        %4999 = vst.msk [vmem:[%s12 + $0xa0] sm:$0xff] %vm1663, %v4967
        %5000 = vst.msk [vmem:[%s12 + $0xa8] sm:$0xff] %vm1663, %v4968
        %5001 = vst.msk [vmem:[%s12 + $0xb0] sm:$0xff] %vm1663, %v4969
        %5002 = vst.msk [vmem:[%s12 + $0xb8] sm:$0xff] %vm1663, %v4970
        %5003 = vst.msk [vmem:[%s12 + $0xc0] sm:$0xff] %vm1663, %v4971
        %5004 = vst.msk [vmem:[%s12 + $0xc8] sm:$0xff] %vm1663, %v4972
        %5005 = vst.msk [vmem:[%s12 + $0xd0] sm:$0xff] %vm1663, %v4973
        %5006 = vst.msk [vmem:[%s12 + $0xd8] sm:$0xff] %vm1663, %v4974
        %5007 = vst.msk [vmem:[%s12 + $0xe0] sm:$0xff] %vm1663, %v4975
        %5008 = vst.msk [vmem:[%s12 + $0xe8] sm:$0xff] %vm1663, %v4976
        %5009 = vst.msk [vmem:[%s12 + $0xf0] sm:$0xff] %vm1663, %v4977
        %5010 = vst.msk [vmem:[%s12 + $0xf8] sm:$0xff] %vm1663, %v4978
      $region84: #{tpu_custom_call.1} parent=67 // pred_fallthru
        _
      // Predicated region
      $region85: #{tpu_custom_call.1} parent=67 // pred_check
        %p5011 = pneg %p315
      $region86: #{tpu_custom_call.1} parent=67 // pred_check_branch
        %5013 = sbr.rel (%p5011) target = $region88
      $region87: #{tpu_custom_call.1} parent=67 // pred_region
        _
      $region88: #{tpu_custom_call.1} parent=67 // pred_fallthru
        _
      // Predicated region
      $region89: #{tpu_custom_call.1} parent=67 // pred_check
        %p5014 = pneg %p315
      $region90: #{tpu_custom_call.1} parent=67 // pred_check_branch
        %5016 = sbr.rel (%p5014) target = $region92
      $region91: #{tpu_custom_call.1} parent=67 // pred_region
        _
      $region92: #{tpu_custom_call.1} parent=67 // pred_fallthru
        _
    $region68: #{tpu_custom_call.1} parent=5 // pred_fallthru
      _
    %p5017 = scmp.le.s32.totalorder 2, %s18
    // Predicated region
    $region93: #{tpu_custom_call.1} parent=5 // pred_check
      %p5018 = pneg %p5017
    $region94: #{tpu_custom_call.1} parent=5 // pred_check_branch
      %5020 = sbr.rel (%p5018) target = $region96
    $region95: #{tpu_custom_call.1} parent=5 // pred_region
      %s5021 = ssub.s32 %s18, 2
    $region96: #{tpu_custom_call.1} parent=5 // pred_fallthru
      _
  $region6: #{tpu_custom_call.1} parent=0 // loop_footer
    %s22 = sadd.s32 1, %s18
  $region7: #{tpu_custom_call.1} parent=0 // loop_footer_branch
    %17 = sbr.rel target = $region3
  $region8: #{tpu_custom_call.1} parent=0 // loop_exit
    _

</llo_original>
